<compile_context>
chip_gen: v7x
topology: tpu7x:2x2x1
jax: 0.10.0
libtpu: 0.0.40
codegen_flags: <defaults>
</compile_context>

<pallas_src>
import functools

import numpy as np
import jax
import jax.numpy as jnp
from jax import lax
from jax.experimental import pallas as pl
from jax.experimental.pallas import tpu as pltpu

TOTAL_NODES = 15     # implied by `there_att_label = idx + 15` in the torch code
SHAPE_NODES = 29
ATT_NODES = 96
ALPH1 = 2.0
ALPH2 = 2.0


def _round_up(x, m):
    return (x + m - 1) // m * m


def _pick_block_b(b_pad):
    # Prefer >= 2 grid steps (shards across v7x's two TensorCores via the
    # "parallel" grid axis) while keeping tiles >= 256 lanes where possible
    # (fills the 256-wide MXU on v6e/v7x).  Fall back to the largest divisor.
    for cand in (512, 256):
        if b_pad % cand == 0 and b_pad // cand >= 2:
            return cand
    for cand in (512, 256, 128):
        if b_pad % cand == 0:
            return cand
    return b_pad


def _pow(x, a):
    a = float(a)
    if a.is_integer():
        return lax.integer_pow(x, int(a))   # exact, plain VPU multiplies
    return jnp.power(x, a)


# --------------------------------------------------------------------------
# Deterministic state-space construction (mirrors generate*StateSpace, numpy)
# --------------------------------------------------------------------------
def generate_state_space(hierarchy, total_nodes):
    # levels == 2 branch of generateStateSpace
    ss = np.zeros((total_nodes + 1, total_nodes), dtype=np.float32)
    recorded = np.zeros(total_nodes, dtype=np.int32)
    i = 1
    for path in hierarchy:
        if recorded[path[1]] == 0:
            ss[i, path[1]] = 1
            recorded[path[1]] = 1
            i += 1
        ss[i, path[1]] = 1
        ss[i, path[0]] = 1
        i += 1
    assert i == total_nodes + 1, "Invalid StateSpace!!!"
    return ss


def generate_aug_state_space(origin_ss, total_nodes, extra_nodes):
    # mirrors generateShapeStateSpace / generateAttStateSpace
    rows = [np.zeros((1, total_nodes + extra_nodes), dtype=np.float32)]
    for state_index in range(16):
        legal = origin_ss[state_index:state_index + 1, :]
        for i in range(extra_nodes):
            extra = np.zeros((1, extra_nodes), dtype=np.float32)
            extra[0, i] = 1.0
            rows.append(np.concatenate([legal, extra], axis=1))
    return np.concatenate(rows, axis=0)


def _pad_state_space(x, row_align):
    """Pad a static 0/1 state-space matrix once (setup time, numpy).

    Adds a "ones column" in the padded C range set on *real* rows only, so
    z = (M^T @ joint)[ones_col] rides the G matmul on the MXU and padded rows
    are excluded automatically.
    """
    s, c = x.shape
    s_pad = _round_up(max(s, row_align), row_align)
    c_pad = _round_up(max(c + 1, 128), 128)
    assert c < c_pad
    out = np.zeros((s_pad, c_pad), np.float32)
    out[:s, :c] = x
    out[:s, c_pad - 1] = 1.0          # ones column (features/labels are 0 there)
    return out, s


# --------------------------------------------------------------------------
# Fused Pallas kernel.
#   main  path: logits = M F^T; W = M L^T; p  = sum_s(W*joint) / sum_s(joint)
#   shape path: logits = M F^T; G = M^T joint; pt = sum_c(L^T*G) / G[z_col]
#   att   path: same as shape with the attribute mask as L.
#   losses (-log p and the focal terms) are computed in-kernel.
# Output: one lane-dense (8, TB) slab:
#   rows 0..2 = loss, loss_shape, loss_att;  rows 3..5 = p, pt, pa.
# --------------------------------------------------------------------------
def _graph_loss_kernel(m1_ref, f1_ref, l1_ref,
                       m2_ref, m2t_ref, f2_ref, lt2_ref,
                       m3_ref, m3t_ref, f3_ref, lt3_ref,
                       out_ref, *, n_pad_main, z_cols, alph1, alph2):
    f32 = jnp.float32
    dn_nt = (((1,), (1,)), ((), ()))   # (S,C) x (B,C)  contract C -> (S,B)
    dn_nn = (((1,), (0,)), ((), ()))   # (C,S) x (S,B)  contract S -> (C,B)

    # ---------------- main path: W formulation (S_pad = 16 << C_pad) -------
    m1 = m1_ref[...]
    logits1 = lax.dot_general(m1, f1_ref[...], dn_nt, preferred_element_type=f32)
    w1 = lax.dot_general(m1, l1_ref[...], dn_nt, preferred_element_type=f32)
    # Max-subtraction is exact for the ratio and prevents exp overflow.
    mx1 = jnp.max(logits1, axis=0, keepdims=True)
    joint1 = jnp.exp(logits1 - mx1)
    z1 = jnp.sum(joint1, axis=0, keepdims=True)
    if n_pad_main:                       # static constant; 0 for 16 state rows
        z1 = z1 - float(n_pad_main) * jnp.exp(-mx1)
    marg1 = jnp.sum(w1 * joint1, axis=0, keepdims=True)
    p = marg1 / z1

    # ---------------- shape / att paths: G formulation ---------------------
    def marginal_g(m_ref, mt_ref, f_ref, lt_ref, z_col):
        logits = lax.dot_general(m_ref[...], f_ref[...], dn_nt,
                                 preferred_element_type=f32)        # (S_pad, TB)
        mx = jnp.max(logits, axis=0, keepdims=True)
        joint = jnp.exp(logits - mx)                                 # (S_pad, TB)
        g = lax.dot_general(mt_ref[...], joint, dn_nn,
                            preferred_element_type=f32)              # (C_pad, TB)
        z = g[z_col:z_col + 1, :]          # ones column = sum over real rows
        marg = jnp.sum(lt_ref[...] * g, axis=0, keepdims=True)       # (1, TB)
        return marg / z

    pt = marginal_g(m2_ref, m2t_ref, f2_ref, lt2_ref, z_cols[0])
    pa = marginal_g(m3_ref, m3t_ref, f3_ref, lt3_ref, z_cols[1])

    # ---------------- loss elementwise math (EUP log / VPU) -----------------
    loss_main = -jnp.log(p)
    loss_shape = -_pow(1.0 - p, alph1) * jnp.log(pt)
    loss_att = -_pow(1.0 - pt, alph2) * jnp.log(pa)

    out_ref[0:1, :] = loss_main
    out_ref[1:2, :] = loss_shape
    out_ref[2:3, :] = loss_att
    out_ref[3:4, :] = p
    out_ref[4:5, :] = pt
    out_ref[5:6, :] = pa
    out_ref[6:8, :] = jnp.zeros((2, out_ref.shape[1]), f32)


# --------------------------------------------------------------------------
# Module factory: builds the padded state-space constants once and returns a
# single jitted forward (padding + one-hot + pallas_call + means fused).
# --------------------------------------------------------------------------
def make_graph_loss(hierarchy, total_nodes=TOTAL_NODES,
                    shape_nodes=SHAPE_NODES, att_nodes=ATT_NODES,
                    alph1=ALPH1, alph2=ALPH2):
    ss_np = generate_state_space(hierarchy, total_nodes)                 # (16, 15)
    shape_np = generate_aug_state_space(ss_np, total_nodes, shape_nodes)  # (465, 44)
    att_np = generate_aug_state_space(ss_np, total_nodes, att_nodes)      # (1537, 111)

    # Static pre-padding (setup time, numpy).  The G-form matrices are padded
    # to 128-row multiples so the S contraction dimension is lane-aligned.
    m1_np, n1 = _pad_state_space(ss_np, 8)
    m2_np, _ = _pad_state_space(shape_np, 128)
    m3_np, _ = _pad_state_space(att_np, 128)
    m2t_np = np.ascontiguousarray(m2_np.T)
    m3t_np = np.ascontiguousarray(m3_np.T)

    n_pad_main = m1_np.shape[0] - n1
    s1, c1 = m1_np.shape
    s2, c2 = m2_np.shape
    s3, c3 = m3_np.shape
    z_cols = (c2 - 1, c3 - 1)

    m1 = jnp.asarray(m1_np)
    m2 = jnp.asarray(m2_np)
    m2t = jnp.asarray(m2t_np)
    m3 = jnp.asarray(m3_np)
    m3t = jnp.asarray(m3t_np)

    kernel = functools.partial(_graph_loss_kernel, n_pad_main=n_pad_main,
                               z_cols=z_cols, alph1=alph1, alph2=alph2)

    def forward(fs, labels, label_fs, labels_shape, attribute_label, att_fs):
        b = fs.shape[0]
        b_pad = _round_up(max(b, 128), 128)
        block_b = _pick_block_b(b_pad)
        grid = (b_pad // block_b,)

        def pad_bm(x, c_pad):                      # batch-major (b_pad, c_pad)
            return (jnp.zeros((b_pad, c_pad), jnp.float32)
                    .at[:x.shape[0], :x.shape[1]].set(x.astype(jnp.float32)))

        # Main path: features + one-hot labels, batch-major.
        f1 = pad_bm(fs, c1)
        l1 = pad_bm(jax.nn.one_hot(labels, total_nodes, dtype=jnp.float32), c1)
        # Shape / att paths: features batch-major, labels pre-transposed to
        # (C_pad, B_pad) for the G-form contraction.
        f2 = pad_bm(label_fs, c2)
        lt2 = (jnp.zeros((c2, b_pad), jnp.float32)
               .at[:total_nodes + shape_nodes, :b]
               .set(jax.nn.one_hot(labels_shape, total_nodes + shape_nodes,
                                   dtype=jnp.float32, axis=0)))
        f3 = pad_bm(att_fs, c3)
        lt3 = (jnp.zeros((c3, b_pad), jnp.float32)
               .at[total_nodes:total_nodes + att_nodes, :b]
               .set((attribute_label > 0).astype(jnp.float32).T))

        def const_spec(shape):
            # Constant block index -> stays VMEM-resident across grid steps.
            # (pipeline_mode=pl.Buffered(1) would reclaim the redundant second
            #  buffer; left at the default for lowering robustness.)
            return pl.BlockSpec(shape, lambda i: (0, 0))

        def batch_spec(c_pad):
            return pl.BlockSpec((block_b, c_pad), lambda i: (i, 0))

        def lt_spec(c_pad):
            return pl.BlockSpec((c_pad, block_b), lambda i: (0, i))

        out = pl.pallas_call(
            kernel,
            out_shape=jax.ShapeDtypeStruct((8, b_pad), jnp.float32),
            grid=grid,
            in_specs=[
                const_spec((s1, c1)), batch_spec(c1), batch_spec(c1),
                const_spec((s2, c2)), const_spec((c2, s2)),
                batch_spec(c2), lt_spec(c2),
                const_spec((s3, c3)), const_spec((c3, s3)),
                batch_spec(c3), lt_spec(c3),
            ],
            out_specs=pl.BlockSpec((8, block_b), lambda i: (0, i)),
            compiler_params=pltpu.CompilerParams(
                dimension_semantics=("parallel",),
                vmem_limit_bytes=32 << 20),
        )(m1, f1, l1, m2, m2t, f2, lt2, m3, m3t, f3, lt3)

        loss = jnp.mean(out[0, :b])
        loss_shape = jnp.mean(out[1, :b])
        loss_att = jnp.mean(out[2, :b])
        return loss, loss_shape, loss_att

    return jax.jit(forward)


# --------------------------------------------------------------------------
if __name__ == "__main__":
    # 2-level hierarchy over 15 nodes: parents {10..14}, children {0..9}
    hierarchy = [[0, 10], [1, 10], [2, 11], [3, 11], [4, 12],
                 [5, 12], [6, 13], [7, 13], [8, 14], [9, 14]]
    graph_loss = make_graph_loss(hierarchy)

    B = 4
    key = jax.random.PRNGKey(0)
    k1, k2, k3, k4, k5, k6 = jax.random.split(key, 6)
    fs = 0.5 * jax.random.normal(k1, (B, TOTAL_NODES), jnp.float32)
    label_fs = 0.5 * jax.random.normal(k2, (B, TOTAL_NODES + SHAPE_NODES), jnp.float32)
    att_fs = 0.5 * jax.random.normal(k3, (B, TOTAL_NODES + ATT_NODES), jnp.float32)
    labels = jax.random.randint(k4, (B,), 0, TOTAL_NODES)
    labels_shape = TOTAL_NODES + jax.random.randint(k5, (B,), 0, SHAPE_NODES)
    attribute_label = (jax.random.uniform(k6, (B, ATT_NODES)) < 0.2).astype(jnp.int32)
    attribute_label = attribute_label.at[:, 0].set(1)  # >=1 positive attribute / row

    out = graph_loss(fs, labels, label_fs, labels_shape, attribute_label, att_fs)
    out = jax.block_until_ready(out)

    # Pure-JAX reference check of the fused Pallas hot path + in-kernel loss.
    ss_np = generate_state_space(hierarchy, TOTAL_NODES)
    shape_np = generate_aug_state_space(ss_np, TOTAL_NODES, SHAPE_NODES)
    att_np = generate_aug_state_space(ss_np, TOTAL_NODES, ATT_NODES)
    state_space = jnp.asarray(ss_np)
    shape_ss = jnp.asarray(shape_np)
    att_ss = jnp.asarray(att_np)

    def ref_marginal(M, F, W):
        joint = jnp.exp(jnp.dot(M, F.T))
        return jnp.sum(W * joint, axis=0) / jnp.sum(joint, axis=0)

    w_main_r = (state_space[:, labels] > 0).astype(jnp.float32)
    w_shape_r = (shape_ss[:, labels_shape] > 0).astype(jnp.float32)
    w_att_r = jnp.dot((att_ss[:, TOTAL_NODES:] > 0).astype(jnp.float32),
                      (attribute_label > 0).astype(jnp.float32).T)
    p_r = ref_marginal(state_space, fs, w_main_r)
    pt_r = ref_marginal(shape_ss, label_fs, w_shape_r)
    pa_r = ref_marginal(att_ss, att_fs, w_att_r)
    ref = (jnp.mean(-jnp.log(p_r)),
           jnp.mean(-((1.0 - p_r) ** ALPH1) * jnp.log(pt_r)),
           jnp.mean(-((1.0 - pt_r) ** ALPH2) * jnp.log(pa_r)))
    for a, r in zip(out, ref):
        np.testing.assert_allclose(np.asarray(a), np.asarray(r),
                                   rtol=2e-3, atol=1e-3)

    print("KERNEL_OK")
</pallas_src>

<mosaic_0001>
module attributes {stable_mosaic.version = 11 : i64} {
  func.func @_graph_loss_kernel(%arg0: i32, %arg1: memref<16x128xf32, #tpu.memory_space<vmem>>, %arg2: memref<128x128xf32, #tpu.memory_space<vmem>>, %arg3: memref<128x128xf32, #tpu.memory_space<vmem>>, %arg4: memref<512x128xf32, #tpu.memory_space<vmem>>, %arg5: memref<128x512xf32, #tpu.memory_space<vmem>>, %arg6: memref<128x128xf32, #tpu.memory_space<vmem>>, %arg7: memref<128x128xf32, #tpu.memory_space<vmem>>, %arg8: memref<1664x128xf32, #tpu.memory_space<vmem>>, %arg9: memref<128x1664xf32, #tpu.memory_space<vmem>>, %arg10: memref<128x128xf32, #tpu.memory_space<vmem>>, %arg11: memref<128x128xf32, #tpu.memory_space<vmem>>, %arg12: memref<8x128xf32, #tpu.memory_space<vmem>>) attributes {dimension_semantics = [#tpu.dimension_semantics<parallel>], iteration_bounds = array<i64: 1>, scalar_prefetch = 0 : i64, scratch_operands = 0 : i64, tpu.core_type = #tpu.core_type<tc>, window_params = [{pipeline_mode = #tpu.pipeline_mode<synchronous>, transform_indices = @transform_0, window_bounds = array<i64: 16, 128>}, {transform_indices = @transform_1, window_bounds = array<i64: 128, 128>}, {transform_indices = @transform_2, window_bounds = array<i64: 128, 128>}, {pipeline_mode = #tpu.pipeline_mode<synchronous>, transform_indices = @transform_3, window_bounds = array<i64: 512, 128>}, {pipeline_mode = #tpu.pipeline_mode<synchronous>, transform_indices = @transform_4, window_bounds = array<i64: 128, 512>}, {transform_indices = @transform_5, window_bounds = array<i64: 128, 128>}, {transform_indices = @transform_6, window_bounds = array<i64: 128, 128>}, {pipeline_mode = #tpu.pipeline_mode<synchronous>, transform_indices = @transform_7, window_bounds = array<i64: 1664, 128>}, {pipeline_mode = #tpu.pipeline_mode<synchronous>, transform_indices = @transform_8, window_bounds = array<i64: 128, 1664>}, {transform_indices = @transform_9, window_bounds = array<i64: 128, 128>}, {transform_indices = @transform_10, window_bounds = array<i64: 128, 128>}, {transform_indices = @transform_11, window_bounds = array<i64: 8, 128>}]} {
    %c0 = arith.constant 0 : index
    %c0_0 = arith.constant 0 : index
    %0 = vector.load %arg1[%c0, %c0_0] : memref<16x128xf32, #tpu.memory_space<vmem>>, vector<16x128xf32>
    %c0_1 = arith.constant 0 : index
    %c0_2 = arith.constant 0 : index
    %1 = vector.load %arg2[%c0_1, %c0_2] : memref<128x128xf32, #tpu.memory_space<vmem>>, vector<128x128xf32>
    %cst = arith.constant dense<0.000000e+00> : vector<16x128xf32>
    %2 = tpu.matmul %0, %1, %cst {dimension_numbers = #tpu.dot_dimension_numbers<[1], [1], [0], [0], [0, 0, 1, 0], [], []>} : vector<16x128xf32>, vector<128x128xf32>, vector<16x128xf32> -> vector<16x128xf32>
    %c0_3 = arith.constant 0 : index
    %c0_4 = arith.constant 0 : index
    %3 = vector.load %arg3[%c0_3, %c0_4] : memref<128x128xf32, #tpu.memory_space<vmem>>, vector<128x128xf32>
    %cst_5 = arith.constant dense<0.000000e+00> : vector<16x128xf32>
    %4 = tpu.matmul %0, %3, %cst_5 {dimension_numbers = #tpu.dot_dimension_numbers<[1], [1], [0], [0], [0, 0, 1, 0], [], []>} : vector<16x128xf32>, vector<128x128xf32>, vector<16x128xf32> -> vector<16x128xf32>
    %cst_6 = arith.constant dense<0xFF800000> : vector<128xf32>
    %5 = vector.multi_reduction <maximumf>, %2, %cst_6 [0] : vector<16x128xf32> to vector<128xf32>
    %6 = vector.shape_cast %5 : vector<128xf32> to vector<1x128xf32>
    %7 = vector.broadcast %6 : vector<1x128xf32> to vector<16x128xf32>
    %8 = arith.subf %2, %7 : vector<16x128xf32>
    %9 = math.exp %8 : vector<16x128xf32>
    %cst_7 = arith.constant dense<0.000000e+00> : vector<128xf32>
    %10 = vector.multi_reduction <add>, %9, %cst_7 [0] : vector<16x128xf32> to vector<128xf32>
    %11 = vector.shape_cast %10 : vector<128xf32> to vector<1x128xf32>
    %12 = arith.mulf %4, %9 : vector<16x128xf32>
    %cst_8 = arith.constant dense<0.000000e+00> : vector<128xf32>
    %13 = vector.multi_reduction <add>, %12, %cst_8 [0] : vector<16x128xf32> to vector<128xf32>
    %14 = vector.shape_cast %13 : vector<128xf32> to vector<1x128xf32>
    %15 = arith.divf %14, %11 : vector<1x128xf32>
    %c0_9 = arith.constant 0 : index
    %c0_10 = arith.constant 0 : index
    %16 = vector.load %arg4[%c0_9, %c0_10] : memref<512x128xf32, #tpu.memory_space<vmem>>, vector<512x128xf32>
    %c0_11 = arith.constant 0 : index
    %c0_12 = arith.constant 0 : index
    %17 = vector.load %arg6[%c0_11, %c0_12] : memref<128x128xf32, #tpu.memory_space<vmem>>, vector<128x128xf32>
    %cst_13 = arith.constant dense<0.000000e+00> : vector<512x128xf32>
    %18 = tpu.matmul %16, %17, %cst_13 {dimension_numbers = #tpu.dot_dimension_numbers<[1], [1], [0], [0], [0, 0, 1, 0], [], []>} : vector<512x128xf32>, vector<128x128xf32>, vector<512x128xf32> -> vector<512x128xf32>
    %cst_14 = arith.constant dense<0xFF800000> : vector<128xf32>
    %19 = vector.multi_reduction <maximumf>, %18, %cst_14 [0] : vector<512x128xf32> to vector<128xf32>
    %20 = vector.shape_cast %19 : vector<128xf32> to vector<1x128xf32>
    %21 = vector.broadcast %20 : vector<1x128xf32> to vector<512x128xf32>
    %22 = arith.subf %18, %21 : vector<512x128xf32>
    %23 = math.exp %22 : vector<512x128xf32>
    %c0_15 = arith.constant 0 : index
    %c0_16 = arith.constant 0 : index
    %24 = vector.load %arg5[%c0_15, %c0_16] : memref<128x512xf32, #tpu.memory_space<vmem>>, vector<128x512xf32>
    %cst_17 = arith.constant dense<0.000000e+00> : vector<128x128xf32>
    %25 = tpu.matmul %24, %23, %cst_17 {dimension_numbers = #tpu.dot_dimension_numbers<[1], [0], [0], [1], [0, 0, 1, 1], [], []>} : vector<128x512xf32>, vector<512x128xf32>, vector<128x128xf32> -> vector<128x128xf32>
    %26 = vector.extract_strided_slice %25 {offsets = [127, 0], sizes = [1, 128], strides = [1, 1]} : vector<128x128xf32> to vector<1x128xf32>
    %c0_18 = arith.constant 0 : index
    %c0_19 = arith.constant 0 : index
    %27 = vector.load %arg7[%c0_18, %c0_19] : memref<128x128xf32, #tpu.memory_space<vmem>>, vector<128x128xf32>
    %28 = arith.mulf %27, %25 : vector<128x128xf32>
    %cst_20 = arith.constant dense<0.000000e+00> : vector<128xf32>
    %29 = vector.multi_reduction <add>, %28, %cst_20 [0] : vector<128x128xf32> to vector<128xf32>
    %30 = vector.shape_cast %29 : vector<128xf32> to vector<1x128xf32>
    %31 = arith.divf %30, %26 : vector<1x128xf32>
    %c0_21 = arith.constant 0 : index
    %c0_22 = arith.constant 0 : index
    %32 = vector.load %arg8[%c0_21, %c0_22] : memref<1664x128xf32, #tpu.memory_space<vmem>>, vector<1664x128xf32>
    %c0_23 = arith.constant 0 : index
    %c0_24 = arith.constant 0 : index
    %33 = vector.load %arg10[%c0_23, %c0_24] : memref<128x128xf32, #tpu.memory_space<vmem>>, vector<128x128xf32>
    %cst_25 = arith.constant dense<0.000000e+00> : vector<1664x128xf32>
    %34 = tpu.matmul %32, %33, %cst_25 {dimension_numbers = #tpu.dot_dimension_numbers<[1], [1], [0], [0], [0, 0, 1, 0], [], []>} : vector<1664x128xf32>, vector<128x128xf32>, vector<1664x128xf32> -> vector<1664x128xf32>
    %cst_26 = arith.constant dense<0xFF800000> : vector<128xf32>
    %35 = vector.multi_reduction <maximumf>, %34, %cst_26 [0] : vector<1664x128xf32> to vector<128xf32>
    %36 = vector.shape_cast %35 : vector<128xf32> to vector<1x128xf32>
    %37 = vector.broadcast %36 : vector<1x128xf32> to vector<1664x128xf32>
    %38 = arith.subf %34, %37 : vector<1664x128xf32>
    %39 = math.exp %38 : vector<1664x128xf32>
    %c0_27 = arith.constant 0 : index
    %c0_28 = arith.constant 0 : index
    %40 = vector.load %arg9[%c0_27, %c0_28] : memref<128x1664xf32, #tpu.memory_space<vmem>>, vector<128x1664xf32>
    %cst_29 = arith.constant dense<0.000000e+00> : vector<128x128xf32>
    %41 = tpu.matmul %40, %39, %cst_29 {dimension_numbers = #tpu.dot_dimension_numbers<[1], [0], [0], [1], [0, 0, 1, 1], [], []>} : vector<128x1664xf32>, vector<1664x128xf32>, vector<128x128xf32> -> vector<128x128xf32>
    %42 = vector.extract_strided_slice %41 {offsets = [127, 0], sizes = [1, 128], strides = [1, 1]} : vector<128x128xf32> to vector<1x128xf32>
    %c0_30 = arith.constant 0 : index
    %c0_31 = arith.constant 0 : index
    %43 = vector.load %arg11[%c0_30, %c0_31] : memref<128x128xf32, #tpu.memory_space<vmem>>, vector<128x128xf32>
    %44 = arith.mulf %43, %41 : vector<128x128xf32>
    %cst_32 = arith.constant dense<0.000000e+00> : vector<128xf32>
    %45 = vector.multi_reduction <add>, %44, %cst_32 [0] : vector<128x128xf32> to vector<128xf32>
    %46 = vector.shape_cast %45 : vector<128xf32> to vector<1x128xf32>
    %47 = arith.divf %46, %42 : vector<1x128xf32>
    %48 = math.log %15 : vector<1x128xf32>
    %cst_33 = arith.constant 0.000000e+00 : f32
    %49 = vector.broadcast %cst_33 : f32 to vector<1x128xf32>
    %50 = arith.subf %49, %48 : vector<1x128xf32>
    %cst_34 = arith.constant 1.000000e+00 : f32
    %51 = vector.broadcast %cst_34 : f32 to vector<1x128xf32>
    %52 = arith.subf %51, %15 : vector<1x128xf32>
    %53 = arith.mulf %52, %52 : vector<1x128xf32>
    %cst_35 = arith.constant 0.000000e+00 : f32
    %54 = vector.broadcast %cst_35 : f32 to vector<1x128xf32>
    %55 = arith.subf %54, %53 : vector<1x128xf32>
    %56 = math.log %31 : vector<1x128xf32>
    %57 = arith.mulf %55, %56 : vector<1x128xf32>
    %cst_36 = arith.constant 1.000000e+00 : f32
    %58 = vector.broadcast %cst_36 : f32 to vector<1x128xf32>
    %59 = arith.subf %58, %31 : vector<1x128xf32>
    %60 = arith.mulf %59, %59 : vector<1x128xf32>
    %cst_37 = arith.constant 0.000000e+00 : f32
    %61 = vector.broadcast %cst_37 : f32 to vector<1x128xf32>
    %62 = arith.subf %61, %60 : vector<1x128xf32>
    %63 = math.log %47 : vector<1x128xf32>
    %64 = arith.mulf %62, %63 : vector<1x128xf32>
    %c0_38 = arith.constant 0 : index
    %c0_39 = arith.constant 0 : index
    %65 = vector.load %arg12[%c0_38, %c0_39] : memref<8x128xf32, #tpu.memory_space<vmem>>, vector<1x128xf32>
    tpu.vector_store %arg12[%c0_38, %c0_39], %50 {strides = array<i32>} : memref<8x128xf32, #tpu.memory_space<vmem>>, vector<1x128xf32>,
    %c1 = arith.constant 1 : index
    %c0_40 = arith.constant 0 : index
    %66 = vector.load %arg12[%c1, %c0_40] : memref<8x128xf32, #tpu.memory_space<vmem>>, vector<1x128xf32>
    tpu.vector_store %arg12[%c1, %c0_40], %57 {strides = array<i32>} : memref<8x128xf32, #tpu.memory_space<vmem>>, vector<1x128xf32>,
    %c2 = arith.constant 2 : index
    %c0_41 = arith.constant 0 : index
    %67 = vector.load %arg12[%c2, %c0_41] : memref<8x128xf32, #tpu.memory_space<vmem>>, vector<1x128xf32>
    tpu.vector_store %arg12[%c2, %c0_41], %64 {strides = array<i32>} : memref<8x128xf32, #tpu.memory_space<vmem>>, vector<1x128xf32>,
    %c3 = arith.constant 3 : index
    %c0_42 = arith.constant 0 : index
    %68 = vector.load %arg12[%c3, %c0_42] : memref<8x128xf32, #tpu.memory_space<vmem>>, vector<1x128xf32>
    tpu.vector_store %arg12[%c3, %c0_42], %15 {strides = array<i32>} : memref<8x128xf32, #tpu.memory_space<vmem>>, vector<1x128xf32>,
    %c4 = arith.constant 4 : index
    %c0_43 = arith.constant 0 : index
    %69 = vector.load %arg12[%c4, %c0_43] : memref<8x128xf32, #tpu.memory_space<vmem>>, vector<1x128xf32>
    tpu.vector_store %arg12[%c4, %c0_43], %31 {strides = array<i32>} : memref<8x128xf32, #tpu.memory_space<vmem>>, vector<1x128xf32>,
    %c5 = arith.constant 5 : index
    %c0_44 = arith.constant 0 : index
    %70 = vector.load %arg12[%c5, %c0_44] : memref<8x128xf32, #tpu.memory_space<vmem>>, vector<1x128xf32>
    tpu.vector_store %arg12[%c5, %c0_44], %47 {strides = array<i32>} : memref<8x128xf32, #tpu.memory_space<vmem>>, vector<1x128xf32>,
    %cst_45 = arith.constant 0.000000e+00 : f32
    %71 = vector.broadcast %cst_45 : f32 to vector<2x128xf32>
    %c6 = arith.constant 6 : index
    %c0_46 = arith.constant 0 : index
    %72 = vector.load %arg12[%c6, %c0_46] : memref<8x128xf32, #tpu.memory_space<vmem>>, vector<2x128xf32>
    tpu.vector_store %arg12[%c6, %c0_46], %71 {strides = array<i32>} : memref<8x128xf32, #tpu.memory_space<vmem>>, vector<2x128xf32>,
    return
  }
  func.func @transform_0(%arg0: i32) -> (i32, i32) {
    %c0_i32 = arith.constant 0 : i32
    %c0_i32_0 = arith.constant 0 : i32
    %c0_i32_1 = arith.constant 0 : i32
    return %c0_i32, %c0_i32_0 : i32, i32
  }
  func.func @transform_1(%arg0: i32) -> (i32, i32) {
    %c0_i32 = arith.constant 0 : i32
    %c0_i32_0 = arith.constant 0 : i32
    return %arg0, %c0_i32 : i32, i32
  }
  func.func @transform_2(%arg0: i32) -> (i32, i32) {
    %c0_i32 = arith.constant 0 : i32
    %c0_i32_0 = arith.constant 0 : i32
    return %arg0, %c0_i32 : i32, i32
  }
  func.func @transform_3(%arg0: i32) -> (i32, i32) {
    %c0_i32 = arith.constant 0 : i32
    %c0_i32_0 = arith.constant 0 : i32
    %c0_i32_1 = arith.constant 0 : i32
    return %c0_i32, %c0_i32_0 : i32, i32
  }
  func.func @transform_4(%arg0: i32) -> (i32, i32) {
    %c0_i32 = arith.constant 0 : i32
    %c0_i32_0 = arith.constant 0 : i32
    %c0_i32_1 = arith.constant 0 : i32
    return %c0_i32, %c0_i32_0 : i32, i32
  }
  func.func @transform_5(%arg0: i32) -> (i32, i32) {
    %c0_i32 = arith.constant 0 : i32
    %c0_i32_0 = arith.constant 0 : i32
    return %arg0, %c0_i32 : i32, i32
  }
  func.func @transform_6(%arg0: i32) -> (i32, i32) {
    %c0_i32 = arith.constant 0 : i32
    %c0_i32_0 = arith.constant 0 : i32
    return %c0_i32, %arg0 : i32, i32
  }
  func.func @transform_7(%arg0: i32) -> (i32, i32) {
    %c0_i32 = arith.constant 0 : i32
    %c0_i32_0 = arith.constant 0 : i32
    %c0_i32_1 = arith.constant 0 : i32
    return %c0_i32, %c0_i32_0 : i32, i32
  }
  func.func @transform_8(%arg0: i32) -> (i32, i32) {
    %c0_i32 = arith.constant 0 : i32
    %c0_i32_0 = arith.constant 0 : i32
    %c0_i32_1 = arith.constant 0 : i32
    return %c0_i32, %c0_i32_0 : i32, i32
  }
  func.func @transform_9(%arg0: i32) -> (i32, i32) {
    %c0_i32 = arith.constant 0 : i32
    %c0_i32_0 = arith.constant 0 : i32
    return %arg0, %c0_i32 : i32, i32
  }
  func.func @transform_10(%arg0: i32) -> (i32, i32) {
    %c0_i32 = arith.constant 0 : i32
    %c0_i32_0 = arith.constant 0 : i32
    return %c0_i32, %arg0 : i32, i32
  }
  func.func @transform_11(%arg0: i32) -> (i32, i32) {
    %c0_i32 = arith.constant 0 : i32
    %c0_i32_0 = arith.constant 0 : i32
    return %c0_i32, %arg0 : i32, i32
  }
}

</mosaic_0001>

<llo_original>
// kernel: forward.1
$region0: #{forward.1}
  #allocation0 [shape = 'u32[]', space=smem, size = 0x4, offset = 0x4, fixed_abs, tag = 'smem constant byte address 0x4 - core index']
  #allocation1 [shape = 'u32[144,128]{1,0:T(1,128)}', space=vmem, size = 0x12000, scoped, tag = 'internal scratch']
  %s0 = inlined_call_operand.vmem [shape: f32[16,128], index: 0, kind: input, shape index: {}]
  %s1 = inlined_call_operand.vmem [shape: f32[128,128], index: 1, kind: input, shape index: {}]
  %s2 = inlined_call_operand.vmem [shape: f32[128,128], index: 2, kind: input, shape index: {}]
  %s3 = inlined_call_operand.vmem [shape: f32[512,128], index: 3, kind: input, shape index: {}]
  %s4 = inlined_call_operand.hbm [shape: f32[128,512], index: 4, kind: input, shape index: {}]
  %s5 = inlined_call_operand.vmem [shape: f32[128,128], index: 5, kind: input, shape index: {}]
  %s6 = inlined_call_operand.vmem [shape: f32[128,128], index: 6, kind: input, shape index: {}]
  %s7 = inlined_call_operand.hbm [shape: f32[1664,128], index: 7, kind: input, shape index: {}]
  %s8 = inlined_call_operand.hbm [shape: f32[128,1664], index: 8, kind: input, shape index: {}]
  %s9 = inlined_call_operand.vmem [shape: f32[128,128], index: 9, kind: input, shape index: {}]
  %s10 = inlined_call_operand.vmem [shape: f32[128,128], index: 10, kind: input, shape index: {}]
  %s11 = inlined_call_operand.vmem [shape: f32[8,128], index: 11, kind: output, shape index: {}]
  %s12 = sld [smem:[#allocation0]]
  $region66: #{forward.1} parent=0
    _
  %s14 = ssub.s32 1, %s12
  %s15 = scalar_select 0, %s14, %s12
  $region1: #{forward.1} parent=0
    #allocation2 [shape = 'u8[262144]{0}', space=vmem, size = 0x40000, scoped, tag = 'input window, operand 4, single buffered']
    #allocation3 [shape = 's32[1]{0}', space=sflag, size = 0x4, scoped, tag = 'scoped memory for forward.1']
    #allocation4 [shape = 'u8[851968]{0}', space=vmem, size = 0xd0000, scoped, tag = 'input window, operand 7, single buffered']
    #allocation5 [shape = 's32[1]{0}', space=sflag, size = 0x4, scoped, tag = 'scoped memory for forward.1']
    #allocation6 [shape = 'u8[851968]{0}', space=vmem, size = 0xd0000, scoped, tag = 'input window, operand 8, single buffered']
    %16 = vsyncpa [#allocation3], 0
    %17 = vsyncpa [#allocation5], 0
    // Predicated region
    $region2: #{forward.1} parent=1 // pred_check
      _
    $region3: #{forward.1} parent=1 // pred_check_branch
      %19 = sbr.rel (0) target = $region5
    $region4: #{forward.1} parent=1 // pred_region
      _
    $region5: #{forward.1} parent=1 // pred_fallthru
      _
    // Predicated region
    $region6: #{forward.1} parent=1 // pred_check
      _
    $region7: #{forward.1} parent=1 // pred_check_branch
      %21 = sbr.rel (0) target = $region9
    $region8: #{forward.1} parent=1 // pred_region
      _
    $region9: #{forward.1} parent=1 // pred_fallthru
      _
    // Predicated region
    $region10: #{forward.1} parent=1 // pred_check
      _
    $region11: #{forward.1} parent=1 // pred_check_branch
      %23 = sbr.rel (0) target = $region13
    $region12: #{forward.1} parent=1 // pred_region
      _
    $region13: #{forward.1} parent=1 // pred_fallthru
      _
    // Predicated region
    $region14: #{forward.1} parent=1 // pred_check
      _
    $region15: #{forward.1} parent=1 // pred_check_branch
      %25 = sbr.rel (0) target = $region17
    $region16: #{forward.1} parent=1 // pred_region
      _
    $region17: #{forward.1} parent=1 // pred_fallthru
      _
    // Predicated region
    $region18: #{forward.1} parent=1 // pred_check
      _
    $region19: #{forward.1} parent=1 // pred_check_branch
      %27 = sbr.rel (0) target = $region21
    $region20: #{forward.1} parent=1 // pred_region
      %s29 = ssub.s32 8192, 8192
      %30 = vsyncadd [#allocation3], %s29
      %s31 = sshll.u32 [#allocation2], 4
      %s32 = int_to_ptr.vmem [resolvable:$true] %s31
      %37 = dma.hbm_to_vmem [thread:$0]  %s4, 8192, %s32, [#allocation3], 512, 512, 32
    $region21: #{forward.1} parent=1 // pred_fallthru
      _
    // Predicated region
    $region22: #{forward.1} parent=1 // pred_check
      _
    $region23: #{forward.1} parent=1 // pred_check_branch
      %39 = sbr.rel (0) target = $region25
    $region24: #{forward.1} parent=1 // pred_region
      _
    $region25: #{forward.1} parent=1 // pred_fallthru
      _
    // Predicated region
    $region26: #{forward.1} parent=1 // pred_check
      _
    $region27: #{forward.1} parent=1 // pred_check_branch
      %41 = sbr.rel (0) target = $region29
    $region28: #{forward.1} parent=1 // pred_region
      _
    $region29: #{forward.1} parent=1 // pred_fallthru
      _
    // Predicated region
    $region30: #{forward.1} parent=1 // pred_check
      _
    $region31: #{forward.1} parent=1 // pred_check_branch
      %43 = sbr.rel (0) target = $region33
    $region32: #{forward.1} parent=1 // pred_region
      %s45 = ssub.s32 26624, 26624
      %46 = vsyncadd [#allocation5], %s45
      %s47 = sshll.u32 [#allocation4], 4
      %s48 = int_to_ptr.vmem [resolvable:$true] %s47
      %53 = dma.hbm_to_vmem [thread:$0]  %s7, 26624, %s48, [#allocation5], 128, 128, 8
    $region33: #{forward.1} parent=1 // pred_fallthru
      _
    // Predicated region
    $region34: #{forward.1} parent=1 // pred_check
      _
    $region35: #{forward.1} parent=1 // pred_check_branch
      %55 = sbr.rel (0) target = $region37
    $region36: #{forward.1} parent=1 // pred_region
      %s57 = ssub.s32 26624, 26624
      %58 = vsyncadd [#allocation5], %s57
      %s59 = sshll.u32 [#allocation6], 4
      %s60 = int_to_ptr.vmem [resolvable:$true] %s59
      %65 = dma.hbm_to_vmem [thread:$0]  %s8, 26624, %s60, [#allocation5], 1664, 1664, 104
    $region37: #{forward.1} parent=1 // pred_fallthru
      _
    // Predicated region
    $region38: #{forward.1} parent=1 // pred_check
      _
    $region39: #{forward.1} parent=1 // pred_check_branch
      %67 = sbr.rel (0) target = $region41
    $region40: #{forward.1} parent=1 // pred_region
      _
    $region41: #{forward.1} parent=1 // pred_fallthru
      _
    // Predicated region
    $region42: #{forward.1} parent=1 // pred_check
      _
    $region43: #{forward.1} parent=1 // pred_check_branch
      %69 = sbr.rel (0) target = $region45
    $region44: #{forward.1} parent=1 // pred_region
      _
    $region45: #{forward.1} parent=1 // pred_fallthru
      _
    // Predicated region
    $region46: #{forward.1} parent=1 // pred_check
      _
    $region47: #{forward.1} parent=1 // pred_check_branch
      %71 = sbr.rel (0) target = $region49
    $region48: #{forward.1} parent=1 // pred_region
      %72 = dma.done [#allocation3], 8192
    $region49: #{forward.1} parent=1 // pred_fallthru
      _
    // Predicated region
    $region50: #{forward.1} parent=1 // pred_check
      _
    $region51: #{forward.1} parent=1 // pred_check_branch
      %74 = sbr.rel (0) target = $region53
    $region52: #{forward.1} parent=1 // pred_region
      %75 = dma.done [#allocation5], 26624
    $region53: #{forward.1} parent=1 // pred_fallthru
      _
    // Predicated region
    $region54: #{forward.1} parent=1 // pred_check
      _
    $region55: #{forward.1} parent=1 // pred_check_branch
      %77 = sbr.rel (0) target = $region57
    $region56: #{forward.1} parent=1 // pred_region
      %78 = dma.done [#allocation5], 26624
    $region57: #{forward.1} parent=1 // pred_fallthru
      _
    %v79 = vld [vmem:[%s0] sm:$0xff]
    %v80 = vld [vmem:[%s0 + $0x8] sm:$0xff]
    %v81 = vld [vmem:[%s1] sm:$0xff]
    %v82 = vld [vmem:[%s1 + $0x8] sm:$0xff]
    %v83 = vld [vmem:[%s1 + $0x10] sm:$0xff]
    %v84 = vld [vmem:[%s1 + $0x18] sm:$0xff]
    %v85 = vld [vmem:[%s1 + $0x20] sm:$0xff]
    %v86 = vld [vmem:[%s1 + $0x28] sm:$0xff]
    %v87 = vld [vmem:[%s1 + $0x30] sm:$0xff]
    %v88 = vld [vmem:[%s1 + $0x38] sm:$0xff]
    %v89 = vld [vmem:[%s1 + $0x40] sm:$0xff]
    %v90 = vld [vmem:[%s1 + $0x48] sm:$0xff]
    %v91 = vld [vmem:[%s1 + $0x50] sm:$0xff]
    %v92 = vld [vmem:[%s1 + $0x58] sm:$0xff]
    %v93 = vld [vmem:[%s1 + $0x60] sm:$0xff]
    %v94 = vld [vmem:[%s1 + $0x68] sm:$0xff]
    %v95 = vld [vmem:[%s1 + $0x70] sm:$0xff]
    %v96 = vld [vmem:[%s1 + $0x78] sm:$0xff]
    %97 = vmatprep.subr.mxu0 0.0
    %98 = vmatpush1.xpose.msra.mxu0 %v81
    %99 = vmatprep.subr.mxu0 0.0
    %100 = vmatpush1.xpose.msra.mxu0 %v82
    %101 = vmatprep.subr.mxu0 0.0
    %102 = vmatpush1.xpose.msra.mxu0 %v83
    %103 = vmatprep.subr.mxu0 0.0
    %104 = vmatpush1.xpose.msra.mxu0 %v84
    %105 = vmatprep.subr.mxu0 0.0
    %106 = vmatpush1.xpose.msra.mxu0 %v85
    %107 = vmatprep.subr.mxu0 0.0
    %108 = vmatpush1.xpose.msra.mxu0 %v86
    %109 = vmatprep.subr.mxu0 0.0
    %110 = vmatpush1.xpose.msra.mxu0 %v87
    %111 = vmatprep.subr.mxu0 0.0
    %112 = vmatpush1.xpose.msra.mxu0 %v88
    %113 = vmatprep.subr.mxu0 0.0
    %114 = vmatpush1.xpose.msra.mxu0 %v89
    %115 = vmatprep.subr.mxu0 0.0
    %116 = vmatpush1.xpose.msra.mxu0 %v90
    %117 = vmatprep.subr.mxu0 0.0
    %118 = vmatpush1.xpose.msra.mxu0 %v91
    %119 = vmatprep.subr.mxu0 0.0
    %120 = vmatpush1.xpose.msra.mxu0 %v92
    %121 = vmatprep.subr.mxu0 0.0
    %122 = vmatpush1.xpose.msra.mxu0 %v93
    %123 = vmatprep.subr.mxu0 0.0
    %124 = vmatpush1.xpose.msra.mxu0 %v94
    %125 = vmatprep.subr.mxu0 0.0
    %126 = vmatpush1.xpose.msra.mxu0 %v95
    %127 = vmatprep.subr.mxu0 0.0
    %128 = vmatpush1.xpose.msra.mxu0 %v96
    %129 = vmatprep.subr.mxu0 0.0
    %130 = vmatpush1.xpose.msra.mxu0 0.0
    %131 = vmatprep.subr.mxu0 0.0
    %132 = vmatpush1.xpose.msra.mxu0 0.0
    %133 = vmatprep.subr.mxu0 0.0
    %134 = vmatpush1.xpose.msra.mxu0 0.0
    %135 = vmatprep.subr.mxu0 0.0
    %136 = vmatpush1.xpose.msra.mxu0 0.0
    %137 = vmatprep.subr.mxu0 0.0
    %138 = vmatpush1.xpose.msra.mxu0 0.0
    %139 = vmatprep.subr.mxu0 0.0
    %140 = vmatpush1.xpose.msra.mxu0 0.0
    %141 = vmatprep.subr.mxu0 0.0
    %142 = vmatpush1.xpose.msra.mxu0 0.0
    %143 = vmatprep.subr.mxu0 0.0
    %144 = vmatpush1.xpose.msra.mxu0 0.0
    %145 = vmatprep.subr.mxu0 0.0
    %146 = vmatpush1.xpose.msra.mxu0 0.0
    %147 = vmatprep.subr.mxu0 0.0
    %148 = vmatpush1.xpose.msra.mxu0 0.0
    %149 = vmatprep.subr.mxu0 0.0
    %150 = vmatpush1.xpose.msra.mxu0 0.0
    %151 = vmatprep.subr.mxu0 0.0
    %152 = vmatpush1.xpose.msra.mxu0 0.0
    %153 = vmatprep.subr.mxu0 0.0
    %154 = vmatpush1.xpose.msra.mxu0 0.0
    %155 = vmatprep.subr.mxu0 0.0
    %156 = vmatpush1.xpose.msra.mxu0 0.0
    %157 = vmatprep.subr.mxu0 0.0
    %158 = vmatpush1.xpose.msra.mxu0 0.0
    %159 = vmatprep.subr.mxu0 0.0
    %160 = vmatpush1.xpose.msra.mxu0 0.0
    %161 = vmatprep.mubr.f32.mxu0 0.0
    %162 = vmatmul.mubr.f32.gmra.mrb[0].mxu0 %v79
    %v163 = vpop.f32.mrb[0].mxu0
    %v164 = vadd.f32 0.0, %v163
    %v165 = vpop.f32.mrb[0].mxu0
    %166 = vmatprep.mubr.f32.mxu0 0.0
    %167 = vmatmul.mubr.f32.gmra.mrb[0].mxu0 %v80
    %v168 = vpop.f32.mrb[0].mxu0
    %v169 = vadd.f32 0.0, %v168
    %v170 = vpop.f32.mrb[0].mxu0
    %171 = vdwg.mxu0
    %v172 = vld [vmem:[%s2] sm:$0xff]
    %v173 = vld [vmem:[%s2 + $0x8] sm:$0xff]
    %v174 = vld [vmem:[%s2 + $0x10] sm:$0xff]
    %v175 = vld [vmem:[%s2 + $0x18] sm:$0xff]
    %v176 = vld [vmem:[%s2 + $0x20] sm:$0xff]
    %v177 = vld [vmem:[%s2 + $0x28] sm:$0xff]
    %v178 = vld [vmem:[%s2 + $0x30] sm:$0xff]
    %v179 = vld [vmem:[%s2 + $0x38] sm:$0xff]
    %v180 = vld [vmem:[%s2 + $0x40] sm:$0xff]
    %v181 = vld [vmem:[%s2 + $0x48] sm:$0xff]
    %v182 = vld [vmem:[%s2 + $0x50] sm:$0xff]
    %v183 = vld [vmem:[%s2 + $0x58] sm:$0xff]
    %v184 = vld [vmem:[%s2 + $0x60] sm:$0xff]
    %v185 = vld [vmem:[%s2 + $0x68] sm:$0xff]
    %v186 = vld [vmem:[%s2 + $0x70] sm:$0xff]
    %v187 = vld [vmem:[%s2 + $0x78] sm:$0xff]
    %188 = vmatprep.subr.mxu0 0.0
    %189 = vmatpush1.xpose.msra.mxu0 %v172
    %190 = vmatprep.subr.mxu0 0.0
    %191 = vmatpush1.xpose.msra.mxu0 %v173
    %192 = vmatprep.subr.mxu0 0.0
    %193 = vmatpush1.xpose.msra.mxu0 %v174
    %194 = vmatprep.subr.mxu0 0.0
    %195 = vmatpush1.xpose.msra.mxu0 %v175
    %196 = vmatprep.subr.mxu0 0.0
    %197 = vmatpush1.xpose.msra.mxu0 %v176
    %198 = vmatprep.subr.mxu0 0.0
    %199 = vmatpush1.xpose.msra.mxu0 %v177
    %200 = vmatprep.subr.mxu0 0.0
    %201 = vmatpush1.xpose.msra.mxu0 %v178
    %202 = vmatprep.subr.mxu0 0.0
    %203 = vmatpush1.xpose.msra.mxu0 %v179
    %204 = vmatprep.subr.mxu0 0.0
    %205 = vmatpush1.xpose.msra.mxu0 %v180
    %206 = vmatprep.subr.mxu0 0.0
    %207 = vmatpush1.xpose.msra.mxu0 %v181
    %208 = vmatprep.subr.mxu0 0.0
    %209 = vmatpush1.xpose.msra.mxu0 %v182
    %210 = vmatprep.subr.mxu0 0.0
    %211 = vmatpush1.xpose.msra.mxu0 %v183
    %212 = vmatprep.subr.mxu0 0.0
    %213 = vmatpush1.xpose.msra.mxu0 %v184
    %214 = vmatprep.subr.mxu0 0.0
    %215 = vmatpush1.xpose.msra.mxu0 %v185
    %216 = vmatprep.subr.mxu0 0.0
    %217 = vmatpush1.xpose.msra.mxu0 %v186
    %218 = vmatprep.subr.mxu0 0.0
    %219 = vmatpush1.xpose.msra.mxu0 %v187
    %220 = vmatprep.subr.mxu0 0.0
    %221 = vmatpush1.xpose.msra.mxu0 0.0
    %222 = vmatprep.subr.mxu0 0.0
    %223 = vmatpush1.xpose.msra.mxu0 0.0
    %224 = vmatprep.subr.mxu0 0.0
    %225 = vmatpush1.xpose.msra.mxu0 0.0
    %226 = vmatprep.subr.mxu0 0.0
    %227 = vmatpush1.xpose.msra.mxu0 0.0
    %228 = vmatprep.subr.mxu0 0.0
    %229 = vmatpush1.xpose.msra.mxu0 0.0
    %230 = vmatprep.subr.mxu0 0.0
    %231 = vmatpush1.xpose.msra.mxu0 0.0
    %232 = vmatprep.subr.mxu0 0.0
    %233 = vmatpush1.xpose.msra.mxu0 0.0
    %234 = vmatprep.subr.mxu0 0.0
    %235 = vmatpush1.xpose.msra.mxu0 0.0
    %236 = vmatprep.subr.mxu0 0.0
    %237 = vmatpush1.xpose.msra.mxu0 0.0
    %238 = vmatprep.subr.mxu0 0.0
    %239 = vmatpush1.xpose.msra.mxu0 0.0
    %240 = vmatprep.subr.mxu0 0.0
    %241 = vmatpush1.xpose.msra.mxu0 0.0
    %242 = vmatprep.subr.mxu0 0.0
    %243 = vmatpush1.xpose.msra.mxu0 0.0
    %244 = vmatprep.subr.mxu0 0.0
    %245 = vmatpush1.xpose.msra.mxu0 0.0
    %246 = vmatprep.subr.mxu0 0.0
    %247 = vmatpush1.xpose.msra.mxu0 0.0
    %248 = vmatprep.subr.mxu0 0.0
    %249 = vmatpush1.xpose.msra.mxu0 0.0
    %250 = vmatprep.subr.mxu0 0.0
    %251 = vmatpush1.xpose.msra.mxu0 0.0
    %252 = vmatprep.mubr.f32.mxu0 0.0
    %253 = vmatmul.mubr.f32.gmra.mrb[0].mxu0 %v79
    %v254 = vpop.f32.mrb[0].mxu0
    %v255 = vadd.f32 0.0, %v254
    %v256 = vpop.f32.mrb[0].mxu0
    %257 = vmatprep.mubr.f32.mxu0 0.0
    %258 = vmatmul.mubr.f32.gmra.mrb[0].mxu0 %v80
    %v259 = vpop.f32.mrb[0].mxu0
    %v260 = vadd.f32 0.0, %v259
    %v261 = vpop.f32.mrb[0].mxu0
    %262 = vdwg.mxu0
    %v263 = vmax.f32 %v164, %v169
    %v264 = vrot.slane %v263, 4
    %v265 = vmax.f32 %v263, %v264
    %v266 = vrot.slane %v265, 2
    %v267 = vmax.f32 %v265, %v266
    %v268 = vrot.slane %v267, 1
    %v269 = vmax.f32 %v267, %v268
    %v270 = vsub.f32 %v164, %v269
    %v271 = vsub.f32 %v169, %v269
    %v272 = vmul.f32 %v270, 1.442695
    %v273 = vpow.pop %v272
    %v274 = vmul.f32 %v271, 1.442695
    %v275 = vpow.pop %v274
    %v276 = vadd.f32 %v273, %v275
    %v277 = vrot.slane %v276, 4
    %v278 = vadd.f32 %v276, %v277
    %v279 = vrot.slane %v278, 2
    %v280 = vadd.f32 %v278, %v279
    %v281 = vrot.slane %v280, 1
    %v282 = vadd.f32 %v280, %v281
    %v283 = vmul.f32 %v255, %v273
    %v284 = vmul.f32 %v260, %v275
    %v285 = vadd.f32 %v283, %v284
    %v286 = vrot.slane %v285, 4
    %v287 = vadd.f32 %v285, %v286
    %v288 = vrot.slane %v287, 2
    %v289 = vadd.f32 %v287, %v288
    %v290 = vrot.slane %v289, 1
    %v291 = vadd.f32 %v289, %v290
    %v292 = vrcp.pop %v282
    %v293 = vmul.f32 %v291, %v292
    %v294 = vld [vmem:[%s3] sm:$0xff]
    %v295 = vld [vmem:[%s3 + $0x8] sm:$0xff]
    %v296 = vld [vmem:[%s3 + $0x10] sm:$0xff]
    %v297 = vld [vmem:[%s3 + $0x18] sm:$0xff]
    %v298 = vld [vmem:[%s3 + $0x20] sm:$0xff]
    %v299 = vld [vmem:[%s3 + $0x28] sm:$0xff]
    %v300 = vld [vmem:[%s3 + $0x30] sm:$0xff]
    %v301 = vld [vmem:[%s3 + $0x38] sm:$0xff]
    %v302 = vld [vmem:[%s3 + $0x40] sm:$0xff]
    %v303 = vld [vmem:[%s3 + $0x48] sm:$0xff]
    %v304 = vld [vmem:[%s3 + $0x50] sm:$0xff]
    %v305 = vld [vmem:[%s3 + $0x58] sm:$0xff]
    %v306 = vld [vmem:[%s3 + $0x60] sm:$0xff]
    %v307 = vld [vmem:[%s3 + $0x68] sm:$0xff]
    %v308 = vld [vmem:[%s3 + $0x70] sm:$0xff]
    %v309 = vld [vmem:[%s3 + $0x78] sm:$0xff]
    %v310 = vld [vmem:[%s3 + $0x80] sm:$0xff]
    %v311 = vld [vmem:[%s3 + $0x88] sm:$0xff]
    %v312 = vld [vmem:[%s3 + $0x90] sm:$0xff]
    %v313 = vld [vmem:[%s3 + $0x98] sm:$0xff]
    %v314 = vld [vmem:[%s3 + $0xa0] sm:$0xff]
    %v315 = vld [vmem:[%s3 + $0xa8] sm:$0xff]
    %v316 = vld [vmem:[%s3 + $0xb0] sm:$0xff]
    %v317 = vld [vmem:[%s3 + $0xb8] sm:$0xff]
    %v318 = vld [vmem:[%s3 + $0xc0] sm:$0xff]
    %v319 = vld [vmem:[%s3 + $0xc8] sm:$0xff]
    %v320 = vld [vmem:[%s3 + $0xd0] sm:$0xff]
    %v321 = vld [vmem:[%s3 + $0xd8] sm:$0xff]
    %v322 = vld [vmem:[%s3 + $0xe0] sm:$0xff]
    %v323 = vld [vmem:[%s3 + $0xe8] sm:$0xff]
    %v324 = vld [vmem:[%s3 + $0xf0] sm:$0xff]
    %v325 = vld [vmem:[%s3 + $0xf8] sm:$0xff]
    %v326 = vld [vmem:[%s3 + $0x100] sm:$0xff]
    %v327 = vld [vmem:[%s3 + $0x108] sm:$0xff]
    %v328 = vld [vmem:[%s3 + $0x110] sm:$0xff]
    %v329 = vld [vmem:[%s3 + $0x118] sm:$0xff]
    %v330 = vld [vmem:[%s3 + $0x120] sm:$0xff]
    %v331 = vld [vmem:[%s3 + $0x128] sm:$0xff]
    %v332 = vld [vmem:[%s3 + $0x130] sm:$0xff]
    %v333 = vld [vmem:[%s3 + $0x138] sm:$0xff]
    %v334 = vld [vmem:[%s3 + $0x140] sm:$0xff]
    %v335 = vld [vmem:[%s3 + $0x148] sm:$0xff]
    %v336 = vld [vmem:[%s3 + $0x150] sm:$0xff]
    %v337 = vld [vmem:[%s3 + $0x158] sm:$0xff]
    %v338 = vld [vmem:[%s3 + $0x160] sm:$0xff]
    %v339 = vld [vmem:[%s3 + $0x168] sm:$0xff]
    %v340 = vld [vmem:[%s3 + $0x170] sm:$0xff]
    %v341 = vld [vmem:[%s3 + $0x178] sm:$0xff]
    %v342 = vld [vmem:[%s3 + $0x180] sm:$0xff]
    %v343 = vld [vmem:[%s3 + $0x188] sm:$0xff]
    %v344 = vld [vmem:[%s3 + $0x190] sm:$0xff]
    %v345 = vld [vmem:[%s3 + $0x198] sm:$0xff]
    %v346 = vld [vmem:[%s3 + $0x1a0] sm:$0xff]
    %v347 = vld [vmem:[%s3 + $0x1a8] sm:$0xff]
    %v348 = vld [vmem:[%s3 + $0x1b0] sm:$0xff]
    %v349 = vld [vmem:[%s3 + $0x1b8] sm:$0xff]
    %v350 = vld [vmem:[%s3 + $0x1c0] sm:$0xff]
    %v351 = vld [vmem:[%s3 + $0x1c8] sm:$0xff]
    %v352 = vld [vmem:[%s3 + $0x1d0] sm:$0xff]
    %v353 = vld [vmem:[%s3 + $0x1d8] sm:$0xff]
    %v354 = vld [vmem:[%s3 + $0x1e0] sm:$0xff]
    %v355 = vld [vmem:[%s3 + $0x1e8] sm:$0xff]
    %v356 = vld [vmem:[%s3 + $0x1f0] sm:$0xff]
    %v357 = vld [vmem:[%s3 + $0x1f8] sm:$0xff]
    %v358 = vld [vmem:[%s5] sm:$0xff]
    %v359 = vld [vmem:[%s5 + $0x8] sm:$0xff]
    %v360 = vld [vmem:[%s5 + $0x10] sm:$0xff]
    %v361 = vld [vmem:[%s5 + $0x18] sm:$0xff]
    %v362 = vld [vmem:[%s5 + $0x20] sm:$0xff]
    %v363 = vld [vmem:[%s5 + $0x28] sm:$0xff]
    %v364 = vld [vmem:[%s5 + $0x30] sm:$0xff]
    %v365 = vld [vmem:[%s5 + $0x38] sm:$0xff]
    %v366 = vld [vmem:[%s5 + $0x40] sm:$0xff]
    %v367 = vld [vmem:[%s5 + $0x48] sm:$0xff]
    %v368 = vld [vmem:[%s5 + $0x50] sm:$0xff]
    %v369 = vld [vmem:[%s5 + $0x58] sm:$0xff]
    %v370 = vld [vmem:[%s5 + $0x60] sm:$0xff]
    %v371 = vld [vmem:[%s5 + $0x68] sm:$0xff]
    %v372 = vld [vmem:[%s5 + $0x70] sm:$0xff]
    %v373 = vld [vmem:[%s5 + $0x78] sm:$0xff]
    %374 = vmatprep.subr.mxu0 0.0
    %375 = vmatpush1.xpose.msra.mxu0 %v358
    %376 = vmatprep.subr.mxu0 0.0
    %377 = vmatpush1.xpose.msra.mxu0 %v359
    %378 = vmatprep.subr.mxu0 0.0
    %379 = vmatpush1.xpose.msra.mxu0 %v360
    %380 = vmatprep.subr.mxu0 0.0
    %381 = vmatpush1.xpose.msra.mxu0 %v361
    %382 = vmatprep.subr.mxu0 0.0
    %383 = vmatpush1.xpose.msra.mxu0 %v362
    %384 = vmatprep.subr.mxu0 0.0
    %385 = vmatpush1.xpose.msra.mxu0 %v363
    %386 = vmatprep.subr.mxu0 0.0
    %387 = vmatpush1.xpose.msra.mxu0 %v364
    %388 = vmatprep.subr.mxu0 0.0
    %389 = vmatpush1.xpose.msra.mxu0 %v365
    %390 = vmatprep.subr.mxu0 0.0
    %391 = vmatpush1.xpose.msra.mxu0 %v366
    %392 = vmatprep.subr.mxu0 0.0
    %393 = vmatpush1.xpose.msra.mxu0 %v367
    %394 = vmatprep.subr.mxu0 0.0
    %395 = vmatpush1.xpose.msra.mxu0 %v368
    %396 = vmatprep.subr.mxu0 0.0
    %397 = vmatpush1.xpose.msra.mxu0 %v369
    %398 = vmatprep.subr.mxu0 0.0
    %399 = vmatpush1.xpose.msra.mxu0 %v370
    %400 = vmatprep.subr.mxu0 0.0
    %401 = vmatpush1.xpose.msra.mxu0 %v371
    %402 = vmatprep.subr.mxu0 0.0
    %403 = vmatpush1.xpose.msra.mxu0 %v372
    %404 = vmatprep.subr.mxu0 0.0
    %405 = vmatpush1.xpose.msra.mxu0 %v373
    %406 = vmatprep.subr.mxu0 0.0
    %407 = vmatpush1.xpose.msra.mxu0 0.0
    %408 = vmatprep.subr.mxu0 0.0
    %409 = vmatpush1.xpose.msra.mxu0 0.0
    %410 = vmatprep.subr.mxu0 0.0
    %411 = vmatpush1.xpose.msra.mxu0 0.0
    %412 = vmatprep.subr.mxu0 0.0
    %413 = vmatpush1.xpose.msra.mxu0 0.0
    %414 = vmatprep.subr.mxu0 0.0
    %415 = vmatpush1.xpose.msra.mxu0 0.0
    %416 = vmatprep.subr.mxu0 0.0
    %417 = vmatpush1.xpose.msra.mxu0 0.0
    %418 = vmatprep.subr.mxu0 0.0
    %419 = vmatpush1.xpose.msra.mxu0 0.0
    %420 = vmatprep.subr.mxu0 0.0
    %421 = vmatpush1.xpose.msra.mxu0 0.0
    %422 = vmatprep.subr.mxu0 0.0
    %423 = vmatpush1.xpose.msra.mxu0 0.0
    %424 = vmatprep.subr.mxu0 0.0
    %425 = vmatpush1.xpose.msra.mxu0 0.0
    %426 = vmatprep.subr.mxu0 0.0
    %427 = vmatpush1.xpose.msra.mxu0 0.0
    %428 = vmatprep.subr.mxu0 0.0
    %429 = vmatpush1.xpose.msra.mxu0 0.0
    %430 = vmatprep.subr.mxu0 0.0
    %431 = vmatpush1.xpose.msra.mxu0 0.0
    %432 = vmatprep.subr.mxu0 0.0
    %433 = vmatpush1.xpose.msra.mxu0 0.0
    %434 = vmatprep.subr.mxu0 0.0
    %435 = vmatpush1.xpose.msra.mxu0 0.0
    %436 = vmatprep.subr.mxu0 0.0
    %437 = vmatpush1.xpose.msra.mxu0 0.0
    %438 = vmatprep.mubr.f32.mxu0 0.0
    %439 = vmatmul.mubr.f32.gmra.mrb[0].mxu0 %v294
    %v440 = vpop.f32.mrb[0].mxu0
    %v441 = vadd.f32 0.0, %v440
    %v442 = vpop.f32.mrb[0].mxu0
    %443 = vmatprep.mubr.f32.mxu0 0.0
    %444 = vmatmul.mubr.f32.gmra.mrb[0].mxu0 %v295
    %v445 = vpop.f32.mrb[0].mxu0
    %v446 = vadd.f32 0.0, %v445
    %v447 = vpop.f32.mrb[0].mxu0
    %448 = vmatprep.mubr.f32.mxu0 0.0
    %449 = vmatmul.mubr.f32.gmra.mrb[0].mxu0 %v296
    %v450 = vpop.f32.mrb[0].mxu0
    %v451 = vadd.f32 0.0, %v450
    %v452 = vpop.f32.mrb[0].mxu0
    %453 = vmatprep.mubr.f32.mxu0 0.0
    %454 = vmatmul.mubr.f32.gmra.mrb[0].mxu0 %v297
    %v455 = vpop.f32.mrb[0].mxu0
    %v456 = vadd.f32 0.0, %v455
    %v457 = vpop.f32.mrb[0].mxu0
    %458 = vmatprep.mubr.f32.mxu0 0.0
    %459 = vmatmul.mubr.f32.gmra.mrb[0].mxu0 %v298
    %v460 = vpop.f32.mrb[0].mxu0
    %v461 = vadd.f32 0.0, %v460
    %v462 = vpop.f32.mrb[0].mxu0
    %463 = vmatprep.mubr.f32.mxu0 0.0
    %464 = vmatmul.mubr.f32.gmra.mrb[0].mxu0 %v299
    %v465 = vpop.f32.mrb[0].mxu0
    %v466 = vadd.f32 0.0, %v465
    %v467 = vpop.f32.mrb[0].mxu0
    %468 = vmatprep.mubr.f32.mxu0 0.0
    %469 = vmatmul.mubr.f32.gmra.mrb[0].mxu0 %v300
    %v470 = vpop.f32.mrb[0].mxu0
    %v471 = vadd.f32 0.0, %v470
    %v472 = vpop.f32.mrb[0].mxu0
    %473 = vmatprep.mubr.f32.mxu0 0.0
    %474 = vmatmul.mubr.f32.gmra.mrb[0].mxu0 %v301
    %v475 = vpop.f32.mrb[0].mxu0
    %v476 = vadd.f32 0.0, %v475
    %v477 = vpop.f32.mrb[0].mxu0
    %478 = vmatprep.mubr.f32.mxu0 0.0
    %479 = vmatmul.mubr.f32.gmra.mrb[0].mxu0 %v302
    %v480 = vpop.f32.mrb[0].mxu0
    %v481 = vadd.f32 0.0, %v480
    %v482 = vpop.f32.mrb[0].mxu0
    %483 = vmatprep.mubr.f32.mxu0 0.0
    %484 = vmatmul.mubr.f32.gmra.mrb[0].mxu0 %v303
    %v485 = vpop.f32.mrb[0].mxu0
    %v486 = vadd.f32 0.0, %v485
    %v487 = vpop.f32.mrb[0].mxu0
    %488 = vmatprep.mubr.f32.mxu0 0.0
    %489 = vmatmul.mubr.f32.gmra.mrb[0].mxu0 %v304
    %v490 = vpop.f32.mrb[0].mxu0
    %v491 = vadd.f32 0.0, %v490
    %v492 = vpop.f32.mrb[0].mxu0
    %493 = vmatprep.mubr.f32.mxu0 0.0
    %494 = vmatmul.mubr.f32.gmra.mrb[0].mxu0 %v305
    %v495 = vpop.f32.mrb[0].mxu0
    %v496 = vadd.f32 0.0, %v495
    %v497 = vpop.f32.mrb[0].mxu0
    %498 = vmatprep.mubr.f32.mxu0 0.0
    %499 = vmatmul.mubr.f32.gmra.mrb[0].mxu0 %v306
    %v500 = vpop.f32.mrb[0].mxu0
    %v501 = vadd.f32 0.0, %v500
    %v502 = vpop.f32.mrb[0].mxu0
    %503 = vmatprep.mubr.f32.mxu0 0.0
    %504 = vmatmul.mubr.f32.gmra.mrb[0].mxu0 %v307
    %v505 = vpop.f32.mrb[0].mxu0
    %v506 = vadd.f32 0.0, %v505
    %v507 = vpop.f32.mrb[0].mxu0
    %508 = vmatprep.mubr.f32.mxu0 0.0
    %509 = vmatmul.mubr.f32.gmra.mrb[0].mxu0 %v308
    %v510 = vpop.f32.mrb[0].mxu0
    %v511 = vadd.f32 0.0, %v510
    %v512 = vpop.f32.mrb[0].mxu0
    %513 = vmatprep.mubr.f32.mxu0 0.0
    %514 = vmatmul.mubr.f32.gmra.mrb[0].mxu0 %v309
    %v515 = vpop.f32.mrb[0].mxu0
    %v516 = vadd.f32 0.0, %v515
    %v517 = vpop.f32.mrb[0].mxu0
    %518 = vmatprep.mubr.f32.mxu0 0.0
    %519 = vmatmul.mubr.f32.gmra.mrb[0].mxu0 %v310
    %v520 = vpop.f32.mrb[0].mxu0
    %v521 = vadd.f32 0.0, %v520
    %v522 = vpop.f32.mrb[0].mxu0
    %523 = vmatprep.mubr.f32.mxu0 0.0
    %524 = vmatmul.mubr.f32.gmra.mrb[0].mxu0 %v311
    %v525 = vpop.f32.mrb[0].mxu0
    %v526 = vadd.f32 0.0, %v525
    %v527 = vpop.f32.mrb[0].mxu0
    %528 = vmatprep.mubr.f32.mxu0 0.0
    %529 = vmatmul.mubr.f32.gmra.mrb[0].mxu0 %v312
    %v530 = vpop.f32.mrb[0].mxu0
    %v531 = vadd.f32 0.0, %v530
    %v532 = vpop.f32.mrb[0].mxu0
    %533 = vmatprep.mubr.f32.mxu0 0.0
    %534 = vmatmul.mubr.f32.gmra.mrb[0].mxu0 %v313
    %v535 = vpop.f32.mrb[0].mxu0
    %v536 = vadd.f32 0.0, %v535
    %v537 = vpop.f32.mrb[0].mxu0
    %538 = vmatprep.mubr.f32.mxu0 0.0
    %539 = vmatmul.mubr.f32.gmra.mrb[0].mxu0 %v314
    %v540 = vpop.f32.mrb[0].mxu0
    %v541 = vadd.f32 0.0, %v540
    %v542 = vpop.f32.mrb[0].mxu0
    %543 = vmatprep.mubr.f32.mxu0 0.0
    %544 = vmatmul.mubr.f32.gmra.mrb[0].mxu0 %v315
    %v545 = vpop.f32.mrb[0].mxu0
    %v546 = vadd.f32 0.0, %v545
    %v547 = vpop.f32.mrb[0].mxu0
    %548 = vmatprep.mubr.f32.mxu0 0.0
    %549 = vmatmul.mubr.f32.gmra.mrb[0].mxu0 %v316
    %v550 = vpop.f32.mrb[0].mxu0
    %v551 = vadd.f32 0.0, %v550
    %v552 = vpop.f32.mrb[0].mxu0
    %553 = vmatprep.mubr.f32.mxu0 0.0
    %554 = vmatmul.mubr.f32.gmra.mrb[0].mxu0 %v317
    %v555 = vpop.f32.mrb[0].mxu0
    %v556 = vadd.f32 0.0, %v555
    %v557 = vpop.f32.mrb[0].mxu0
    %558 = vmatprep.mubr.f32.mxu0 0.0
    %559 = vmatmul.mubr.f32.gmra.mrb[0].mxu0 %v318
    %v560 = vpop.f32.mrb[0].mxu0
    %v561 = vadd.f32 0.0, %v560
    %v562 = vpop.f32.mrb[0].mxu0
    %563 = vmatprep.mubr.f32.mxu0 0.0
    %564 = vmatmul.mubr.f32.gmra.mrb[0].mxu0 %v319
    %v565 = vpop.f32.mrb[0].mxu0
    %v566 = vadd.f32 0.0, %v565
    %v567 = vpop.f32.mrb[0].mxu0
    %568 = vmatprep.mubr.f32.mxu0 0.0
    %569 = vmatmul.mubr.f32.gmra.mrb[0].mxu0 %v320
    %v570 = vpop.f32.mrb[0].mxu0
    %v571 = vadd.f32 0.0, %v570
    %v572 = vpop.f32.mrb[0].mxu0
    %573 = vmatprep.mubr.f32.mxu0 0.0
    %574 = vmatmul.mubr.f32.gmra.mrb[0].mxu0 %v321
    %v575 = vpop.f32.mrb[0].mxu0
    %v576 = vadd.f32 0.0, %v575
    %v577 = vpop.f32.mrb[0].mxu0
    %578 = vmatprep.mubr.f32.mxu0 0.0
    %579 = vmatmul.mubr.f32.gmra.mrb[0].mxu0 %v322
    %v580 = vpop.f32.mrb[0].mxu0
    %v581 = vadd.f32 0.0, %v580
    %v582 = vpop.f32.mrb[0].mxu0
    %583 = vmatprep.mubr.f32.mxu0 0.0
    %584 = vmatmul.mubr.f32.gmra.mrb[0].mxu0 %v323
    %v585 = vpop.f32.mrb[0].mxu0
    %v586 = vadd.f32 0.0, %v585
    %v587 = vpop.f32.mrb[0].mxu0
    %588 = vmatprep.mubr.f32.mxu0 0.0
    %589 = vmatmul.mubr.f32.gmra.mrb[0].mxu0 %v324
    %v590 = vpop.f32.mrb[0].mxu0
    %v591 = vadd.f32 0.0, %v590
    %v592 = vpop.f32.mrb[0].mxu0
    %593 = vmatprep.mubr.f32.mxu0 0.0
    %594 = vmatmul.mubr.f32.gmra.mrb[0].mxu0 %v325
    %v595 = vpop.f32.mrb[0].mxu0
    %v596 = vadd.f32 0.0, %v595
    %v597 = vpop.f32.mrb[0].mxu0
    %598 = vmatprep.mubr.f32.mxu0 0.0
    %599 = vmatmul.mubr.f32.gmra.mrb[0].mxu0 %v326
    %v600 = vpop.f32.mrb[0].mxu0
    %v601 = vadd.f32 0.0, %v600
    %v602 = vpop.f32.mrb[0].mxu0
    %603 = vmatprep.mubr.f32.mxu0 0.0
    %604 = vmatmul.mubr.f32.gmra.mrb[0].mxu0 %v327
    %v605 = vpop.f32.mrb[0].mxu0
    %v606 = vadd.f32 0.0, %v605
    %v607 = vpop.f32.mrb[0].mxu0
    %608 = vmatprep.mubr.f32.mxu0 0.0
    %609 = vmatmul.mubr.f32.gmra.mrb[0].mxu0 %v328
    %v610 = vpop.f32.mrb[0].mxu0
    %v611 = vadd.f32 0.0, %v610
    %v612 = vpop.f32.mrb[0].mxu0
    %613 = vmatprep.mubr.f32.mxu0 0.0
    %614 = vmatmul.mubr.f32.gmra.mrb[0].mxu0 %v329
    %v615 = vpop.f32.mrb[0].mxu0
    %v616 = vadd.f32 0.0, %v615
    %v617 = vpop.f32.mrb[0].mxu0
    %618 = vmatprep.mubr.f32.mxu0 0.0
    %619 = vmatmul.mubr.f32.gmra.mrb[0].mxu0 %v330
    %v620 = vpop.f32.mrb[0].mxu0
    %v621 = vadd.f32 0.0, %v620
    %v622 = vpop.f32.mrb[0].mxu0
    %623 = vmatprep.mubr.f32.mxu0 0.0
    %624 = vmatmul.mubr.f32.gmra.mrb[0].mxu0 %v331
    %v625 = vpop.f32.mrb[0].mxu0
    %v626 = vadd.f32 0.0, %v625
    %v627 = vpop.f32.mrb[0].mxu0
    %628 = vmatprep.mubr.f32.mxu0 0.0
    %629 = vmatmul.mubr.f32.gmra.mrb[0].mxu0 %v332
    %v630 = vpop.f32.mrb[0].mxu0
    %v631 = vadd.f32 0.0, %v630
    %v632 = vpop.f32.mrb[0].mxu0
    %633 = vmatprep.mubr.f32.mxu0 0.0
    %634 = vmatmul.mubr.f32.gmra.mrb[0].mxu0 %v333
    %v635 = vpop.f32.mrb[0].mxu0
    %v636 = vadd.f32 0.0, %v635
    %v637 = vpop.f32.mrb[0].mxu0
    %638 = vmatprep.mubr.f32.mxu0 0.0
    %639 = vmatmul.mubr.f32.gmra.mrb[0].mxu0 %v334
    %v640 = vpop.f32.mrb[0].mxu0
    %v641 = vadd.f32 0.0, %v640
    %v642 = vpop.f32.mrb[0].mxu0
    %643 = vmatprep.mubr.f32.mxu0 0.0
    %644 = vmatmul.mubr.f32.gmra.mrb[0].mxu0 %v335
    %v645 = vpop.f32.mrb[0].mxu0
    %v646 = vadd.f32 0.0, %v645
    %v647 = vpop.f32.mrb[0].mxu0
    %648 = vmatprep.mubr.f32.mxu0 0.0
    %649 = vmatmul.mubr.f32.gmra.mrb[0].mxu0 %v336
    %v650 = vpop.f32.mrb[0].mxu0
    %v651 = vadd.f32 0.0, %v650
    %v652 = vpop.f32.mrb[0].mxu0
    %653 = vmatprep.mubr.f32.mxu0 0.0
    %654 = vmatmul.mubr.f32.gmra.mrb[0].mxu0 %v337
    %v655 = vpop.f32.mrb[0].mxu0
    %v656 = vadd.f32 0.0, %v655
    %v657 = vpop.f32.mrb[0].mxu0
    %658 = vmatprep.mubr.f32.mxu0 0.0
    %659 = vmatmul.mubr.f32.gmra.mrb[0].mxu0 %v338
    %v660 = vpop.f32.mrb[0].mxu0
    %v661 = vadd.f32 0.0, %v660
    %v662 = vpop.f32.mrb[0].mxu0
    %663 = vmatprep.mubr.f32.mxu0 0.0
    %664 = vmatmul.mubr.f32.gmra.mrb[0].mxu0 %v339
    %v665 = vpop.f32.mrb[0].mxu0
    %v666 = vadd.f32 0.0, %v665
    %v667 = vpop.f32.mrb[0].mxu0
    %668 = vmatprep.mubr.f32.mxu0 0.0
    %669 = vmatmul.mubr.f32.gmra.mrb[0].mxu0 %v340
    %v670 = vpop.f32.mrb[0].mxu0
    %v671 = vadd.f32 0.0, %v670
    %v672 = vpop.f32.mrb[0].mxu0
    %673 = vmatprep.mubr.f32.mxu0 0.0
    %674 = vmatmul.mubr.f32.gmra.mrb[0].mxu0 %v341
    %v675 = vpop.f32.mrb[0].mxu0
    %v676 = vadd.f32 0.0, %v675
    %v677 = vpop.f32.mrb[0].mxu0
    %678 = vmatprep.mubr.f32.mxu0 0.0
    %679 = vmatmul.mubr.f32.gmra.mrb[0].mxu0 %v342
    %v680 = vpop.f32.mrb[0].mxu0
    %v681 = vadd.f32 0.0, %v680
    %v682 = vpop.f32.mrb[0].mxu0
    %683 = vmatprep.mubr.f32.mxu0 0.0
    %684 = vmatmul.mubr.f32.gmra.mrb[0].mxu0 %v343
    %v685 = vpop.f32.mrb[0].mxu0
    %v686 = vadd.f32 0.0, %v685
    %v687 = vpop.f32.mrb[0].mxu0
    %688 = vmatprep.mubr.f32.mxu0 0.0
    %689 = vmatmul.mubr.f32.gmra.mrb[0].mxu0 %v344
    %v690 = vpop.f32.mrb[0].mxu0
    %v691 = vadd.f32 0.0, %v690
    %v692 = vpop.f32.mrb[0].mxu0
    %693 = vmatprep.mubr.f32.mxu0 0.0
    %694 = vmatmul.mubr.f32.gmra.mrb[0].mxu0 %v345
    %v695 = vpop.f32.mrb[0].mxu0
    %v696 = vadd.f32 0.0, %v695
    %v697 = vpop.f32.mrb[0].mxu0
    %698 = vmatprep.mubr.f32.mxu0 0.0
    %699 = vmatmul.mubr.f32.gmra.mrb[0].mxu0 %v346
    %v700 = vpop.f32.mrb[0].mxu0
    %v701 = vadd.f32 0.0, %v700
    %v702 = vpop.f32.mrb[0].mxu0
    %703 = vmatprep.mubr.f32.mxu0 0.0
    %704 = vmatmul.mubr.f32.gmra.mrb[0].mxu0 %v347
    %v705 = vpop.f32.mrb[0].mxu0
    %v706 = vadd.f32 0.0, %v705
    %v707 = vpop.f32.mrb[0].mxu0
    %708 = vmatprep.mubr.f32.mxu0 0.0
    %709 = vmatmul.mubr.f32.gmra.mrb[0].mxu0 %v348
    %v710 = vpop.f32.mrb[0].mxu0
    %v711 = vadd.f32 0.0, %v710
    %v712 = vpop.f32.mrb[0].mxu0
    %713 = vmatprep.mubr.f32.mxu0 0.0
    %714 = vmatmul.mubr.f32.gmra.mrb[0].mxu0 %v349
    %v715 = vpop.f32.mrb[0].mxu0
    %v716 = vadd.f32 0.0, %v715
    %v717 = vpop.f32.mrb[0].mxu0
    %718 = vmatprep.mubr.f32.mxu0 0.0
    %719 = vmatmul.mubr.f32.gmra.mrb[0].mxu0 %v350
    %v720 = vpop.f32.mrb[0].mxu0
    %v721 = vadd.f32 0.0, %v720
    %v722 = vpop.f32.mrb[0].mxu0
    %723 = vmatprep.mubr.f32.mxu0 0.0
    %724 = vmatmul.mubr.f32.gmra.mrb[0].mxu0 %v351
    %v725 = vpop.f32.mrb[0].mxu0
    %v726 = vadd.f32 0.0, %v725
    %v727 = vpop.f32.mrb[0].mxu0
    %728 = vmatprep.mubr.f32.mxu0 0.0
    %729 = vmatmul.mubr.f32.gmra.mrb[0].mxu0 %v352
    %v730 = vpop.f32.mrb[0].mxu0
    %v731 = vadd.f32 0.0, %v730
    %v732 = vpop.f32.mrb[0].mxu0
    %733 = vmatprep.mubr.f32.mxu0 0.0
    %734 = vmatmul.mubr.f32.gmra.mrb[0].mxu0 %v353
    %v735 = vpop.f32.mrb[0].mxu0
    %v736 = vadd.f32 0.0, %v735
    %v737 = vpop.f32.mrb[0].mxu0
    %738 = vmatprep.mubr.f32.mxu0 0.0
    %739 = vmatmul.mubr.f32.gmra.mrb[0].mxu0 %v354
    %v740 = vpop.f32.mrb[0].mxu0
    %v741 = vadd.f32 0.0, %v740
    %v742 = vpop.f32.mrb[0].mxu0
    %743 = vmatprep.mubr.f32.mxu0 0.0
    %744 = vmatmul.mubr.f32.gmra.mrb[0].mxu0 %v355
    %v745 = vpop.f32.mrb[0].mxu0
    %v746 = vadd.f32 0.0, %v745
    %v747 = vpop.f32.mrb[0].mxu0
    %748 = vmatprep.mubr.f32.mxu0 0.0
    %749 = vmatmul.mubr.f32.gmra.mrb[0].mxu0 %v356
    %v750 = vpop.f32.mrb[0].mxu0
    %v751 = vadd.f32 0.0, %v750
    %v752 = vpop.f32.mrb[0].mxu0
    %753 = vmatprep.mubr.f32.mxu0 0.0
    %754 = vmatmul.mubr.f32.gmra.mrb[0].mxu0 %v357
    %v755 = vpop.f32.mrb[0].mxu0
    %v756 = vadd.f32 0.0, %v755
    %v757 = vpop.f32.mrb[0].mxu0
    %758 = vdwg.mxu0
    %v759 = vmax.f32 %v441, %v461
    %v760 = vmax.f32 %v446, %v466
    %v761 = vmax.f32 %v451, %v471
    %v762 = vmax.f32 %v456, %v476
    %v763 = vmax.f32 %v759, %v481
    %v764 = vmax.f32 %v760, %v486
    %v765 = vmax.f32 %v761, %v491
    %v766 = vmax.f32 %v762, %v496
    %v767 = vmax.f32 %v763, %v501
    %v768 = vmax.f32 %v764, %v506
    %v769 = vmax.f32 %v765, %v511
    %v770 = vmax.f32 %v766, %v516
    %v771 = vmax.f32 %v767, %v521
    %v772 = vmax.f32 %v768, %v526
    %v773 = vmax.f32 %v769, %v531
    %v774 = vmax.f32 %v770, %v536
    %v775 = vmax.f32 %v771, %v541
    %v776 = vmax.f32 %v772, %v546
    %v777 = vmax.f32 %v773, %v551
    %v778 = vmax.f32 %v774, %v556
    %v779 = vmax.f32 %v775, %v561
    %v780 = vmax.f32 %v776, %v566
    %v781 = vmax.f32 %v777, %v571
    %v782 = vmax.f32 %v778, %v576
    %v783 = vmax.f32 %v779, %v581
    %v784 = vmax.f32 %v780, %v586
    %v785 = vmax.f32 %v781, %v591
    %v786 = vmax.f32 %v782, %v596
    %v787 = vmax.f32 %v783, %v601
    %v788 = vmax.f32 %v784, %v606
    %v789 = vmax.f32 %v785, %v611
    %v790 = vmax.f32 %v786, %v616
    %v791 = vmax.f32 %v787, %v621
    %v792 = vmax.f32 %v788, %v626
    %v793 = vmax.f32 %v789, %v631
    %v794 = vmax.f32 %v790, %v636
    %v795 = vmax.f32 %v791, %v641
    %v796 = vmax.f32 %v792, %v646
    %v797 = vmax.f32 %v793, %v651
    %v798 = vmax.f32 %v794, %v656
    %v799 = vmax.f32 %v795, %v661
    %v800 = vmax.f32 %v796, %v666
    %v801 = vmax.f32 %v797, %v671
    %v802 = vmax.f32 %v798, %v676
    %v803 = vmax.f32 %v799, %v681
    %v804 = vmax.f32 %v800, %v686
    %v805 = vmax.f32 %v801, %v691
    %v806 = vmax.f32 %v802, %v696
    %v807 = vmax.f32 %v803, %v701
    %v808 = vmax.f32 %v804, %v706
    %v809 = vmax.f32 %v805, %v711
    %v810 = vmax.f32 %v806, %v716
    %v811 = vmax.f32 %v807, %v721
    %v812 = vmax.f32 %v808, %v726
    %v813 = vmax.f32 %v809, %v731
    %v814 = vmax.f32 %v810, %v736
    %v815 = vmax.f32 %v811, %v741
    %v816 = vmax.f32 %v812, %v746
    %v817 = vmax.f32 %v813, %v751
    %v818 = vmax.f32 %v814, %v756
    %v819 = vmax.f32 %v815, %v816
    %v820 = vmax.f32 %v817, %v818
    %v821 = vmax.f32 %v819, %v820
    %v822 = vrot.slane %v821, 4
    %v823 = vmax.f32 %v821, %v822
    %v824 = vrot.slane %v823, 2
    %v825 = vmax.f32 %v823, %v824
    %v826 = vrot.slane %v825, 1
    %v827 = vmax.f32 %v825, %v826
    %v828 = vsub.f32 %v441, %v827
    %v829 = vsub.f32 %v446, %v827
    %v830 = vsub.f32 %v451, %v827
    %v831 = vsub.f32 %v456, %v827
    %v832 = vsub.f32 %v461, %v827
    %v833 = vsub.f32 %v466, %v827
    %v834 = vsub.f32 %v471, %v827
    %v835 = vsub.f32 %v476, %v827
    %v836 = vsub.f32 %v481, %v827
    %v837 = vsub.f32 %v486, %v827
    %v838 = vsub.f32 %v491, %v827
    %v839 = vsub.f32 %v496, %v827
    %v840 = vsub.f32 %v501, %v827
    %v841 = vsub.f32 %v506, %v827
    %v842 = vsub.f32 %v511, %v827
    %v843 = vsub.f32 %v516, %v827
    %v844 = vsub.f32 %v521, %v827
    %v845 = vsub.f32 %v526, %v827
    %v846 = vsub.f32 %v531, %v827
    %v847 = vsub.f32 %v536, %v827
    %v848 = vsub.f32 %v541, %v827
    %v849 = vsub.f32 %v546, %v827
    %v850 = vsub.f32 %v551, %v827
    %v851 = vsub.f32 %v556, %v827
    %v852 = vsub.f32 %v561, %v827
    %v853 = vsub.f32 %v566, %v827
    %v854 = vsub.f32 %v571, %v827
    %v855 = vsub.f32 %v576, %v827
    %v856 = vsub.f32 %v581, %v827
    %v857 = vsub.f32 %v586, %v827
    %v858 = vsub.f32 %v591, %v827
    %v859 = vsub.f32 %v596, %v827
    %v860 = vsub.f32 %v601, %v827
    %v861 = vsub.f32 %v606, %v827
    %v862 = vsub.f32 %v611, %v827
    %v863 = vsub.f32 %v616, %v827
    %v864 = vsub.f32 %v621, %v827
    %v865 = vsub.f32 %v626, %v827
    %v866 = vsub.f32 %v631, %v827
    %v867 = vsub.f32 %v636, %v827
    %v868 = vsub.f32 %v641, %v827
    %v869 = vsub.f32 %v646, %v827
    %v870 = vsub.f32 %v651, %v827
    %v871 = vsub.f32 %v656, %v827
    %v872 = vsub.f32 %v661, %v827
    %v873 = vsub.f32 %v666, %v827
    %v874 = vsub.f32 %v671, %v827
    %v875 = vsub.f32 %v676, %v827
    %v876 = vsub.f32 %v681, %v827
    %v877 = vsub.f32 %v686, %v827
    %v878 = vsub.f32 %v691, %v827
    %v879 = vsub.f32 %v696, %v827
    %v880 = vsub.f32 %v701, %v827
    %v881 = vsub.f32 %v706, %v827
    %v882 = vsub.f32 %v711, %v827
    %v883 = vsub.f32 %v716, %v827
    %v884 = vsub.f32 %v721, %v827
    %v885 = vsub.f32 %v726, %v827
    %v886 = vsub.f32 %v731, %v827
    %v887 = vsub.f32 %v736, %v827
    %v888 = vsub.f32 %v741, %v827
    %v889 = vsub.f32 %v746, %v827
    %v890 = vsub.f32 %v751, %v827
    %v891 = vsub.f32 %v756, %v827
    %v892 = vmul.f32 %v828, 1.442695
    %v893 = vpow.pop %v892
    %v894 = vmul.f32 %v829, 1.442695
    %v895 = vpow.pop %v894
    %v896 = vmul.f32 %v830, 1.442695
    %v897 = vpow.pop %v896
    %v898 = vmul.f32 %v831, 1.442695
    %v899 = vpow.pop %v898
    %v900 = vmul.f32 %v832, 1.442695
    %v901 = vpow.pop %v900
    %v902 = vmul.f32 %v833, 1.442695
    %v903 = vpow.pop %v902
    %v904 = vmul.f32 %v834, 1.442695
    %v905 = vpow.pop %v904
    %v906 = vmul.f32 %v835, 1.442695
    %v907 = vpow.pop %v906
    %v908 = vmul.f32 %v836, 1.442695
    %v909 = vpow.pop %v908
    %v910 = vmul.f32 %v837, 1.442695
    %v911 = vpow.pop %v910
    %v912 = vmul.f32 %v838, 1.442695
    %v913 = vpow.pop %v912
    %v914 = vmul.f32 %v839, 1.442695
    %v915 = vpow.pop %v914
    %v916 = vmul.f32 %v840, 1.442695
    %v917 = vpow.pop %v916
    %v918 = vmul.f32 %v841, 1.442695
    %v919 = vpow.pop %v918
    %v920 = vmul.f32 %v842, 1.442695
    %v921 = vpow.pop %v920
    %v922 = vmul.f32 %v843, 1.442695
    %v923 = vpow.pop %v922
    %v924 = vmul.f32 %v844, 1.442695
    %v925 = vpow.pop %v924
    %v926 = vmul.f32 %v845, 1.442695
    %v927 = vpow.pop %v926
    %v928 = vmul.f32 %v846, 1.442695
    %v929 = vpow.pop %v928
    %v930 = vmul.f32 %v847, 1.442695
    %v931 = vpow.pop %v930
    %v932 = vmul.f32 %v848, 1.442695
    %v933 = vpow.pop %v932
    %v934 = vmul.f32 %v849, 1.442695
    %v935 = vpow.pop %v934
    %v936 = vmul.f32 %v850, 1.442695
    %v937 = vpow.pop %v936
    %v938 = vmul.f32 %v851, 1.442695
    %v939 = vpow.pop %v938
    %v940 = vmul.f32 %v852, 1.442695
    %v941 = vpow.pop %v940
    %v942 = vmul.f32 %v853, 1.442695
    %v943 = vpow.pop %v942
    %v944 = vmul.f32 %v854, 1.442695
    %v945 = vpow.pop %v944
    %v946 = vmul.f32 %v855, 1.442695
    %v947 = vpow.pop %v946
    %v948 = vmul.f32 %v856, 1.442695
    %v949 = vpow.pop %v948
    %v950 = vmul.f32 %v857, 1.442695
    %v951 = vpow.pop %v950
    %v952 = vmul.f32 %v858, 1.442695
    %v953 = vpow.pop %v952
    %v954 = vmul.f32 %v859, 1.442695
    %v955 = vpow.pop %v954
    %v956 = vmul.f32 %v860, 1.442695
    %v957 = vpow.pop %v956
    %v958 = vmul.f32 %v861, 1.442695
    %v959 = vpow.pop %v958
    %v960 = vmul.f32 %v862, 1.442695
    %v961 = vpow.pop %v960
    %v962 = vmul.f32 %v863, 1.442695
    %v963 = vpow.pop %v962
    %v964 = vmul.f32 %v864, 1.442695
    %v965 = vpow.pop %v964
    %v966 = vmul.f32 %v865, 1.442695
    %v967 = vpow.pop %v966
    %v968 = vmul.f32 %v866, 1.442695
    %v969 = vpow.pop %v968
    %v970 = vmul.f32 %v867, 1.442695
    %v971 = vpow.pop %v970
    %v972 = vmul.f32 %v868, 1.442695
    %v973 = vpow.pop %v972
    %v974 = vmul.f32 %v869, 1.442695
    %v975 = vpow.pop %v974
    %v976 = vmul.f32 %v870, 1.442695
    %v977 = vpow.pop %v976
    %v978 = vmul.f32 %v871, 1.442695
    %v979 = vpow.pop %v978
    %v980 = vmul.f32 %v872, 1.442695
    %v981 = vpow.pop %v980
    %v982 = vmul.f32 %v873, 1.442695
    %v983 = vpow.pop %v982
    %v984 = vmul.f32 %v874, 1.442695
    %v985 = vpow.pop %v984
    %v986 = vmul.f32 %v875, 1.442695
    %v987 = vpow.pop %v986
    %v988 = vmul.f32 %v876, 1.442695
    %v989 = vpow.pop %v988
    %v990 = vmul.f32 %v877, 1.442695
    %v991 = vpow.pop %v990
    %v992 = vmul.f32 %v878, 1.442695
    %v993 = vpow.pop %v992
    %v994 = vmul.f32 %v879, 1.442695
    %v995 = vpow.pop %v994
    %v996 = vmul.f32 %v880, 1.442695
    %v997 = vpow.pop %v996
    %v998 = vmul.f32 %v881, 1.442695
    %v999 = vpow.pop %v998
    %v1000 = vmul.f32 %v882, 1.442695
    %v1001 = vpow.pop %v1000
    %v1002 = vmul.f32 %v883, 1.442695
    %v1003 = vpow.pop %v1002
    %v1004 = vmul.f32 %v884, 1.442695
    %v1005 = vpow.pop %v1004
    %v1006 = vmul.f32 %v885, 1.442695
    %v1007 = vpow.pop %v1006
    %v1008 = vmul.f32 %v886, 1.442695
    %v1009 = vpow.pop %v1008
    %v1010 = vmul.f32 %v887, 1.442695
    %v1011 = vpow.pop %v1010
    %v1012 = vmul.f32 %v888, 1.442695
    %v1013 = vpow.pop %v1012
    %v1014 = vmul.f32 %v889, 1.442695
    %v1015 = vpow.pop %v1014
    %v1016 = vmul.f32 %v890, 1.442695
    %v1017 = vpow.pop %v1016
    %v1018 = vmul.f32 %v891, 1.442695
    %v1019 = vpow.pop %v1018
    %v1020 = vld [vmem:[#allocation2] sm:$0xff]
    %v1021 = vld [vmem:[#allocation2 + $0x8] sm:$0xff]
    %v1022 = vld [vmem:[#allocation2 + $0x10] sm:$0xff]
    %v1023 = vld [vmem:[#allocation2 + $0x18] sm:$0xff]
    %v1024 = vld [vmem:[#allocation2 + $0x20] sm:$0xff]
    %v1025 = vld [vmem:[#allocation2 + $0x28] sm:$0xff]
    %v1026 = vld [vmem:[#allocation2 + $0x30] sm:$0xff]
    %v1027 = vld [vmem:[#allocation2 + $0x38] sm:$0xff]
    %v1028 = vld [vmem:[#allocation2 + $0x40] sm:$0xff]
    %v1029 = vld [vmem:[#allocation2 + $0x48] sm:$0xff]
    %v1030 = vld [vmem:[#allocation2 + $0x50] sm:$0xff]
    %v1031 = vld [vmem:[#allocation2 + $0x58] sm:$0xff]
    %v1032 = vld [vmem:[#allocation2 + $0x60] sm:$0xff]
    %v1033 = vld [vmem:[#allocation2 + $0x68] sm:$0xff]
    %v1034 = vld [vmem:[#allocation2 + $0x70] sm:$0xff]
    %v1035 = vld [vmem:[#allocation2 + $0x78] sm:$0xff]
    %v1036 = vld [vmem:[#allocation2 + $0x80] sm:$0xff]
    %v1037 = vld [vmem:[#allocation2 + $0x88] sm:$0xff]
    %v1038 = vld [vmem:[#allocation2 + $0x90] sm:$0xff]
    %v1039 = vld [vmem:[#allocation2 + $0x98] sm:$0xff]
    %v1040 = vld [vmem:[#allocation2 + $0xa0] sm:$0xff]
    %v1041 = vld [vmem:[#allocation2 + $0xa8] sm:$0xff]
    %v1042 = vld [vmem:[#allocation2 + $0xb0] sm:$0xff]
    %v1043 = vld [vmem:[#allocation2 + $0xb8] sm:$0xff]
    %v1044 = vld [vmem:[#allocation2 + $0xc0] sm:$0xff]
    %v1045 = vld [vmem:[#allocation2 + $0xc8] sm:$0xff]
    %v1046 = vld [vmem:[#allocation2 + $0xd0] sm:$0xff]
    %v1047 = vld [vmem:[#allocation2 + $0xd8] sm:$0xff]
    %v1048 = vld [vmem:[#allocation2 + $0xe0] sm:$0xff]
    %v1049 = vld [vmem:[#allocation2 + $0xe8] sm:$0xff]
    %v1050 = vld [vmem:[#allocation2 + $0xf0] sm:$0xff]
    %v1051 = vld [vmem:[#allocation2 + $0xf8] sm:$0xff]
    %v1052 = vld [vmem:[#allocation2 + $0x100] sm:$0xff]
    %v1053 = vld [vmem:[#allocation2 + $0x108] sm:$0xff]
    %v1054 = vld [vmem:[#allocation2 + $0x110] sm:$0xff]
    %v1055 = vld [vmem:[#allocation2 + $0x118] sm:$0xff]
    %v1056 = vld [vmem:[#allocation2 + $0x120] sm:$0xff]
    %v1057 = vld [vmem:[#allocation2 + $0x128] sm:$0xff]
    %v1058 = vld [vmem:[#allocation2 + $0x130] sm:$0xff]
    %v1059 = vld [vmem:[#allocation2 + $0x138] sm:$0xff]
    %v1060 = vld [vmem:[#allocation2 + $0x140] sm:$0xff]
    %v1061 = vld [vmem:[#allocation2 + $0x148] sm:$0xff]
    %v1062 = vld [vmem:[#allocation2 + $0x150] sm:$0xff]
    %v1063 = vld [vmem:[#allocation2 + $0x158] sm:$0xff]
    %v1064 = vld [vmem:[#allocation2 + $0x160] sm:$0xff]
    %v1065 = vld [vmem:[#allocation2 + $0x168] sm:$0xff]
    %v1066 = vld [vmem:[#allocation2 + $0x170] sm:$0xff]
    %v1067 = vld [vmem:[#allocation2 + $0x178] sm:$0xff]
    %v1068 = vld [vmem:[#allocation2 + $0x180] sm:$0xff]
    %v1069 = vld [vmem:[#allocation2 + $0x188] sm:$0xff]
    %v1070 = vld [vmem:[#allocation2 + $0x190] sm:$0xff]
    %v1071 = vld [vmem:[#allocation2 + $0x198] sm:$0xff]
    %v1072 = vld [vmem:[#allocation2 + $0x1a0] sm:$0xff]
    %v1073 = vld [vmem:[#allocation2 + $0x1a8] sm:$0xff]
    %v1074 = vld [vmem:[#allocation2 + $0x1b0] sm:$0xff]
    %v1075 = vld [vmem:[#allocation2 + $0x1b8] sm:$0xff]
    %v1076 = vld [vmem:[#allocation2 + $0x1c0] sm:$0xff]
    %v1077 = vld [vmem:[#allocation2 + $0x1c8] sm:$0xff]
    %v1078 = vld [vmem:[#allocation2 + $0x1d0] sm:$0xff]
    %v1079 = vld [vmem:[#allocation2 + $0x1d8] sm:$0xff]
    %v1080 = vld [vmem:[#allocation2 + $0x1e0] sm:$0xff]
    %v1081 = vld [vmem:[#allocation2 + $0x1e8] sm:$0xff]
    %v1082 = vld [vmem:[#allocation2 + $0x1f0] sm:$0xff]
    %v1083 = vld [vmem:[#allocation2 + $0x1f8] sm:$0xff]
    %1084 = vmatprep.subr.mxu0 0.0
    %1085 = vmatpush1.msra.mxu0 %v893
    %1086 = vmatprep.subr.mxu0 0.0
    %1087 = vmatpush1.msra.mxu0 %v895
    %1088 = vmatprep.subr.mxu0 0.0
    %1089 = vmatpush1.msra.mxu0 %v897
    %1090 = vmatprep.subr.mxu0 0.0
    %1091 = vmatpush1.msra.mxu0 %v899
    %1092 = vmatprep.subr.mxu0 0.0
    %1093 = vmatpush1.msra.mxu0 %v901
    %1094 = vmatprep.subr.mxu0 0.0
    %1095 = vmatpush1.msra.mxu0 %v903
    %1096 = vmatprep.subr.mxu0 0.0
    %1097 = vmatpush1.msra.mxu0 %v905
    %1098 = vmatprep.subr.mxu0 0.0
    %1099 = vmatpush1.msra.mxu0 %v907
    %1100 = vmatprep.subr.mxu0 0.0
    %1101 = vmatpush1.msra.mxu0 %v909
    %1102 = vmatprep.subr.mxu0 0.0
    %1103 = vmatpush1.msra.mxu0 %v911
    %1104 = vmatprep.subr.mxu0 0.0
    %1105 = vmatpush1.msra.mxu0 %v913
    %1106 = vmatprep.subr.mxu0 0.0
    %1107 = vmatpush1.msra.mxu0 %v915
    %1108 = vmatprep.subr.mxu0 0.0
    %1109 = vmatpush1.msra.mxu0 %v917
    %1110 = vmatprep.subr.mxu0 0.0
    %1111 = vmatpush1.msra.mxu0 %v919
    %1112 = vmatprep.subr.mxu0 0.0
    %1113 = vmatpush1.msra.mxu0 %v921
    %1114 = vmatprep.subr.mxu0 0.0
    %1115 = vmatpush1.msra.mxu0 %v923
    %1116 = vmatprep.subr.mxu0 0.0
    %1117 = vmatpush1.msra.mxu0 %v925
    %1118 = vmatprep.subr.mxu0 0.0
    %1119 = vmatpush1.msra.mxu0 %v927
    %1120 = vmatprep.subr.mxu0 0.0
    %1121 = vmatpush1.msra.mxu0 %v929
    %1122 = vmatprep.subr.mxu0 0.0
    %1123 = vmatpush1.msra.mxu0 %v931
    %1124 = vmatprep.subr.mxu0 0.0
    %1125 = vmatpush1.msra.mxu0 %v933
    %1126 = vmatprep.subr.mxu0 0.0
    %1127 = vmatpush1.msra.mxu0 %v935
    %1128 = vmatprep.subr.mxu0 0.0
    %1129 = vmatpush1.msra.mxu0 %v937
    %1130 = vmatprep.subr.mxu0 0.0
    %1131 = vmatpush1.msra.mxu0 %v939
    %1132 = vmatprep.subr.mxu0 0.0
    %1133 = vmatpush1.msra.mxu0 %v941
    %1134 = vmatprep.subr.mxu0 0.0
    %1135 = vmatpush1.msra.mxu0 %v943
    %1136 = vmatprep.subr.mxu0 0.0
    %1137 = vmatpush1.msra.mxu0 %v945
    %1138 = vmatprep.subr.mxu0 0.0
    %1139 = vmatpush1.msra.mxu0 %v947
    %1140 = vmatprep.subr.mxu0 0.0
    %1141 = vmatpush1.msra.mxu0 %v949
    %1142 = vmatprep.subr.mxu0 0.0
    %1143 = vmatpush1.msra.mxu0 %v951
    %1144 = vmatprep.subr.mxu0 0.0
    %1145 = vmatpush1.msra.mxu0 %v953
    %1146 = vmatprep.subr.mxu0 0.0
    %1147 = vmatpush1.msra.mxu0 %v955
    %1148 = vmatprep.mubr.f32.mxu0 %v1021
    %1149 = vmatmul.mubr.f32.gmra.mrb[0].mxu0 %v1020
    %v1150 = vpop.f32.mrb[0].mxu0
    %v1151 = vadd.f32 0.0, %v1150
    %v1152 = vpop.f32.mrb[0].mxu0
    %1153 = vmatprep.mubr.f32.mxu0 %v1025
    %1154 = vmatmul.mubr.f32.gmra.mrb[0].mxu0 %v1024
    %v1155 = vpop.f32.mrb[0].mxu0
    %v1156 = vadd.f32 0.0, %v1155
    %v1157 = vpop.f32.mrb[0].mxu0
    %1158 = vmatprep.mubr.f32.mxu0 %v1029
    %1159 = vmatmul.mubr.f32.gmra.mrb[0].mxu0 %v1028
    %v1160 = vpop.f32.mrb[0].mxu0
    %v1161 = vadd.f32 0.0, %v1160
    %v1162 = vpop.f32.mrb[0].mxu0
    %1163 = vmatprep.mubr.f32.mxu0 %v1033
    %1164 = vmatmul.mubr.f32.gmra.mrb[0].mxu0 %v1032
    %v1165 = vpop.f32.mrb[0].mxu0
    %v1166 = vadd.f32 0.0, %v1165
    %v1167 = vpop.f32.mrb[0].mxu0
    %1168 = vmatprep.mubr.f32.mxu0 %v1037
    %1169 = vmatmul.mubr.f32.gmra.mrb[0].mxu0 %v1036
    %v1170 = vpop.f32.mrb[0].mxu0
    %v1171 = vadd.f32 0.0, %v1170
    %v1172 = vpop.f32.mrb[0].mxu0
    %1173 = vmatprep.mubr.f32.mxu0 %v1041
    %1174 = vmatmul.mubr.f32.gmra.mrb[0].mxu0 %v1040
    %v1175 = vpop.f32.mrb[0].mxu0
    %v1176 = vadd.f32 0.0, %v1175
    %v1177 = vpop.f32.mrb[0].mxu0
    %1178 = vmatprep.mubr.f32.mxu0 %v1045
    %1179 = vmatmul.mubr.f32.gmra.mrb[0].mxu0 %v1044
    %v1180 = vpop.f32.mrb[0].mxu0
    %v1181 = vadd.f32 0.0, %v1180
    %v1182 = vpop.f32.mrb[0].mxu0
    %1183 = vmatprep.mubr.f32.mxu0 %v1049
    %1184 = vmatmul.mubr.f32.gmra.mrb[0].mxu0 %v1048
    %v1185 = vpop.f32.mrb[0].mxu0
    %v1186 = vadd.f32 0.0, %v1185
    %v1187 = vpop.f32.mrb[0].mxu0
    %1188 = vmatprep.mubr.f32.mxu0 %v1053
    %1189 = vmatmul.mubr.f32.gmra.mrb[0].mxu0 %v1052
    %v1190 = vpop.f32.mrb[0].mxu0
    %v1191 = vadd.f32 0.0, %v1190
    %v1192 = vpop.f32.mrb[0].mxu0
    %1193 = vmatprep.mubr.f32.mxu0 %v1057
    %1194 = vmatmul.mubr.f32.gmra.mrb[0].mxu0 %v1056
    %v1195 = vpop.f32.mrb[0].mxu0
    %v1196 = vadd.f32 0.0, %v1195
    %v1197 = vpop.f32.mrb[0].mxu0
    %1198 = vmatprep.mubr.f32.mxu0 %v1061
    %1199 = vmatmul.mubr.f32.gmra.mrb[0].mxu0 %v1060
    %v1200 = vpop.f32.mrb[0].mxu0
    %v1201 = vadd.f32 0.0, %v1200
    %v1202 = vpop.f32.mrb[0].mxu0
    %1203 = vmatprep.mubr.f32.mxu0 %v1065
    %1204 = vmatmul.mubr.f32.gmra.mrb[0].mxu0 %v1064
    %v1205 = vpop.f32.mrb[0].mxu0
    %v1206 = vadd.f32 0.0, %v1205
    %v1207 = vpop.f32.mrb[0].mxu0
    %1208 = vmatprep.mubr.f32.mxu0 %v1069
    %1209 = vmatmul.mubr.f32.gmra.mrb[0].mxu0 %v1068
    %v1210 = vpop.f32.mrb[0].mxu0
    %v1211 = vadd.f32 0.0, %v1210
    %v1212 = vpop.f32.mrb[0].mxu0
    %1213 = vmatprep.mubr.f32.mxu0 %v1073
    %1214 = vmatmul.mubr.f32.gmra.mrb[0].mxu0 %v1072
    %v1215 = vpop.f32.mrb[0].mxu0
    %v1216 = vadd.f32 0.0, %v1215
    %v1217 = vpop.f32.mrb[0].mxu0
    %1218 = vmatprep.mubr.f32.mxu0 %v1077
    %1219 = vmatmul.mubr.f32.gmra.mrb[0].mxu0 %v1076
    %v1220 = vpop.f32.mrb[0].mxu0
    %v1221 = vadd.f32 0.0, %v1220
    %v1222 = vpop.f32.mrb[0].mxu0
    %1223 = vmatprep.mubr.f32.mxu0 %v1081
    %1224 = vmatmul.mubr.f32.gmra.mrb[0].mxu0 %v1080
    %v1225 = vpop.f32.mrb[0].mxu0
    %v1226 = vadd.f32 0.0, %v1225
    %v1227 = vpop.f32.mrb[0].mxu0
    %1228 = vdwg.mxu0
    %1229 = vmatprep.subr.mxu0 0.0
    %1230 = vmatpush1.msra.mxu0 %v957
    %1231 = vmatprep.subr.mxu0 0.0
    %1232 = vmatpush1.msra.mxu0 %v959
    %1233 = vmatprep.subr.mxu0 0.0
    %1234 = vmatpush1.msra.mxu0 %v961
    %1235 = vmatprep.subr.mxu0 0.0
    %1236 = vmatpush1.msra.mxu0 %v963
    %1237 = vmatprep.subr.mxu0 0.0
    %1238 = vmatpush1.msra.mxu0 %v965
    %1239 = vmatprep.subr.mxu0 0.0
    %1240 = vmatpush1.msra.mxu0 %v967
    %1241 = vmatprep.subr.mxu0 0.0
    %1242 = vmatpush1.msra.mxu0 %v969
    %1243 = vmatprep.subr.mxu0 0.0
    %1244 = vmatpush1.msra.mxu0 %v971
    %1245 = vmatprep.subr.mxu0 0.0
    %1246 = vmatpush1.msra.mxu0 %v973
    %1247 = vmatprep.subr.mxu0 0.0
    %1248 = vmatpush1.msra.mxu0 %v975
    %1249 = vmatprep.subr.mxu0 0.0
    %1250 = vmatpush1.msra.mxu0 %v977
    %1251 = vmatprep.subr.mxu0 0.0
    %1252 = vmatpush1.msra.mxu0 %v979
    %1253 = vmatprep.subr.mxu0 0.0
    %1254 = vmatpush1.msra.mxu0 %v981
    %1255 = vmatprep.subr.mxu0 0.0
    %1256 = vmatpush1.msra.mxu0 %v983
    %1257 = vmatprep.subr.mxu0 0.0
    %1258 = vmatpush1.msra.mxu0 %v985
    %1259 = vmatprep.subr.mxu0 0.0
    %1260 = vmatpush1.msra.mxu0 %v987
    %1261 = vmatprep.subr.mxu0 0.0
    %1262 = vmatpush1.msra.mxu0 %v989
    %1263 = vmatprep.subr.mxu0 0.0
    %1264 = vmatpush1.msra.mxu0 %v991
    %1265 = vmatprep.subr.mxu0 0.0
    %1266 = vmatpush1.msra.mxu0 %v993
    %1267 = vmatprep.subr.mxu0 0.0
    %1268 = vmatpush1.msra.mxu0 %v995
    %1269 = vmatprep.subr.mxu0 0.0
    %1270 = vmatpush1.msra.mxu0 %v997
    %1271 = vmatprep.subr.mxu0 0.0
    %1272 = vmatpush1.msra.mxu0 %v999
    %1273 = vmatprep.subr.mxu0 0.0
    %1274 = vmatpush1.msra.mxu0 %v1001
    %1275 = vmatprep.subr.mxu0 0.0
    %1276 = vmatpush1.msra.mxu0 %v1003
    %1277 = vmatprep.subr.mxu0 0.0
    %1278 = vmatpush1.msra.mxu0 %v1005
    %1279 = vmatprep.subr.mxu0 0.0
    %1280 = vmatpush1.msra.mxu0 %v1007
    %1281 = vmatprep.subr.mxu0 0.0
    %1282 = vmatpush1.msra.mxu0 %v1009
    %1283 = vmatprep.subr.mxu0 0.0
    %1284 = vmatpush1.msra.mxu0 %v1011
    %1285 = vmatprep.subr.mxu0 0.0
    %1286 = vmatpush1.msra.mxu0 %v1013
    %1287 = vmatprep.subr.mxu0 0.0
    %1288 = vmatpush1.msra.mxu0 %v1015
    %1289 = vmatprep.subr.mxu0 0.0
    %1290 = vmatpush1.msra.mxu0 %v1017
    %1291 = vmatprep.subr.mxu0 0.0
    %1292 = vmatpush1.msra.mxu0 %v1019
    %1293 = vmatprep.mubr.f32.mxu0 %v1023
    %1294 = vmatmul.mubr.f32.gmra.mrb[0].mxu0 %v1022
    %v1295 = vpop.f32.mrb[0].mxu0
    %v1296 = vadd.f32 %v1151, %v1295
    %v1297 = vpop.f32.mrb[0].mxu0
    %1298 = vmatprep.mubr.f32.mxu0 %v1027
    %1299 = vmatmul.mubr.f32.gmra.mrb[0].mxu0 %v1026
    %v1300 = vpop.f32.mrb[0].mxu0
    %v1301 = vadd.f32 %v1156, %v1300
    %v1302 = vpop.f32.mrb[0].mxu0
    %1303 = vmatprep.mubr.f32.mxu0 %v1031
    %1304 = vmatmul.mubr.f32.gmra.mrb[0].mxu0 %v1030
    %v1305 = vpop.f32.mrb[0].mxu0
    %v1306 = vadd.f32 %v1161, %v1305
    %v1307 = vpop.f32.mrb[0].mxu0
    %1308 = vmatprep.mubr.f32.mxu0 %v1035
    %1309 = vmatmul.mubr.f32.gmra.mrb[0].mxu0 %v1034
    %v1310 = vpop.f32.mrb[0].mxu0
    %v1311 = vadd.f32 %v1166, %v1310
    %v1312 = vpop.f32.mrb[0].mxu0
    %1313 = vmatprep.mubr.f32.mxu0 %v1039
    %1314 = vmatmul.mubr.f32.gmra.mrb[0].mxu0 %v1038
    %v1315 = vpop.f32.mrb[0].mxu0
    %v1316 = vadd.f32 %v1171, %v1315
    %v1317 = vpop.f32.mrb[0].mxu0
    %1318 = vmatprep.mubr.f32.mxu0 %v1043
    %1319 = vmatmul.mubr.f32.gmra.mrb[0].mxu0 %v1042
    %v1320 = vpop.f32.mrb[0].mxu0
    %v1321 = vadd.f32 %v1176, %v1320
    %v1322 = vpop.f32.mrb[0].mxu0
    %1323 = vmatprep.mubr.f32.mxu0 %v1047
    %1324 = vmatmul.mubr.f32.gmra.mrb[0].mxu0 %v1046
    %v1325 = vpop.f32.mrb[0].mxu0
    %v1326 = vadd.f32 %v1181, %v1325
    %v1327 = vpop.f32.mrb[0].mxu0
    %1328 = vmatprep.mubr.f32.mxu0 %v1051
    %1329 = vmatmul.mubr.f32.gmra.mrb[0].mxu0 %v1050
    %v1330 = vpop.f32.mrb[0].mxu0
    %v1331 = vadd.f32 %v1186, %v1330
    %v1332 = vpop.f32.mrb[0].mxu0
    %1333 = vmatprep.mubr.f32.mxu0 %v1055
    %1334 = vmatmul.mubr.f32.gmra.mrb[0].mxu0 %v1054
    %v1335 = vpop.f32.mrb[0].mxu0
    %v1336 = vadd.f32 %v1191, %v1335
    %v1337 = vpop.f32.mrb[0].mxu0
    %1338 = vmatprep.mubr.f32.mxu0 %v1059
    %1339 = vmatmul.mubr.f32.gmra.mrb[0].mxu0 %v1058
    %v1340 = vpop.f32.mrb[0].mxu0
    %v1341 = vadd.f32 %v1196, %v1340
    %v1342 = vpop.f32.mrb[0].mxu0
    %1343 = vmatprep.mubr.f32.mxu0 %v1063
    %1344 = vmatmul.mubr.f32.gmra.mrb[0].mxu0 %v1062
    %v1345 = vpop.f32.mrb[0].mxu0
    %v1346 = vadd.f32 %v1201, %v1345
    %v1347 = vpop.f32.mrb[0].mxu0
    %1348 = vmatprep.mubr.f32.mxu0 %v1067
    %1349 = vmatmul.mubr.f32.gmra.mrb[0].mxu0 %v1066
    %v1350 = vpop.f32.mrb[0].mxu0
    %v1351 = vadd.f32 %v1206, %v1350
    %v1352 = vpop.f32.mrb[0].mxu0
    %1353 = vmatprep.mubr.f32.mxu0 %v1071
    %1354 = vmatmul.mubr.f32.gmra.mrb[0].mxu0 %v1070
    %v1355 = vpop.f32.mrb[0].mxu0
    %v1356 = vadd.f32 %v1211, %v1355
    %v1357 = vpop.f32.mrb[0].mxu0
    %1358 = vmatprep.mubr.f32.mxu0 %v1075
    %1359 = vmatmul.mubr.f32.gmra.mrb[0].mxu0 %v1074
    %v1360 = vpop.f32.mrb[0].mxu0
    %v1361 = vadd.f32 %v1216, %v1360
    %v1362 = vpop.f32.mrb[0].mxu0
    %1363 = vmatprep.mubr.f32.mxu0 %v1079
    %1364 = vmatmul.mubr.f32.gmra.mrb[0].mxu0 %v1078
    %v1365 = vpop.f32.mrb[0].mxu0
    %v1366 = vadd.f32 %v1221, %v1365
    %v1367 = vpop.f32.mrb[0].mxu0
    %1368 = vmatprep.mubr.f32.mxu0 %v1083
    %1369 = vmatmul.mubr.f32.gmra.mrb[0].mxu0 %v1082
    %v1370 = vpop.f32.mrb[0].mxu0
    %v1371 = vadd.f32 %v1226, %v1370
    %v1372 = vpop.f32.mrb[0].mxu0
    %1373 = vdwg.mxu0
    %v1374 = vld [vmem:[%s6] sm:$0xff]
    %v1375 = vld [vmem:[%s6 + $0x8] sm:$0xff]
    %v1376 = vld [vmem:[%s6 + $0x10] sm:$0xff]
    %v1377 = vld [vmem:[%s6 + $0x18] sm:$0xff]
    %v1378 = vld [vmem:[%s6 + $0x20] sm:$0xff]
    %v1379 = vld [vmem:[%s6 + $0x28] sm:$0xff]
    %v1380 = vld [vmem:[%s6 + $0x30] sm:$0xff]
    %v1381 = vld [vmem:[%s6 + $0x38] sm:$0xff]
    %v1382 = vld [vmem:[%s6 + $0x40] sm:$0xff]
    %v1383 = vld [vmem:[%s6 + $0x48] sm:$0xff]
    %v1384 = vld [vmem:[%s6 + $0x50] sm:$0xff]
    %v1385 = vld [vmem:[%s6 + $0x58] sm:$0xff]
    %v1386 = vld [vmem:[%s6 + $0x60] sm:$0xff]
    %v1387 = vld [vmem:[%s6 + $0x68] sm:$0xff]
    %v1388 = vld [vmem:[%s6 + $0x70] sm:$0xff]
    %v1389 = vld [vmem:[%s6 + $0x78] sm:$0xff]
    %v1390 = vmul.f32 %v1374, %v1296
    %v1391 = vmul.f32 %v1375, %v1301
    %v1392 = vmul.f32 %v1376, %v1306
    %v1393 = vmul.f32 %v1377, %v1311
    %v1394 = vmul.f32 %v1378, %v1316
    %v1395 = vmul.f32 %v1379, %v1321
    %v1396 = vmul.f32 %v1380, %v1326
    %v1397 = vmul.f32 %v1381, %v1331
    %v1398 = vmul.f32 %v1382, %v1336
    %v1399 = vmul.f32 %v1383, %v1341
    %v1400 = vmul.f32 %v1384, %v1346
    %v1401 = vmul.f32 %v1385, %v1351
    %v1402 = vmul.f32 %v1386, %v1356
    %v1403 = vmul.f32 %v1387, %v1361
    %v1404 = vmul.f32 %v1388, %v1366
    %v1405 = vmul.f32 %v1389, %v1371
    %v1406 = vadd.f32 %v1390, %v1391
    %v1407 = vadd.f32 %v1406, %v1392
    %v1408 = vadd.f32 %v1407, %v1393
    %v1409 = vadd.f32 %v1408, %v1394
    %v1410 = vadd.f32 %v1409, %v1395
    %v1411 = vadd.f32 %v1410, %v1396
    %v1412 = vadd.f32 %v1411, %v1397
    %v1413 = vadd.f32 %v1412, %v1398
    %v1414 = vadd.f32 %v1413, %v1399
    %v1415 = vadd.f32 %v1414, %v1400
    %v1416 = vadd.f32 %v1415, %v1401
    %v1417 = vadd.f32 %v1416, %v1402
    %v1418 = vadd.f32 %v1417, %v1403
    %v1419 = vadd.f32 %v1418, %v1404
    %v1420 = vadd.f32 %v1419, %v1405
    %v1421 = vrot.slane %v1420, 4
    %v1422 = vadd.f32 %v1420, %v1421
    %v1423 = vrot.slane %v1422, 2
    %v1424 = vadd.f32 %v1422, %v1423
    %v1425 = vrot.slane %v1424, 1
    %v1426 = vadd.f32 %v1424, %v1425
    %v1427 = vrcp.pop %v1371
    %v1428 = vmul.f32 %v1426, %v1427
    %v1429 = vld [vmem:[#allocation4] sm:$0xff]
    %v1430 = vld [vmem:[#allocation4 + $0x8] sm:$0xff]
    %v1431 = vld [vmem:[#allocation4 + $0x10] sm:$0xff]
    %v1432 = vld [vmem:[#allocation4 + $0x18] sm:$0xff]
    %v1433 = vld [vmem:[#allocation4 + $0x20] sm:$0xff]
    %v1434 = vld [vmem:[#allocation4 + $0x28] sm:$0xff]
    %v1435 = vld [vmem:[#allocation4 + $0x30] sm:$0xff]
    %v1436 = vld [vmem:[#allocation4 + $0x38] sm:$0xff]
    %v1437 = vld [vmem:[#allocation4 + $0x40] sm:$0xff]
    %v1438 = vld [vmem:[#allocation4 + $0x48] sm:$0xff]
    %v1439 = vld [vmem:[#allocation4 + $0x50] sm:$0xff]
    %v1440 = vld [vmem:[#allocation4 + $0x58] sm:$0xff]
    %v1441 = vld [vmem:[#allocation4 + $0x60] sm:$0xff]
    %v1442 = vld [vmem:[#allocation4 + $0x68] sm:$0xff]
    %v1443 = vld [vmem:[#allocation4 + $0x70] sm:$0xff]
    %v1444 = vld [vmem:[#allocation4 + $0x78] sm:$0xff]
    %v1445 = vld [vmem:[#allocation4 + $0x80] sm:$0xff]
    %v1446 = vld [vmem:[#allocation4 + $0x88] sm:$0xff]
    %v1447 = vld [vmem:[#allocation4 + $0x90] sm:$0xff]
    %v1448 = vld [vmem:[#allocation4 + $0x98] sm:$0xff]
    %v1449 = vld [vmem:[#allocation4 + $0xa0] sm:$0xff]
    %v1450 = vld [vmem:[#allocation4 + $0xa8] sm:$0xff]
    %v1451 = vld [vmem:[#allocation4 + $0xb0] sm:$0xff]
    %v1452 = vld [vmem:[#allocation4 + $0xb8] sm:$0xff]
    %v1453 = vld [vmem:[#allocation4 + $0xc0] sm:$0xff]
    %v1454 = vld [vmem:[#allocation4 + $0xc8] sm:$0xff]
    %v1455 = vld [vmem:[#allocation4 + $0xd0] sm:$0xff]
    %v1456 = vld [vmem:[#allocation4 + $0xd8] sm:$0xff]
    %v1457 = vld [vmem:[#allocation4 + $0xe0] sm:$0xff]
    %v1458 = vld [vmem:[#allocation4 + $0xe8] sm:$0xff]
    %v1459 = vld [vmem:[#allocation4 + $0xf0] sm:$0xff]
    %v1460 = vld [vmem:[#allocation4 + $0xf8] sm:$0xff]
    %v1461 = vld [vmem:[#allocation4 + $0x100] sm:$0xff]
    %v1462 = vld [vmem:[#allocation4 + $0x108] sm:$0xff]
    %v1463 = vld [vmem:[#allocation4 + $0x110] sm:$0xff]
    %v1464 = vld [vmem:[#allocation4 + $0x118] sm:$0xff]
    %v1465 = vld [vmem:[#allocation4 + $0x120] sm:$0xff]
    %v1466 = vld [vmem:[#allocation4 + $0x128] sm:$0xff]
    %v1467 = vld [vmem:[#allocation4 + $0x130] sm:$0xff]
    %v1468 = vld [vmem:[#allocation4 + $0x138] sm:$0xff]
    %v1469 = vld [vmem:[#allocation4 + $0x140] sm:$0xff]
    %v1470 = vld [vmem:[#allocation4 + $0x148] sm:$0xff]
    %v1471 = vld [vmem:[#allocation4 + $0x150] sm:$0xff]
    %v1472 = vld [vmem:[#allocation4 + $0x158] sm:$0xff]
    %v1473 = vld [vmem:[#allocation4 + $0x160] sm:$0xff]
    %v1474 = vld [vmem:[#allocation4 + $0x168] sm:$0xff]
    %v1475 = vld [vmem:[#allocation4 + $0x170] sm:$0xff]
    %v1476 = vld [vmem:[#allocation4 + $0x178] sm:$0xff]
    %v1477 = vld [vmem:[#allocation4 + $0x180] sm:$0xff]
    %v1478 = vld [vmem:[#allocation4 + $0x188] sm:$0xff]
    %v1479 = vld [vmem:[#allocation4 + $0x190] sm:$0xff]
    %v1480 = vld [vmem:[#allocation4 + $0x198] sm:$0xff]
    %v1481 = vld [vmem:[#allocation4 + $0x1a0] sm:$0xff]
    %v1482 = vld [vmem:[#allocation4 + $0x1a8] sm:$0xff]
    %v1483 = vld [vmem:[#allocation4 + $0x1b0] sm:$0xff]
    %v1484 = vld [vmem:[#allocation4 + $0x1b8] sm:$0xff]
    %v1485 = vld [vmem:[#allocation4 + $0x1c0] sm:$0xff]
    %v1486 = vld [vmem:[#allocation4 + $0x1c8] sm:$0xff]
    %v1487 = vld [vmem:[#allocation4 + $0x1d0] sm:$0xff]
    %v1488 = vld [vmem:[#allocation4 + $0x1d8] sm:$0xff]
    %v1489 = vld [vmem:[#allocation4 + $0x1e0] sm:$0xff]
    %v1490 = vld [vmem:[#allocation4 + $0x1e8] sm:$0xff]
    %v1491 = vld [vmem:[#allocation4 + $0x1f0] sm:$0xff]
    %v1492 = vld [vmem:[#allocation4 + $0x1f8] sm:$0xff]
    %v1493 = vld [vmem:[#allocation4 + $0x200] sm:$0xff]
    %v1494 = vld [vmem:[#allocation4 + $0x208] sm:$0xff]
    %v1495 = vld [vmem:[#allocation4 + $0x210] sm:$0xff]
    %v1496 = vld [vmem:[#allocation4 + $0x218] sm:$0xff]
    %v1497 = vld [vmem:[#allocation4 + $0x220] sm:$0xff]
    %v1498 = vld [vmem:[#allocation4 + $0x228] sm:$0xff]
    %v1499 = vld [vmem:[#allocation4 + $0x230] sm:$0xff]
    %v1500 = vld [vmem:[#allocation4 + $0x238] sm:$0xff]
    %v1501 = vld [vmem:[#allocation4 + $0x240] sm:$0xff]
    %v1502 = vld [vmem:[#allocation4 + $0x248] sm:$0xff]
    %v1503 = vld [vmem:[#allocation4 + $0x250] sm:$0xff]
    %v1504 = vld [vmem:[#allocation4 + $0x258] sm:$0xff]
    %v1505 = vld [vmem:[#allocation4 + $0x260] sm:$0xff]
    %v1506 = vld [vmem:[#allocation4 + $0x268] sm:$0xff]
    %v1507 = vld [vmem:[#allocation4 + $0x270] sm:$0xff]
    %v1508 = vld [vmem:[#allocation4 + $0x278] sm:$0xff]
    %v1509 = vld [vmem:[#allocation4 + $0x280] sm:$0xff]
    %v1510 = vld [vmem:[#allocation4 + $0x288] sm:$0xff]
    %v1511 = vld [vmem:[#allocation4 + $0x290] sm:$0xff]
    %v1512 = vld [vmem:[#allocation4 + $0x298] sm:$0xff]
    %v1513 = vld [vmem:[#allocation4 + $0x2a0] sm:$0xff]
    %v1514 = vld [vmem:[#allocation4 + $0x2a8] sm:$0xff]
    %v1515 = vld [vmem:[#allocation4 + $0x2b0] sm:$0xff]
    %v1516 = vld [vmem:[#allocation4 + $0x2b8] sm:$0xff]
    %v1517 = vld [vmem:[#allocation4 + $0x2c0] sm:$0xff]
    %v1518 = vld [vmem:[#allocation4 + $0x2c8] sm:$0xff]
    %v1519 = vld [vmem:[#allocation4 + $0x2d0] sm:$0xff]
    %v1520 = vld [vmem:[#allocation4 + $0x2d8] sm:$0xff]
    %v1521 = vld [vmem:[#allocation4 + $0x2e0] sm:$0xff]
    %v1522 = vld [vmem:[#allocation4 + $0x2e8] sm:$0xff]
    %v1523 = vld [vmem:[#allocation4 + $0x2f0] sm:$0xff]
    %v1524 = vld [vmem:[#allocation4 + $0x2f8] sm:$0xff]
    %v1525 = vld [vmem:[#allocation4 + $0x300] sm:$0xff]
    %v1526 = vld [vmem:[#allocation4 + $0x308] sm:$0xff]
    %v1527 = vld [vmem:[#allocation4 + $0x310] sm:$0xff]
    %v1528 = vld [vmem:[#allocation4 + $0x318] sm:$0xff]
    %v1529 = vld [vmem:[#allocation4 + $0x320] sm:$0xff]
    %v1530 = vld [vmem:[#allocation4 + $0x328] sm:$0xff]
    %v1531 = vld [vmem:[#allocation4 + $0x330] sm:$0xff]
    %v1532 = vld [vmem:[#allocation4 + $0x338] sm:$0xff]
    %v1533 = vld [vmem:[#allocation4 + $0x340] sm:$0xff]
    %v1534 = vld [vmem:[#allocation4 + $0x348] sm:$0xff]
    %v1535 = vld [vmem:[#allocation4 + $0x350] sm:$0xff]
    %v1536 = vld [vmem:[#allocation4 + $0x358] sm:$0xff]
    %v1537 = vld [vmem:[#allocation4 + $0x360] sm:$0xff]
    %v1538 = vld [vmem:[#allocation4 + $0x368] sm:$0xff]
    %v1539 = vld [vmem:[#allocation4 + $0x370] sm:$0xff]
    %v1540 = vld [vmem:[#allocation4 + $0x378] sm:$0xff]
    %v1541 = vld [vmem:[#allocation4 + $0x380] sm:$0xff]
    %v1542 = vld [vmem:[#allocation4 + $0x388] sm:$0xff]
    %v1543 = vld [vmem:[#allocation4 + $0x390] sm:$0xff]
    %v1544 = vld [vmem:[#allocation4 + $0x398] sm:$0xff]
    %v1545 = vld [vmem:[#allocation4 + $0x3a0] sm:$0xff]
    %v1546 = vld [vmem:[#allocation4 + $0x3a8] sm:$0xff]
    %v1547 = vld [vmem:[#allocation4 + $0x3b0] sm:$0xff]
    %v1548 = vld [vmem:[#allocation4 + $0x3b8] sm:$0xff]
    %v1549 = vld [vmem:[#allocation4 + $0x3c0] sm:$0xff]
    %v1550 = vld [vmem:[#allocation4 + $0x3c8] sm:$0xff]
    %v1551 = vld [vmem:[#allocation4 + $0x3d0] sm:$0xff]
    %v1552 = vld [vmem:[#allocation4 + $0x3d8] sm:$0xff]
    %v1553 = vld [vmem:[#allocation4 + $0x3e0] sm:$0xff]
    %v1554 = vld [vmem:[#allocation4 + $0x3e8] sm:$0xff]
    %v1555 = vld [vmem:[#allocation4 + $0x3f0] sm:$0xff]
    %v1556 = vld [vmem:[#allocation4 + $0x3f8] sm:$0xff]
    %v1557 = vld [vmem:[#allocation4 + $0x400] sm:$0xff]
    %v1558 = vld [vmem:[#allocation4 + $0x408] sm:$0xff]
    %v1559 = vld [vmem:[#allocation4 + $0x410] sm:$0xff]
    %v1560 = vld [vmem:[#allocation4 + $0x418] sm:$0xff]
    %v1561 = vld [vmem:[#allocation4 + $0x420] sm:$0xff]
    %v1562 = vld [vmem:[#allocation4 + $0x428] sm:$0xff]
    %v1563 = vld [vmem:[#allocation4 + $0x430] sm:$0xff]
    %v1564 = vld [vmem:[#allocation4 + $0x438] sm:$0xff]
    %v1565 = vld [vmem:[#allocation4 + $0x440] sm:$0xff]
    %v1566 = vld [vmem:[#allocation4 + $0x448] sm:$0xff]
    %v1567 = vld [vmem:[#allocation4 + $0x450] sm:$0xff]
    %v1568 = vld [vmem:[#allocation4 + $0x458] sm:$0xff]
    %v1569 = vld [vmem:[#allocation4 + $0x460] sm:$0xff]
    %v1570 = vld [vmem:[#allocation4 + $0x468] sm:$0xff]
    %v1571 = vld [vmem:[#allocation4 + $0x470] sm:$0xff]
    %v1572 = vld [vmem:[#allocation4 + $0x478] sm:$0xff]
    %v1573 = vld [vmem:[#allocation4 + $0x480] sm:$0xff]
    %v1574 = vld [vmem:[#allocation4 + $0x488] sm:$0xff]
    %v1575 = vld [vmem:[#allocation4 + $0x490] sm:$0xff]
    %v1576 = vld [vmem:[#allocation4 + $0x498] sm:$0xff]
    %v1577 = vld [vmem:[#allocation4 + $0x4a0] sm:$0xff]
    %v1578 = vld [vmem:[#allocation4 + $0x4a8] sm:$0xff]
    %v1579 = vld [vmem:[#allocation4 + $0x4b0] sm:$0xff]
    %v1580 = vld [vmem:[#allocation4 + $0x4b8] sm:$0xff]
    %v1581 = vld [vmem:[#allocation4 + $0x4c0] sm:$0xff]
    %v1582 = vld [vmem:[#allocation4 + $0x4c8] sm:$0xff]
    %v1583 = vld [vmem:[#allocation4 + $0x4d0] sm:$0xff]
    %v1584 = vld [vmem:[#allocation4 + $0x4d8] sm:$0xff]
    %v1585 = vld [vmem:[#allocation4 + $0x4e0] sm:$0xff]
    %v1586 = vld [vmem:[#allocation4 + $0x4e8] sm:$0xff]
    %v1587 = vld [vmem:[#allocation4 + $0x4f0] sm:$0xff]
    %v1588 = vld [vmem:[#allocation4 + $0x4f8] sm:$0xff]
    %v1589 = vld [vmem:[#allocation4 + $0x500] sm:$0xff]
    %v1590 = vld [vmem:[#allocation4 + $0x508] sm:$0xff]
    %v1591 = vld [vmem:[#allocation4 + $0x510] sm:$0xff]
    %v1592 = vld [vmem:[#allocation4 + $0x518] sm:$0xff]
    %v1593 = vld [vmem:[#allocation4 + $0x520] sm:$0xff]
    %v1594 = vld [vmem:[#allocation4 + $0x528] sm:$0xff]
    %v1595 = vld [vmem:[#allocation4 + $0x530] sm:$0xff]
    %v1596 = vld [vmem:[#allocation4 + $0x538] sm:$0xff]
    %v1597 = vld [vmem:[#allocation4 + $0x540] sm:$0xff]
    %v1598 = vld [vmem:[#allocation4 + $0x548] sm:$0xff]
    %v1599 = vld [vmem:[#allocation4 + $0x550] sm:$0xff]
    %v1600 = vld [vmem:[#allocation4 + $0x558] sm:$0xff]
    %v1601 = vld [vmem:[#allocation4 + $0x560] sm:$0xff]
    %v1602 = vld [vmem:[#allocation4 + $0x568] sm:$0xff]
    %v1603 = vld [vmem:[#allocation4 + $0x570] sm:$0xff]
    %v1604 = vld [vmem:[#allocation4 + $0x578] sm:$0xff]
    %v1605 = vld [vmem:[#allocation4 + $0x580] sm:$0xff]
    %v1606 = vld [vmem:[#allocation4 + $0x588] sm:$0xff]
    %v1607 = vld [vmem:[#allocation4 + $0x590] sm:$0xff]
    %v1608 = vld [vmem:[#allocation4 + $0x598] sm:$0xff]
    %v1609 = vld [vmem:[#allocation4 + $0x5a0] sm:$0xff]
    %v1610 = vld [vmem:[#allocation4 + $0x5a8] sm:$0xff]
    %v1611 = vld [vmem:[#allocation4 + $0x5b0] sm:$0xff]
    %v1612 = vld [vmem:[#allocation4 + $0x5b8] sm:$0xff]
    %v1613 = vld [vmem:[#allocation4 + $0x5c0] sm:$0xff]
    %v1614 = vld [vmem:[#allocation4 + $0x5c8] sm:$0xff]
    %v1615 = vld [vmem:[#allocation4 + $0x5d0] sm:$0xff]
    %v1616 = vld [vmem:[#allocation4 + $0x5d8] sm:$0xff]
    %v1617 = vld [vmem:[#allocation4 + $0x5e0] sm:$0xff]
    %v1618 = vld [vmem:[#allocation4 + $0x5e8] sm:$0xff]
    %v1619 = vld [vmem:[#allocation4 + $0x5f0] sm:$0xff]
    %v1620 = vld [vmem:[#allocation4 + $0x5f8] sm:$0xff]
    %v1621 = vld [vmem:[#allocation4 + $0x600] sm:$0xff]
    %v1622 = vld [vmem:[#allocation4 + $0x608] sm:$0xff]
    %v1623 = vld [vmem:[#allocation4 + $0x610] sm:$0xff]
    %v1624 = vld [vmem:[#allocation4 + $0x618] sm:$0xff]
    %v1625 = vld [vmem:[#allocation4 + $0x620] sm:$0xff]
    %v1626 = vld [vmem:[#allocation4 + $0x628] sm:$0xff]
    %v1627 = vld [vmem:[#allocation4 + $0x630] sm:$0xff]
    %v1628 = vld [vmem:[#allocation4 + $0x638] sm:$0xff]
    %v1629 = vld [vmem:[#allocation4 + $0x640] sm:$0xff]
    %v1630 = vld [vmem:[#allocation4 + $0x648] sm:$0xff]
    %v1631 = vld [vmem:[#allocation4 + $0x650] sm:$0xff]
    %v1632 = vld [vmem:[#allocation4 + $0x658] sm:$0xff]
    %v1633 = vld [vmem:[#allocation4 + $0x660] sm:$0xff]
    %v1634 = vld [vmem:[#allocation4 + $0x668] sm:$0xff]
    %v1635 = vld [vmem:[#allocation4 + $0x670] sm:$0xff]
    %v1636 = vld [vmem:[#allocation4 + $0x678] sm:$0xff]
    %v1637 = vld [vmem:[%s9] sm:$0xff]
    %v1638 = vld [vmem:[%s9 + $0x8] sm:$0xff]
    %v1639 = vld [vmem:[%s9 + $0x10] sm:$0xff]
    %v1640 = vld [vmem:[%s9 + $0x18] sm:$0xff]
    %v1641 = vld [vmem:[%s9 + $0x20] sm:$0xff]
    %v1642 = vld [vmem:[%s9 + $0x28] sm:$0xff]
    %v1643 = vld [vmem:[%s9 + $0x30] sm:$0xff]
    %v1644 = vld [vmem:[%s9 + $0x38] sm:$0xff]
    %v1645 = vld [vmem:[%s9 + $0x40] sm:$0xff]
    %v1646 = vld [vmem:[%s9 + $0x48] sm:$0xff]
    %v1647 = vld [vmem:[%s9 + $0x50] sm:$0xff]
    %v1648 = vld [vmem:[%s9 + $0x58] sm:$0xff]
    %v1649 = vld [vmem:[%s9 + $0x60] sm:$0xff]
    %v1650 = vld [vmem:[%s9 + $0x68] sm:$0xff]
    %v1651 = vld [vmem:[%s9 + $0x70] sm:$0xff]
    %v1652 = vld [vmem:[%s9 + $0x78] sm:$0xff]
    %1653 = vmatprep.subr.mxu0 0.0
    %1654 = vmatpush1.xpose.msra.mxu0 %v1637
    %1655 = vmatprep.subr.mxu0 0.0
    %1656 = vmatpush1.xpose.msra.mxu0 %v1638
    %1657 = vmatprep.subr.mxu0 0.0
    %1658 = vmatpush1.xpose.msra.mxu0 %v1639
    %1659 = vmatprep.subr.mxu0 0.0
    %1660 = vmatpush1.xpose.msra.mxu0 %v1640
    %1661 = vmatprep.subr.mxu0 0.0
    %1662 = vmatpush1.xpose.msra.mxu0 %v1641
    %1663 = vmatprep.subr.mxu0 0.0
    %1664 = vmatpush1.xpose.msra.mxu0 %v1642
    %1665 = vmatprep.subr.mxu0 0.0
    %1666 = vmatpush1.xpose.msra.mxu0 %v1643
    %1667 = vmatprep.subr.mxu0 0.0
    %1668 = vmatpush1.xpose.msra.mxu0 %v1644
    %1669 = vmatprep.subr.mxu0 0.0
    %1670 = vmatpush1.xpose.msra.mxu0 %v1645
    %1671 = vmatprep.subr.mxu0 0.0
    %1672 = vmatpush1.xpose.msra.mxu0 %v1646
    %1673 = vmatprep.subr.mxu0 0.0
    %1674 = vmatpush1.xpose.msra.mxu0 %v1647
    %1675 = vmatprep.subr.mxu0 0.0
    %1676 = vmatpush1.xpose.msra.mxu0 %v1648
    %1677 = vmatprep.subr.mxu0 0.0
    %1678 = vmatpush1.xpose.msra.mxu0 %v1649
    %1679 = vmatprep.subr.mxu0 0.0
    %1680 = vmatpush1.xpose.msra.mxu0 %v1650
    %1681 = vmatprep.subr.mxu0 0.0
    %1682 = vmatpush1.xpose.msra.mxu0 %v1651
    %1683 = vmatprep.subr.mxu0 0.0
    %1684 = vmatpush1.xpose.msra.mxu0 %v1652
    %1685 = vmatprep.subr.mxu0 0.0
    %1686 = vmatpush1.xpose.msra.mxu0 0.0
    %1687 = vmatprep.subr.mxu0 0.0
    %1688 = vmatpush1.xpose.msra.mxu0 0.0
    %1689 = vmatprep.subr.mxu0 0.0
    %1690 = vmatpush1.xpose.msra.mxu0 0.0
    %1691 = vmatprep.subr.mxu0 0.0
    %1692 = vmatpush1.xpose.msra.mxu0 0.0
    %1693 = vmatprep.subr.mxu0 0.0
    %1694 = vmatpush1.xpose.msra.mxu0 0.0
    %1695 = vmatprep.subr.mxu0 0.0
    %1696 = vmatpush1.xpose.msra.mxu0 0.0
    %1697 = vmatprep.subr.mxu0 0.0
    %1698 = vmatpush1.xpose.msra.mxu0 0.0
    %1699 = vmatprep.subr.mxu0 0.0
    %1700 = vmatpush1.xpose.msra.mxu0 0.0
    %1701 = vmatprep.subr.mxu0 0.0
    %1702 = vmatpush1.xpose.msra.mxu0 0.0
    %1703 = vmatprep.subr.mxu0 0.0
    %1704 = vmatpush1.xpose.msra.mxu0 0.0
    %1705 = vmatprep.subr.mxu0 0.0
    %1706 = vmatpush1.xpose.msra.mxu0 0.0
    %1707 = vmatprep.subr.mxu0 0.0
    %1708 = vmatpush1.xpose.msra.mxu0 0.0
    %1709 = vmatprep.subr.mxu0 0.0
    %1710 = vmatpush1.xpose.msra.mxu0 0.0
    %1711 = vmatprep.subr.mxu0 0.0
    %1712 = vmatpush1.xpose.msra.mxu0 0.0
    %1713 = vmatprep.subr.mxu0 0.0
    %1714 = vmatpush1.xpose.msra.mxu0 0.0
    %1715 = vmatprep.subr.mxu0 0.0
    %1716 = vmatpush1.xpose.msra.mxu0 0.0
    %1717 = vmatprep.mubr.f32.mxu0 0.0
    %1718 = vmatmul.mubr.f32.gmra.mrb[0].mxu0 %v1429
    %v1719 = vpop.f32.mrb[0].mxu0
    %v1720 = vadd.f32 0.0, %v1719
    %v1721 = vpop.f32.mrb[0].mxu0
    %1722 = vmatprep.mubr.f32.mxu0 0.0
    %1723 = vmatmul.mubr.f32.gmra.mrb[0].mxu0 %v1430
    %v1724 = vpop.f32.mrb[0].mxu0
    %v1725 = vadd.f32 0.0, %v1724
    %v1726 = vpop.f32.mrb[0].mxu0
    %1727 = vmatprep.mubr.f32.mxu0 0.0
    %1728 = vmatmul.mubr.f32.gmra.mrb[0].mxu0 %v1431
    %v1729 = vpop.f32.mrb[0].mxu0
    %v1730 = vadd.f32 0.0, %v1729
    %v1731 = vpop.f32.mrb[0].mxu0
    %1732 = vmatprep.mubr.f32.mxu0 0.0
    %1733 = vmatmul.mubr.f32.gmra.mrb[0].mxu0 %v1432
    %v1734 = vpop.f32.mrb[0].mxu0
    %v1735 = vadd.f32 0.0, %v1734
    %v1736 = vpop.f32.mrb[0].mxu0
    %1737 = vmatprep.mubr.f32.mxu0 0.0
    %1738 = vmatmul.mubr.f32.gmra.mrb[0].mxu0 %v1433
    %v1739 = vpop.f32.mrb[0].mxu0
    %v1740 = vadd.f32 0.0, %v1739
    %v1741 = vpop.f32.mrb[0].mxu0
    %1742 = vmatprep.mubr.f32.mxu0 0.0
    %1743 = vmatmul.mubr.f32.gmra.mrb[0].mxu0 %v1434
    %v1744 = vpop.f32.mrb[0].mxu0
    %v1745 = vadd.f32 0.0, %v1744
    %v1746 = vpop.f32.mrb[0].mxu0
    %1747 = vmatprep.mubr.f32.mxu0 0.0
    %1748 = vmatmul.mubr.f32.gmra.mrb[0].mxu0 %v1435
    %v1749 = vpop.f32.mrb[0].mxu0
    %v1750 = vadd.f32 0.0, %v1749
    %v1751 = vpop.f32.mrb[0].mxu0
    %1752 = vmatprep.mubr.f32.mxu0 0.0
    %1753 = vmatmul.mubr.f32.gmra.mrb[0].mxu0 %v1436
    %v1754 = vpop.f32.mrb[0].mxu0
    %v1755 = vadd.f32 0.0, %v1754
    %v1756 = vpop.f32.mrb[0].mxu0
    %1757 = vmatprep.mubr.f32.mxu0 0.0
    %1758 = vmatmul.mubr.f32.gmra.mrb[0].mxu0 %v1437
    %v1759 = vpop.f32.mrb[0].mxu0
    %v1760 = vadd.f32 0.0, %v1759
    %v1761 = vpop.f32.mrb[0].mxu0
    %1762 = vmatprep.mubr.f32.mxu0 0.0
    %1763 = vmatmul.mubr.f32.gmra.mrb[0].mxu0 %v1438
    %v1764 = vpop.f32.mrb[0].mxu0
    %v1765 = vadd.f32 0.0, %v1764
    %v1766 = vpop.f32.mrb[0].mxu0
    %1767 = vmatprep.mubr.f32.mxu0 0.0
    %1768 = vmatmul.mubr.f32.gmra.mrb[0].mxu0 %v1439
    %v1769 = vpop.f32.mrb[0].mxu0
    %v1770 = vadd.f32 0.0, %v1769
    %v1771 = vpop.f32.mrb[0].mxu0
    %1772 = vmatprep.mubr.f32.mxu0 0.0
    %1773 = vmatmul.mubr.f32.gmra.mrb[0].mxu0 %v1440
    %v1774 = vpop.f32.mrb[0].mxu0
    %v1775 = vadd.f32 0.0, %v1774
    %v1776 = vpop.f32.mrb[0].mxu0
    %1777 = vmatprep.mubr.f32.mxu0 0.0
    %1778 = vmatmul.mubr.f32.gmra.mrb[0].mxu0 %v1441
    %v1779 = vpop.f32.mrb[0].mxu0
    %v1780 = vadd.f32 0.0, %v1779
    %v1781 = vpop.f32.mrb[0].mxu0
    %1782 = vmatprep.mubr.f32.mxu0 0.0
    %1783 = vmatmul.mubr.f32.gmra.mrb[0].mxu0 %v1442
    %v1784 = vpop.f32.mrb[0].mxu0
    %v1785 = vadd.f32 0.0, %v1784
    %v1786 = vpop.f32.mrb[0].mxu0
    %1787 = vmatprep.mubr.f32.mxu0 0.0
    %1788 = vmatmul.mubr.f32.gmra.mrb[0].mxu0 %v1443
    %v1789 = vpop.f32.mrb[0].mxu0
    %v1790 = vadd.f32 0.0, %v1789
    %v1791 = vpop.f32.mrb[0].mxu0
    %1792 = vmatprep.mubr.f32.mxu0 0.0
    %1793 = vmatmul.mubr.f32.gmra.mrb[0].mxu0 %v1444
    %v1794 = vpop.f32.mrb[0].mxu0
    %v1795 = vadd.f32 0.0, %v1794
    %v1796 = vpop.f32.mrb[0].mxu0
    %1797 = vmatprep.mubr.f32.mxu0 0.0
    %1798 = vmatmul.mubr.f32.gmra.mrb[0].mxu0 %v1445
    %v1799 = vpop.f32.mrb[0].mxu0
    %v1800 = vadd.f32 0.0, %v1799
    %v1801 = vpop.f32.mrb[0].mxu0
    %1802 = vmatprep.mubr.f32.mxu0 0.0
    %1803 = vmatmul.mubr.f32.gmra.mrb[0].mxu0 %v1446
    %v1804 = vpop.f32.mrb[0].mxu0
    %v1805 = vadd.f32 0.0, %v1804
    %v1806 = vpop.f32.mrb[0].mxu0
    %1807 = vmatprep.mubr.f32.mxu0 0.0
    %1808 = vmatmul.mubr.f32.gmra.mrb[0].mxu0 %v1447
    %v1809 = vpop.f32.mrb[0].mxu0
    %v1810 = vadd.f32 0.0, %v1809
    %v1811 = vpop.f32.mrb[0].mxu0
    %1812 = vmatprep.mubr.f32.mxu0 0.0
    %1813 = vmatmul.mubr.f32.gmra.mrb[0].mxu0 %v1448
    %v1814 = vpop.f32.mrb[0].mxu0
    %v1815 = vadd.f32 0.0, %v1814
    %v1816 = vpop.f32.mrb[0].mxu0
    %1817 = vmatprep.mubr.f32.mxu0 0.0
    %1818 = vmatmul.mubr.f32.gmra.mrb[0].mxu0 %v1449
    %v1819 = vpop.f32.mrb[0].mxu0
    %v1820 = vadd.f32 0.0, %v1819
    %v1821 = vpop.f32.mrb[0].mxu0
    %1822 = vmatprep.mubr.f32.mxu0 0.0
    %1823 = vmatmul.mubr.f32.gmra.mrb[0].mxu0 %v1450
    %v1824 = vpop.f32.mrb[0].mxu0
    %v1825 = vadd.f32 0.0, %v1824
    %v1826 = vpop.f32.mrb[0].mxu0
    %1827 = vmatprep.mubr.f32.mxu0 0.0
    %1828 = vmatmul.mubr.f32.gmra.mrb[0].mxu0 %v1451
    %v1829 = vpop.f32.mrb[0].mxu0
    %v1830 = vadd.f32 0.0, %v1829
    %v1831 = vpop.f32.mrb[0].mxu0
    %1832 = vmatprep.mubr.f32.mxu0 0.0
    %1833 = vmatmul.mubr.f32.gmra.mrb[0].mxu0 %v1452
    %v1834 = vpop.f32.mrb[0].mxu0
    %v1835 = vadd.f32 0.0, %v1834
    %v1836 = vpop.f32.mrb[0].mxu0
    %1837 = vmatprep.mubr.f32.mxu0 0.0
    %1838 = vmatmul.mubr.f32.gmra.mrb[0].mxu0 %v1453
    %v1839 = vpop.f32.mrb[0].mxu0
    %v1840 = vadd.f32 0.0, %v1839
    %v1841 = vpop.f32.mrb[0].mxu0
    %1842 = vmatprep.mubr.f32.mxu0 0.0
    %1843 = vmatmul.mubr.f32.gmra.mrb[0].mxu0 %v1454
    %v1844 = vpop.f32.mrb[0].mxu0
    %v1845 = vadd.f32 0.0, %v1844
    %v1846 = vpop.f32.mrb[0].mxu0
    %1847 = vmatprep.mubr.f32.mxu0 0.0
    %1848 = vmatmul.mubr.f32.gmra.mrb[0].mxu0 %v1455
    %v1849 = vpop.f32.mrb[0].mxu0
    %v1850 = vadd.f32 0.0, %v1849
    %v1851 = vpop.f32.mrb[0].mxu0
    %1852 = vmatprep.mubr.f32.mxu0 0.0
    %1853 = vmatmul.mubr.f32.gmra.mrb[0].mxu0 %v1456
    %v1854 = vpop.f32.mrb[0].mxu0
    %v1855 = vadd.f32 0.0, %v1854
    %v1856 = vpop.f32.mrb[0].mxu0
    %1857 = vmatprep.mubr.f32.mxu0 0.0
    %1858 = vmatmul.mubr.f32.gmra.mrb[0].mxu0 %v1457
    %v1859 = vpop.f32.mrb[0].mxu0
    %v1860 = vadd.f32 0.0, %v1859
    %v1861 = vpop.f32.mrb[0].mxu0
    %1862 = vmatprep.mubr.f32.mxu0 0.0
    %1863 = vmatmul.mubr.f32.gmra.mrb[0].mxu0 %v1458
    %v1864 = vpop.f32.mrb[0].mxu0
    %v1865 = vadd.f32 0.0, %v1864
    %v1866 = vpop.f32.mrb[0].mxu0
    %1867 = vmatprep.mubr.f32.mxu0 0.0
    %1868 = vmatmul.mubr.f32.gmra.mrb[0].mxu0 %v1459
    %v1869 = vpop.f32.mrb[0].mxu0
    %v1870 = vadd.f32 0.0, %v1869
    %v1871 = vpop.f32.mrb[0].mxu0
    %1872 = vmatprep.mubr.f32.mxu0 0.0
    %1873 = vmatmul.mubr.f32.gmra.mrb[0].mxu0 %v1460
    %v1874 = vpop.f32.mrb[0].mxu0
    %v1875 = vadd.f32 0.0, %v1874
    %v1876 = vpop.f32.mrb[0].mxu0
    %1877 = vmatprep.mubr.f32.mxu0 0.0
    %1878 = vmatmul.mubr.f32.gmra.mrb[0].mxu0 %v1461
    %v1879 = vpop.f32.mrb[0].mxu0
    %v1880 = vadd.f32 0.0, %v1879
    %v1881 = vpop.f32.mrb[0].mxu0
    %1882 = vmatprep.mubr.f32.mxu0 0.0
    %1883 = vmatmul.mubr.f32.gmra.mrb[0].mxu0 %v1462
    %v1884 = vpop.f32.mrb[0].mxu0
    %v1885 = vadd.f32 0.0, %v1884
    %v1886 = vpop.f32.mrb[0].mxu0
    %1887 = vmatprep.mubr.f32.mxu0 0.0
    %1888 = vmatmul.mubr.f32.gmra.mrb[0].mxu0 %v1463
    %v1889 = vpop.f32.mrb[0].mxu0
    %v1890 = vadd.f32 0.0, %v1889
    %v1891 = vpop.f32.mrb[0].mxu0
    %1892 = vmatprep.mubr.f32.mxu0 0.0
    %1893 = vmatmul.mubr.f32.gmra.mrb[0].mxu0 %v1464
    %v1894 = vpop.f32.mrb[0].mxu0
    %v1895 = vadd.f32 0.0, %v1894
    %v1896 = vpop.f32.mrb[0].mxu0
    %1897 = vmatprep.mubr.f32.mxu0 0.0
    %1898 = vmatmul.mubr.f32.gmra.mrb[0].mxu0 %v1465
    %v1899 = vpop.f32.mrb[0].mxu0
    %v1900 = vadd.f32 0.0, %v1899
    %v1901 = vpop.f32.mrb[0].mxu0
    %1902 = vmatprep.mubr.f32.mxu0 0.0
    %1903 = vmatmul.mubr.f32.gmra.mrb[0].mxu0 %v1466
    %v1904 = vpop.f32.mrb[0].mxu0
    %v1905 = vadd.f32 0.0, %v1904
    %v1906 = vpop.f32.mrb[0].mxu0
    %1907 = vmatprep.mubr.f32.mxu0 0.0
    %1908 = vmatmul.mubr.f32.gmra.mrb[0].mxu0 %v1467
    %v1909 = vpop.f32.mrb[0].mxu0
    %v1910 = vadd.f32 0.0, %v1909
    %v1911 = vpop.f32.mrb[0].mxu0
    %1912 = vmatprep.mubr.f32.mxu0 0.0
    %1913 = vmatmul.mubr.f32.gmra.mrb[0].mxu0 %v1468
    %v1914 = vpop.f32.mrb[0].mxu0
    %v1915 = vadd.f32 0.0, %v1914
    %v1916 = vpop.f32.mrb[0].mxu0
    %1917 = vmatprep.mubr.f32.mxu0 0.0
    %1918 = vmatmul.mubr.f32.gmra.mrb[0].mxu0 %v1469
    %v1919 = vpop.f32.mrb[0].mxu0
    %v1920 = vadd.f32 0.0, %v1919
    %v1921 = vpop.f32.mrb[0].mxu0
    %1922 = vmatprep.mubr.f32.mxu0 0.0
    %1923 = vmatmul.mubr.f32.gmra.mrb[0].mxu0 %v1470
    %v1924 = vpop.f32.mrb[0].mxu0
    %v1925 = vadd.f32 0.0, %v1924
    %v1926 = vpop.f32.mrb[0].mxu0
    %1927 = vmatprep.mubr.f32.mxu0 0.0
    %1928 = vmatmul.mubr.f32.gmra.mrb[0].mxu0 %v1471
    %v1929 = vpop.f32.mrb[0].mxu0
    %v1930 = vadd.f32 0.0, %v1929
    %v1931 = vpop.f32.mrb[0].mxu0
    %1932 = vmatprep.mubr.f32.mxu0 0.0
    %1933 = vmatmul.mubr.f32.gmra.mrb[0].mxu0 %v1472
    %v1934 = vpop.f32.mrb[0].mxu0
    %v1935 = vadd.f32 0.0, %v1934
    %v1936 = vpop.f32.mrb[0].mxu0
    %1937 = vmatprep.mubr.f32.mxu0 0.0
    %1938 = vmatmul.mubr.f32.gmra.mrb[0].mxu0 %v1473
    %v1939 = vpop.f32.mrb[0].mxu0
    %v1940 = vadd.f32 0.0, %v1939
    %v1941 = vpop.f32.mrb[0].mxu0
    %1942 = vmatprep.mubr.f32.mxu0 0.0
    %1943 = vmatmul.mubr.f32.gmra.mrb[0].mxu0 %v1474
    %v1944 = vpop.f32.mrb[0].mxu0
    %v1945 = vadd.f32 0.0, %v1944
    %v1946 = vpop.f32.mrb[0].mxu0
    %1947 = vmatprep.mubr.f32.mxu0 0.0
    %1948 = vmatmul.mubr.f32.gmra.mrb[0].mxu0 %v1475
    %v1949 = vpop.f32.mrb[0].mxu0
    %v1950 = vadd.f32 0.0, %v1949
    %v1951 = vpop.f32.mrb[0].mxu0
    %1952 = vmatprep.mubr.f32.mxu0 0.0
    %1953 = vmatmul.mubr.f32.gmra.mrb[0].mxu0 %v1476
    %v1954 = vpop.f32.mrb[0].mxu0
    %v1955 = vadd.f32 0.0, %v1954
    %v1956 = vpop.f32.mrb[0].mxu0
    %1957 = vmatprep.mubr.f32.mxu0 0.0
    %1958 = vmatmul.mubr.f32.gmra.mrb[0].mxu0 %v1477
    %v1959 = vpop.f32.mrb[0].mxu0
    %v1960 = vadd.f32 0.0, %v1959
    %v1961 = vpop.f32.mrb[0].mxu0
    %1962 = vmatprep.mubr.f32.mxu0 0.0
    %1963 = vmatmul.mubr.f32.gmra.mrb[0].mxu0 %v1478
    %v1964 = vpop.f32.mrb[0].mxu0
    %v1965 = vadd.f32 0.0, %v1964
    %v1966 = vpop.f32.mrb[0].mxu0
    %1967 = vmatprep.mubr.f32.mxu0 0.0
    %1968 = vmatmul.mubr.f32.gmra.mrb[0].mxu0 %v1479
    %v1969 = vpop.f32.mrb[0].mxu0
    %v1970 = vadd.f32 0.0, %v1969
    %v1971 = vpop.f32.mrb[0].mxu0
    %1972 = vmatprep.mubr.f32.mxu0 0.0
    %1973 = vmatmul.mubr.f32.gmra.mrb[0].mxu0 %v1480
    %v1974 = vpop.f32.mrb[0].mxu0
    %v1975 = vadd.f32 0.0, %v1974
    %v1976 = vpop.f32.mrb[0].mxu0
    %1977 = vmatprep.mubr.f32.mxu0 0.0
    %1978 = vmatmul.mubr.f32.gmra.mrb[0].mxu0 %v1481
    %v1979 = vpop.f32.mrb[0].mxu0
    %v1980 = vadd.f32 0.0, %v1979
    %v1981 = vpop.f32.mrb[0].mxu0
    %1982 = vmatprep.mubr.f32.mxu0 0.0
    %1983 = vmatmul.mubr.f32.gmra.mrb[0].mxu0 %v1482
    %v1984 = vpop.f32.mrb[0].mxu0
    %v1985 = vadd.f32 0.0, %v1984
    %v1986 = vpop.f32.mrb[0].mxu0
    %1987 = vmatprep.mubr.f32.mxu0 0.0
    %1988 = vmatmul.mubr.f32.gmra.mrb[0].mxu0 %v1483
    %v1989 = vpop.f32.mrb[0].mxu0
    %v1990 = vadd.f32 0.0, %v1989
    %v1991 = vpop.f32.mrb[0].mxu0
    %1992 = vmatprep.mubr.f32.mxu0 0.0
    %1993 = vmatmul.mubr.f32.gmra.mrb[0].mxu0 %v1484
    %v1994 = vpop.f32.mrb[0].mxu0
    %v1995 = vadd.f32 0.0, %v1994
    %v1996 = vpop.f32.mrb[0].mxu0
    %1997 = vmatprep.mubr.f32.mxu0 0.0
    %1998 = vmatmul.mubr.f32.gmra.mrb[0].mxu0 %v1485
    %v1999 = vpop.f32.mrb[0].mxu0
    %v2000 = vadd.f32 0.0, %v1999
    %v2001 = vpop.f32.mrb[0].mxu0
    %2002 = vmatprep.mubr.f32.mxu0 0.0
    %2003 = vmatmul.mubr.f32.gmra.mrb[0].mxu0 %v1486
    %v2004 = vpop.f32.mrb[0].mxu0
    %v2005 = vadd.f32 0.0, %v2004
    %v2006 = vpop.f32.mrb[0].mxu0
    %2007 = vmatprep.mubr.f32.mxu0 0.0
    %2008 = vmatmul.mubr.f32.gmra.mrb[0].mxu0 %v1487
    %v2009 = vpop.f32.mrb[0].mxu0
    %v2010 = vadd.f32 0.0, %v2009
    %v2011 = vpop.f32.mrb[0].mxu0
    %2012 = vmatprep.mubr.f32.mxu0 0.0
    %2013 = vmatmul.mubr.f32.gmra.mrb[0].mxu0 %v1488
    %v2014 = vpop.f32.mrb[0].mxu0
    %v2015 = vadd.f32 0.0, %v2014
    %v2016 = vpop.f32.mrb[0].mxu0
    %2017 = vmatprep.mubr.f32.mxu0 0.0
    %2018 = vmatmul.mubr.f32.gmra.mrb[0].mxu0 %v1489
    %v2019 = vpop.f32.mrb[0].mxu0
    %v2020 = vadd.f32 0.0, %v2019
    %v2021 = vpop.f32.mrb[0].mxu0
    %2022 = vmatprep.mubr.f32.mxu0 0.0
    %2023 = vmatmul.mubr.f32.gmra.mrb[0].mxu0 %v1490
    %v2024 = vpop.f32.mrb[0].mxu0
    %v2025 = vadd.f32 0.0, %v2024
    %v2026 = vpop.f32.mrb[0].mxu0
    %2027 = vmatprep.mubr.f32.mxu0 0.0
    %2028 = vmatmul.mubr.f32.gmra.mrb[0].mxu0 %v1491
    %v2029 = vpop.f32.mrb[0].mxu0
    %v2030 = vadd.f32 0.0, %v2029
    %v2031 = vpop.f32.mrb[0].mxu0
    %2032 = vmatprep.mubr.f32.mxu0 0.0
    %2033 = vmatmul.mubr.f32.gmra.mrb[0].mxu0 %v1492
    %v2034 = vpop.f32.mrb[0].mxu0
    %v2035 = vadd.f32 0.0, %v2034
    %v2036 = vpop.f32.mrb[0].mxu0
    %2037 = vmatprep.mubr.f32.mxu0 0.0
    %2038 = vmatmul.mubr.f32.gmra.mrb[0].mxu0 %v1493
    %v2039 = vpop.f32.mrb[0].mxu0
    %v2040 = vadd.f32 0.0, %v2039
    %v2041 = vpop.f32.mrb[0].mxu0
    %2042 = vmatprep.mubr.f32.mxu0 0.0
    %2043 = vmatmul.mubr.f32.gmra.mrb[0].mxu0 %v1494
    %v2044 = vpop.f32.mrb[0].mxu0
    %v2045 = vadd.f32 0.0, %v2044
    %v2046 = vpop.f32.mrb[0].mxu0
    %2047 = vmatprep.mubr.f32.mxu0 0.0
    %2048 = vmatmul.mubr.f32.gmra.mrb[0].mxu0 %v1495
    %v2049 = vpop.f32.mrb[0].mxu0
    %v2050 = vadd.f32 0.0, %v2049
    %v2051 = vpop.f32.mrb[0].mxu0
    %2052 = vmatprep.mubr.f32.mxu0 0.0
    %2053 = vmatmul.mubr.f32.gmra.mrb[0].mxu0 %v1496
    %v2054 = vpop.f32.mrb[0].mxu0
    %v2055 = vadd.f32 0.0, %v2054
    %v2056 = vpop.f32.mrb[0].mxu0
    %2057 = vmatprep.mubr.f32.mxu0 0.0
    %2058 = vmatmul.mubr.f32.gmra.mrb[0].mxu0 %v1497
    %v2059 = vpop.f32.mrb[0].mxu0
    %v2060 = vadd.f32 0.0, %v2059
    %v2061 = vpop.f32.mrb[0].mxu0
    %2062 = vmatprep.mubr.f32.mxu0 0.0
    %2063 = vmatmul.mubr.f32.gmra.mrb[0].mxu0 %v1498
    %v2064 = vpop.f32.mrb[0].mxu0
    %v2065 = vadd.f32 0.0, %v2064
    %v2066 = vpop.f32.mrb[0].mxu0
    %2067 = vmatprep.mubr.f32.mxu0 0.0
    %2068 = vmatmul.mubr.f32.gmra.mrb[0].mxu0 %v1499
    %v2069 = vpop.f32.mrb[0].mxu0
    %v2070 = vadd.f32 0.0, %v2069
    %v2071 = vpop.f32.mrb[0].mxu0
    %2072 = vmatprep.mubr.f32.mxu0 0.0
    %2073 = vmatmul.mubr.f32.gmra.mrb[0].mxu0 %v1500
    %v2074 = vpop.f32.mrb[0].mxu0
    %v2075 = vadd.f32 0.0, %v2074
    %v2076 = vpop.f32.mrb[0].mxu0
    %2077 = vmatprep.mubr.f32.mxu0 0.0
    %2078 = vmatmul.mubr.f32.gmra.mrb[0].mxu0 %v1501
    %v2079 = vpop.f32.mrb[0].mxu0
    %v2080 = vadd.f32 0.0, %v2079
    %v2081 = vpop.f32.mrb[0].mxu0
    %2082 = vmatprep.mubr.f32.mxu0 0.0
    %2083 = vmatmul.mubr.f32.gmra.mrb[0].mxu0 %v1502
    %v2084 = vpop.f32.mrb[0].mxu0
    %v2085 = vadd.f32 0.0, %v2084
    %v2086 = vpop.f32.mrb[0].mxu0
    %2087 = vmatprep.mubr.f32.mxu0 0.0
    %2088 = vmatmul.mubr.f32.gmra.mrb[0].mxu0 %v1503
    %v2089 = vpop.f32.mrb[0].mxu0
    %v2090 = vadd.f32 0.0, %v2089
    %v2091 = vpop.f32.mrb[0].mxu0
    %2092 = vmatprep.mubr.f32.mxu0 0.0
    %2093 = vmatmul.mubr.f32.gmra.mrb[0].mxu0 %v1504
    %v2094 = vpop.f32.mrb[0].mxu0
    %v2095 = vadd.f32 0.0, %v2094
    %v2096 = vpop.f32.mrb[0].mxu0
    %2097 = vmatprep.mubr.f32.mxu0 0.0
    %2098 = vmatmul.mubr.f32.gmra.mrb[0].mxu0 %v1505
    %v2099 = vpop.f32.mrb[0].mxu0
    %v2100 = vadd.f32 0.0, %v2099
    %v2101 = vpop.f32.mrb[0].mxu0
    %2102 = vmatprep.mubr.f32.mxu0 0.0
    %2103 = vmatmul.mubr.f32.gmra.mrb[0].mxu0 %v1506
    %v2104 = vpop.f32.mrb[0].mxu0
    %v2105 = vadd.f32 0.0, %v2104
    %v2106 = vpop.f32.mrb[0].mxu0
    %2107 = vmatprep.mubr.f32.mxu0 0.0
    %2108 = vmatmul.mubr.f32.gmra.mrb[0].mxu0 %v1507
    %v2109 = vpop.f32.mrb[0].mxu0
    %v2110 = vadd.f32 0.0, %v2109
    %v2111 = vpop.f32.mrb[0].mxu0
    %2112 = vmatprep.mubr.f32.mxu0 0.0
    %2113 = vmatmul.mubr.f32.gmra.mrb[0].mxu0 %v1508
    %v2114 = vpop.f32.mrb[0].mxu0
    %v2115 = vadd.f32 0.0, %v2114
    %v2116 = vpop.f32.mrb[0].mxu0
    %2117 = vmatprep.mubr.f32.mxu0 0.0
    %2118 = vmatmul.mubr.f32.gmra.mrb[0].mxu0 %v1509
    %v2119 = vpop.f32.mrb[0].mxu0
    %v2120 = vadd.f32 0.0, %v2119
    %v2121 = vpop.f32.mrb[0].mxu0
    %2122 = vmatprep.mubr.f32.mxu0 0.0
    %2123 = vmatmul.mubr.f32.gmra.mrb[0].mxu0 %v1510
    %v2124 = vpop.f32.mrb[0].mxu0
    %v2125 = vadd.f32 0.0, %v2124
    %v2126 = vpop.f32.mrb[0].mxu0
    %2127 = vmatprep.mubr.f32.mxu0 0.0
    %2128 = vmatmul.mubr.f32.gmra.mrb[0].mxu0 %v1511
    %v2129 = vpop.f32.mrb[0].mxu0
    %v2130 = vadd.f32 0.0, %v2129
    %v2131 = vpop.f32.mrb[0].mxu0
    %2132 = vmatprep.mubr.f32.mxu0 0.0
    %2133 = vmatmul.mubr.f32.gmra.mrb[0].mxu0 %v1512
    %v2134 = vpop.f32.mrb[0].mxu0
    %v2135 = vadd.f32 0.0, %v2134
    %v2136 = vpop.f32.mrb[0].mxu0
    %2137 = vmatprep.mubr.f32.mxu0 0.0
    %2138 = vmatmul.mubr.f32.gmra.mrb[0].mxu0 %v1513
    %v2139 = vpop.f32.mrb[0].mxu0
    %v2140 = vadd.f32 0.0, %v2139
    %v2141 = vpop.f32.mrb[0].mxu0
    %2142 = vmatprep.mubr.f32.mxu0 0.0
    %2143 = vmatmul.mubr.f32.gmra.mrb[0].mxu0 %v1514
    %v2144 = vpop.f32.mrb[0].mxu0
    %v2145 = vadd.f32 0.0, %v2144
    %v2146 = vpop.f32.mrb[0].mxu0
    %2147 = vmatprep.mubr.f32.mxu0 0.0
    %2148 = vmatmul.mubr.f32.gmra.mrb[0].mxu0 %v1515
    %v2149 = vpop.f32.mrb[0].mxu0
    %v2150 = vadd.f32 0.0, %v2149
    %v2151 = vpop.f32.mrb[0].mxu0
    %2152 = vmatprep.mubr.f32.mxu0 0.0
    %2153 = vmatmul.mubr.f32.gmra.mrb[0].mxu0 %v1516
    %v2154 = vpop.f32.mrb[0].mxu0
    %v2155 = vadd.f32 0.0, %v2154
    %v2156 = vpop.f32.mrb[0].mxu0
    %2157 = vmatprep.mubr.f32.mxu0 0.0
    %2158 = vmatmul.mubr.f32.gmra.mrb[0].mxu0 %v1517
    %v2159 = vpop.f32.mrb[0].mxu0
    %v2160 = vadd.f32 0.0, %v2159
    %v2161 = vpop.f32.mrb[0].mxu0
    %2162 = vmatprep.mubr.f32.mxu0 0.0
    %2163 = vmatmul.mubr.f32.gmra.mrb[0].mxu0 %v1518
    %v2164 = vpop.f32.mrb[0].mxu0
    %v2165 = vadd.f32 0.0, %v2164
    %v2166 = vpop.f32.mrb[0].mxu0
    %2167 = vmatprep.mubr.f32.mxu0 0.0
    %2168 = vmatmul.mubr.f32.gmra.mrb[0].mxu0 %v1519
    %v2169 = vpop.f32.mrb[0].mxu0
    %v2170 = vadd.f32 0.0, %v2169
    %v2171 = vpop.f32.mrb[0].mxu0
    %2172 = vmatprep.mubr.f32.mxu0 0.0
    %2173 = vmatmul.mubr.f32.gmra.mrb[0].mxu0 %v1520
    %v2174 = vpop.f32.mrb[0].mxu0
    %v2175 = vadd.f32 0.0, %v2174
    %v2176 = vpop.f32.mrb[0].mxu0
    %2177 = vmatprep.mubr.f32.mxu0 0.0
    %2178 = vmatmul.mubr.f32.gmra.mrb[0].mxu0 %v1521
    %v2179 = vpop.f32.mrb[0].mxu0
    %v2180 = vadd.f32 0.0, %v2179
    %v2181 = vpop.f32.mrb[0].mxu0
    %2182 = vmatprep.mubr.f32.mxu0 0.0
    %2183 = vmatmul.mubr.f32.gmra.mrb[0].mxu0 %v1522
    %v2184 = vpop.f32.mrb[0].mxu0
    %v2185 = vadd.f32 0.0, %v2184
    %v2186 = vpop.f32.mrb[0].mxu0
    %2187 = vmatprep.mubr.f32.mxu0 0.0
    %2188 = vmatmul.mubr.f32.gmra.mrb[0].mxu0 %v1523
    %v2189 = vpop.f32.mrb[0].mxu0
    %v2190 = vadd.f32 0.0, %v2189
    %v2191 = vpop.f32.mrb[0].mxu0
    %2192 = vmatprep.mubr.f32.mxu0 0.0
    %2193 = vmatmul.mubr.f32.gmra.mrb[0].mxu0 %v1524
    %v2194 = vpop.f32.mrb[0].mxu0
    %v2195 = vadd.f32 0.0, %v2194
    %v2196 = vpop.f32.mrb[0].mxu0
    %2197 = vmatprep.mubr.f32.mxu0 0.0
    %2198 = vmatmul.mubr.f32.gmra.mrb[0].mxu0 %v1525
    %v2199 = vpop.f32.mrb[0].mxu0
    %v2200 = vadd.f32 0.0, %v2199
    %v2201 = vpop.f32.mrb[0].mxu0
    %2202 = vmatprep.mubr.f32.mxu0 0.0
    %2203 = vmatmul.mubr.f32.gmra.mrb[0].mxu0 %v1526
    %v2204 = vpop.f32.mrb[0].mxu0
    %v2205 = vadd.f32 0.0, %v2204
    %v2206 = vpop.f32.mrb[0].mxu0
    %2207 = vmatprep.mubr.f32.mxu0 0.0
    %2208 = vmatmul.mubr.f32.gmra.mrb[0].mxu0 %v1527
    %v2209 = vpop.f32.mrb[0].mxu0
    %v2210 = vadd.f32 0.0, %v2209
    %v2211 = vpop.f32.mrb[0].mxu0
    %2212 = vmatprep.mubr.f32.mxu0 0.0
    %2213 = vmatmul.mubr.f32.gmra.mrb[0].mxu0 %v1528
    %v2214 = vpop.f32.mrb[0].mxu0
    %v2215 = vadd.f32 0.0, %v2214
    %v2216 = vpop.f32.mrb[0].mxu0
    %2217 = vmatprep.mubr.f32.mxu0 0.0
    %2218 = vmatmul.mubr.f32.gmra.mrb[0].mxu0 %v1529
    %v2219 = vpop.f32.mrb[0].mxu0
    %v2220 = vadd.f32 0.0, %v2219
    %v2221 = vpop.f32.mrb[0].mxu0
    %2222 = vmatprep.mubr.f32.mxu0 0.0
    %2223 = vmatmul.mubr.f32.gmra.mrb[0].mxu0 %v1530
    %v2224 = vpop.f32.mrb[0].mxu0
    %v2225 = vadd.f32 0.0, %v2224
    %v2226 = vpop.f32.mrb[0].mxu0
    %2227 = vmatprep.mubr.f32.mxu0 0.0
    %2228 = vmatmul.mubr.f32.gmra.mrb[0].mxu0 %v1531
    %v2229 = vpop.f32.mrb[0].mxu0
    %v2230 = vadd.f32 0.0, %v2229
    %v2231 = vpop.f32.mrb[0].mxu0
    %2232 = vmatprep.mubr.f32.mxu0 0.0
    %2233 = vmatmul.mubr.f32.gmra.mrb[0].mxu0 %v1532
    %v2234 = vpop.f32.mrb[0].mxu0
    %v2235 = vadd.f32 0.0, %v2234
    %v2236 = vpop.f32.mrb[0].mxu0
    %2237 = vmatprep.mubr.f32.mxu0 0.0
    %2238 = vmatmul.mubr.f32.gmra.mrb[0].mxu0 %v1533
    %v2239 = vpop.f32.mrb[0].mxu0
    %v2240 = vadd.f32 0.0, %v2239
    %v2241 = vpop.f32.mrb[0].mxu0
    %2242 = vmatprep.mubr.f32.mxu0 0.0
    %2243 = vmatmul.mubr.f32.gmra.mrb[0].mxu0 %v1534
    %v2244 = vpop.f32.mrb[0].mxu0
    %v2245 = vadd.f32 0.0, %v2244
    %v2246 = vpop.f32.mrb[0].mxu0
    %2247 = vmatprep.mubr.f32.mxu0 0.0
    %2248 = vmatmul.mubr.f32.gmra.mrb[0].mxu0 %v1535
    %v2249 = vpop.f32.mrb[0].mxu0
    %v2250 = vadd.f32 0.0, %v2249
    %v2251 = vpop.f32.mrb[0].mxu0
    %2252 = vmatprep.mubr.f32.mxu0 0.0
    %2253 = vmatmul.mubr.f32.gmra.mrb[0].mxu0 %v1536
    %v2254 = vpop.f32.mrb[0].mxu0
    %v2255 = vadd.f32 0.0, %v2254
    %v2256 = vpop.f32.mrb[0].mxu0
    %2257 = vmatprep.mubr.f32.mxu0 0.0
    %2258 = vmatmul.mubr.f32.gmra.mrb[0].mxu0 %v1537
    %v2259 = vpop.f32.mrb[0].mxu0
    %v2260 = vadd.f32 0.0, %v2259
    %v2261 = vpop.f32.mrb[0].mxu0
    %2262 = vmatprep.mubr.f32.mxu0 0.0
    %2263 = vmatmul.mubr.f32.gmra.mrb[0].mxu0 %v1538
    %v2264 = vpop.f32.mrb[0].mxu0
    %v2265 = vadd.f32 0.0, %v2264
    %v2266 = vpop.f32.mrb[0].mxu0
    %2267 = vmatprep.mubr.f32.mxu0 0.0
    %2268 = vmatmul.mubr.f32.gmra.mrb[0].mxu0 %v1539
    %v2269 = vpop.f32.mrb[0].mxu0
    %v2270 = vadd.f32 0.0, %v2269
    %v2271 = vpop.f32.mrb[0].mxu0
    %2272 = vmatprep.mubr.f32.mxu0 0.0
    %2273 = vmatmul.mubr.f32.gmra.mrb[0].mxu0 %v1540
    %v2274 = vpop.f32.mrb[0].mxu0
    %v2275 = vadd.f32 0.0, %v2274
    %v2276 = vpop.f32.mrb[0].mxu0
    %2277 = vmatprep.mubr.f32.mxu0 0.0
    %2278 = vmatmul.mubr.f32.gmra.mrb[0].mxu0 %v1541
    %v2279 = vpop.f32.mrb[0].mxu0
    %v2280 = vadd.f32 0.0, %v2279
    %v2281 = vpop.f32.mrb[0].mxu0
    %2282 = vmatprep.mubr.f32.mxu0 0.0
    %2283 = vmatmul.mubr.f32.gmra.mrb[0].mxu0 %v1542
    %v2284 = vpop.f32.mrb[0].mxu0
    %v2285 = vadd.f32 0.0, %v2284
    %v2286 = vpop.f32.mrb[0].mxu0
    %2287 = vmatprep.mubr.f32.mxu0 0.0
    %2288 = vmatmul.mubr.f32.gmra.mrb[0].mxu0 %v1543
    %v2289 = vpop.f32.mrb[0].mxu0
    %v2290 = vadd.f32 0.0, %v2289
    %v2291 = vpop.f32.mrb[0].mxu0
    %2292 = vmatprep.mubr.f32.mxu0 0.0
    %2293 = vmatmul.mubr.f32.gmra.mrb[0].mxu0 %v1544
    %v2294 = vpop.f32.mrb[0].mxu0
    %v2295 = vadd.f32 0.0, %v2294
    %v2296 = vpop.f32.mrb[0].mxu0
    %2297 = vmatprep.mubr.f32.mxu0 0.0
    %2298 = vmatmul.mubr.f32.gmra.mrb[0].mxu0 %v1545
    %v2299 = vpop.f32.mrb[0].mxu0
    %v2300 = vadd.f32 0.0, %v2299
    %v2301 = vpop.f32.mrb[0].mxu0
    %2302 = vmatprep.mubr.f32.mxu0 0.0
    %2303 = vmatmul.mubr.f32.gmra.mrb[0].mxu0 %v1546
    %v2304 = vpop.f32.mrb[0].mxu0
    %v2305 = vadd.f32 0.0, %v2304
    %v2306 = vpop.f32.mrb[0].mxu0
    %2307 = vmatprep.mubr.f32.mxu0 0.0
    %2308 = vmatmul.mubr.f32.gmra.mrb[0].mxu0 %v1547
    %v2309 = vpop.f32.mrb[0].mxu0
    %v2310 = vadd.f32 0.0, %v2309
    %v2311 = vpop.f32.mrb[0].mxu0
    %2312 = vmatprep.mubr.f32.mxu0 0.0
    %2313 = vmatmul.mubr.f32.gmra.mrb[0].mxu0 %v1548
    %v2314 = vpop.f32.mrb[0].mxu0
    %v2315 = vadd.f32 0.0, %v2314
    %v2316 = vpop.f32.mrb[0].mxu0
    %2317 = vmatprep.mubr.f32.mxu0 0.0
    %2318 = vmatmul.mubr.f32.gmra.mrb[0].mxu0 %v1549
    %v2319 = vpop.f32.mrb[0].mxu0
    %v2320 = vadd.f32 0.0, %v2319
    %v2321 = vpop.f32.mrb[0].mxu0
    %2322 = vmatprep.mubr.f32.mxu0 0.0
    %2323 = vmatmul.mubr.f32.gmra.mrb[0].mxu0 %v1550
    %v2324 = vpop.f32.mrb[0].mxu0
    %v2325 = vadd.f32 0.0, %v2324
    %v2326 = vpop.f32.mrb[0].mxu0
    %2327 = vmatprep.mubr.f32.mxu0 0.0
    %2328 = vmatmul.mubr.f32.gmra.mrb[0].mxu0 %v1551
    %v2329 = vpop.f32.mrb[0].mxu0
    %v2330 = vadd.f32 0.0, %v2329
    %v2331 = vpop.f32.mrb[0].mxu0
    %2332 = vmatprep.mubr.f32.mxu0 0.0
    %2333 = vmatmul.mubr.f32.gmra.mrb[0].mxu0 %v1552
    %v2334 = vpop.f32.mrb[0].mxu0
    %v2335 = vadd.f32 0.0, %v2334
    %v2336 = vpop.f32.mrb[0].mxu0
    %2337 = vmatprep.mubr.f32.mxu0 0.0
    %2338 = vmatmul.mubr.f32.gmra.mrb[0].mxu0 %v1553
    %v2339 = vpop.f32.mrb[0].mxu0
    %v2340 = vadd.f32 0.0, %v2339
    %v2341 = vpop.f32.mrb[0].mxu0
    %2342 = vmatprep.mubr.f32.mxu0 0.0
    %2343 = vmatmul.mubr.f32.gmra.mrb[0].mxu0 %v1554
    %v2344 = vpop.f32.mrb[0].mxu0
    %v2345 = vadd.f32 0.0, %v2344
    %v2346 = vpop.f32.mrb[0].mxu0
    %2347 = vmatprep.mubr.f32.mxu0 0.0
    %2348 = vmatmul.mubr.f32.gmra.mrb[0].mxu0 %v1555
    %v2349 = vpop.f32.mrb[0].mxu0
    %v2350 = vadd.f32 0.0, %v2349
    %v2351 = vpop.f32.mrb[0].mxu0
    %2352 = vmatprep.mubr.f32.mxu0 0.0
    %2353 = vmatmul.mubr.f32.gmra.mrb[0].mxu0 %v1556
    %v2354 = vpop.f32.mrb[0].mxu0
    %v2355 = vadd.f32 0.0, %v2354
    %v2356 = vpop.f32.mrb[0].mxu0
    %2357 = vmatprep.mubr.f32.mxu0 0.0
    %2358 = vmatmul.mubr.f32.gmra.mrb[0].mxu0 %v1557
    %v2359 = vpop.f32.mrb[0].mxu0
    %v2360 = vadd.f32 0.0, %v2359
    %v2361 = vpop.f32.mrb[0].mxu0
    %2362 = vmatprep.mubr.f32.mxu0 0.0
    %2363 = vmatmul.mubr.f32.gmra.mrb[0].mxu0 %v1558
    %v2364 = vpop.f32.mrb[0].mxu0
    %v2365 = vadd.f32 0.0, %v2364
    %v2366 = vpop.f32.mrb[0].mxu0
    %2367 = vmatprep.mubr.f32.mxu0 0.0
    %2368 = vmatmul.mubr.f32.gmra.mrb[0].mxu0 %v1559
    %v2369 = vpop.f32.mrb[0].mxu0
    %v2370 = vadd.f32 0.0, %v2369
    %v2371 = vpop.f32.mrb[0].mxu0
    %2372 = vmatprep.mubr.f32.mxu0 0.0
    %2373 = vmatmul.mubr.f32.gmra.mrb[0].mxu0 %v1560
    %v2374 = vpop.f32.mrb[0].mxu0
    %v2375 = vadd.f32 0.0, %v2374
    %v2376 = vpop.f32.mrb[0].mxu0
    %2377 = vmatprep.mubr.f32.mxu0 0.0
    %2378 = vmatmul.mubr.f32.gmra.mrb[0].mxu0 %v1561
    %v2379 = vpop.f32.mrb[0].mxu0
    %v2380 = vadd.f32 0.0, %v2379
    %v2381 = vpop.f32.mrb[0].mxu0
    %2382 = vmatprep.mubr.f32.mxu0 0.0
    %2383 = vmatmul.mubr.f32.gmra.mrb[0].mxu0 %v1562
    %v2384 = vpop.f32.mrb[0].mxu0
    %v2385 = vadd.f32 0.0, %v2384
    %v2386 = vpop.f32.mrb[0].mxu0
    %2387 = vmatprep.mubr.f32.mxu0 0.0
    %2388 = vmatmul.mubr.f32.gmra.mrb[0].mxu0 %v1563
    %v2389 = vpop.f32.mrb[0].mxu0
    %v2390 = vadd.f32 0.0, %v2389
    %v2391 = vpop.f32.mrb[0].mxu0
    %2392 = vmatprep.mubr.f32.mxu0 0.0
    %2393 = vmatmul.mubr.f32.gmra.mrb[0].mxu0 %v1564
    %v2394 = vpop.f32.mrb[0].mxu0
    %v2395 = vadd.f32 0.0, %v2394
    %v2396 = vpop.f32.mrb[0].mxu0
    %2397 = vmatprep.mubr.f32.mxu0 0.0
    %2398 = vmatmul.mubr.f32.gmra.mrb[0].mxu0 %v1565
    %v2399 = vpop.f32.mrb[0].mxu0
    %v2400 = vadd.f32 0.0, %v2399
    %v2401 = vpop.f32.mrb[0].mxu0
    %2402 = vmatprep.mubr.f32.mxu0 0.0
    %2403 = vmatmul.mubr.f32.gmra.mrb[0].mxu0 %v1566
    %v2404 = vpop.f32.mrb[0].mxu0
    %v2405 = vadd.f32 0.0, %v2404
    %v2406 = vpop.f32.mrb[0].mxu0
    %2407 = vmatprep.mubr.f32.mxu0 0.0
    %2408 = vmatmul.mubr.f32.gmra.mrb[0].mxu0 %v1567
    %v2409 = vpop.f32.mrb[0].mxu0
    %v2410 = vadd.f32 0.0, %v2409
    %v2411 = vpop.f32.mrb[0].mxu0
    %2412 = vmatprep.mubr.f32.mxu0 0.0
    %2413 = vmatmul.mubr.f32.gmra.mrb[0].mxu0 %v1568
    %v2414 = vpop.f32.mrb[0].mxu0
    %v2415 = vadd.f32 0.0, %v2414
    %v2416 = vpop.f32.mrb[0].mxu0
    %2417 = vmatprep.mubr.f32.mxu0 0.0
    %2418 = vmatmul.mubr.f32.gmra.mrb[0].mxu0 %v1569
    %v2419 = vpop.f32.mrb[0].mxu0
    %v2420 = vadd.f32 0.0, %v2419
    %v2421 = vpop.f32.mrb[0].mxu0
    %2422 = vmatprep.mubr.f32.mxu0 0.0
    %2423 = vmatmul.mubr.f32.gmra.mrb[0].mxu0 %v1570
    %v2424 = vpop.f32.mrb[0].mxu0
    %v2425 = vadd.f32 0.0, %v2424
    %v2426 = vpop.f32.mrb[0].mxu0
    %2427 = vmatprep.mubr.f32.mxu0 0.0
    %2428 = vmatmul.mubr.f32.gmra.mrb[0].mxu0 %v1571
    %v2429 = vpop.f32.mrb[0].mxu0
    %v2430 = vadd.f32 0.0, %v2429
    %v2431 = vpop.f32.mrb[0].mxu0
    %2432 = vmatprep.mubr.f32.mxu0 0.0
    %2433 = vmatmul.mubr.f32.gmra.mrb[0].mxu0 %v1572
    %v2434 = vpop.f32.mrb[0].mxu0
    %v2435 = vadd.f32 0.0, %v2434
    %v2436 = vpop.f32.mrb[0].mxu0
    %2437 = vmatprep.mubr.f32.mxu0 0.0
    %2438 = vmatmul.mubr.f32.gmra.mrb[0].mxu0 %v1573
    %v2439 = vpop.f32.mrb[0].mxu0
    %v2440 = vadd.f32 0.0, %v2439
    %v2441 = vpop.f32.mrb[0].mxu0
    %2442 = vmatprep.mubr.f32.mxu0 0.0
    %2443 = vmatmul.mubr.f32.gmra.mrb[0].mxu0 %v1574
    %v2444 = vpop.f32.mrb[0].mxu0
    %v2445 = vadd.f32 0.0, %v2444
    %v2446 = vpop.f32.mrb[0].mxu0
    %2447 = vmatprep.mubr.f32.mxu0 0.0
    %2448 = vmatmul.mubr.f32.gmra.mrb[0].mxu0 %v1575
    %v2449 = vpop.f32.mrb[0].mxu0
    %v2450 = vadd.f32 0.0, %v2449
    %v2451 = vpop.f32.mrb[0].mxu0
    %2452 = vmatprep.mubr.f32.mxu0 0.0
    %2453 = vmatmul.mubr.f32.gmra.mrb[0].mxu0 %v1576
    %v2454 = vpop.f32.mrb[0].mxu0
    %v2455 = vadd.f32 0.0, %v2454
    %v2456 = vpop.f32.mrb[0].mxu0
    %2457 = vmatprep.mubr.f32.mxu0 0.0
    %2458 = vmatmul.mubr.f32.gmra.mrb[0].mxu0 %v1577
    %v2459 = vpop.f32.mrb[0].mxu0
    %v2460 = vadd.f32 0.0, %v2459
    %v2461 = vpop.f32.mrb[0].mxu0
    %2462 = vmatprep.mubr.f32.mxu0 0.0
    %2463 = vmatmul.mubr.f32.gmra.mrb[0].mxu0 %v1578
    %v2464 = vpop.f32.mrb[0].mxu0
    %v2465 = vadd.f32 0.0, %v2464
    %v2466 = vpop.f32.mrb[0].mxu0
    %2467 = vmatprep.mubr.f32.mxu0 0.0
    %2468 = vmatmul.mubr.f32.gmra.mrb[0].mxu0 %v1579
    %v2469 = vpop.f32.mrb[0].mxu0
    %v2470 = vadd.f32 0.0, %v2469
    %v2471 = vpop.f32.mrb[0].mxu0
    %2472 = vmatprep.mubr.f32.mxu0 0.0
    %2473 = vmatmul.mubr.f32.gmra.mrb[0].mxu0 %v1580
    %v2474 = vpop.f32.mrb[0].mxu0
    %v2475 = vadd.f32 0.0, %v2474
    %v2476 = vpop.f32.mrb[0].mxu0
    %2477 = vmatprep.mubr.f32.mxu0 0.0
    %2478 = vmatmul.mubr.f32.gmra.mrb[0].mxu0 %v1581
    %v2479 = vpop.f32.mrb[0].mxu0
    %v2480 = vadd.f32 0.0, %v2479
    %v2481 = vpop.f32.mrb[0].mxu0
    %2482 = vmatprep.mubr.f32.mxu0 0.0
    %2483 = vmatmul.mubr.f32.gmra.mrb[0].mxu0 %v1582
    %v2484 = vpop.f32.mrb[0].mxu0
    %v2485 = vadd.f32 0.0, %v2484
    %v2486 = vpop.f32.mrb[0].mxu0
    %2487 = vmatprep.mubr.f32.mxu0 0.0
    %2488 = vmatmul.mubr.f32.gmra.mrb[0].mxu0 %v1583
    %v2489 = vpop.f32.mrb[0].mxu0
    %v2490 = vadd.f32 0.0, %v2489
    %v2491 = vpop.f32.mrb[0].mxu0
    %2492 = vmatprep.mubr.f32.mxu0 0.0
    %2493 = vmatmul.mubr.f32.gmra.mrb[0].mxu0 %v1584
    %v2494 = vpop.f32.mrb[0].mxu0
    %v2495 = vadd.f32 0.0, %v2494
    %v2496 = vpop.f32.mrb[0].mxu0
    %2497 = vmatprep.mubr.f32.mxu0 0.0
    %2498 = vmatmul.mubr.f32.gmra.mrb[0].mxu0 %v1585
    %v2499 = vpop.f32.mrb[0].mxu0
    %v2500 = vadd.f32 0.0, %v2499
    %v2501 = vpop.f32.mrb[0].mxu0
    %2502 = vmatprep.mubr.f32.mxu0 0.0
    %2503 = vmatmul.mubr.f32.gmra.mrb[0].mxu0 %v1586
    %v2504 = vpop.f32.mrb[0].mxu0
    %v2505 = vadd.f32 0.0, %v2504
    %v2506 = vpop.f32.mrb[0].mxu0
    %2507 = vmatprep.mubr.f32.mxu0 0.0
    %2508 = vmatmul.mubr.f32.gmra.mrb[0].mxu0 %v1587
    %v2509 = vpop.f32.mrb[0].mxu0
    %v2510 = vadd.f32 0.0, %v2509
    %v2511 = vpop.f32.mrb[0].mxu0
    %2512 = vmatprep.mubr.f32.mxu0 0.0
    %2513 = vmatmul.mubr.f32.gmra.mrb[0].mxu0 %v1588
    %v2514 = vpop.f32.mrb[0].mxu0
    %v2515 = vadd.f32 0.0, %v2514
    %v2516 = vpop.f32.mrb[0].mxu0
    %2517 = vmatprep.mubr.f32.mxu0 0.0
    %2518 = vmatmul.mubr.f32.gmra.mrb[0].mxu0 %v1589
    %v2519 = vpop.f32.mrb[0].mxu0
    %v2520 = vadd.f32 0.0, %v2519
    %v2521 = vpop.f32.mrb[0].mxu0
    %2522 = vmatprep.mubr.f32.mxu0 0.0
    %2523 = vmatmul.mubr.f32.gmra.mrb[0].mxu0 %v1590
    %v2524 = vpop.f32.mrb[0].mxu0
    %v2525 = vadd.f32 0.0, %v2524
    %v2526 = vpop.f32.mrb[0].mxu0
    %2527 = vmatprep.mubr.f32.mxu0 0.0
    %2528 = vmatmul.mubr.f32.gmra.mrb[0].mxu0 %v1591
    %v2529 = vpop.f32.mrb[0].mxu0
    %v2530 = vadd.f32 0.0, %v2529
    %v2531 = vpop.f32.mrb[0].mxu0
    %2532 = vmatprep.mubr.f32.mxu0 0.0
    %2533 = vmatmul.mubr.f32.gmra.mrb[0].mxu0 %v1592
    %v2534 = vpop.f32.mrb[0].mxu0
    %v2535 = vadd.f32 0.0, %v2534
    %v2536 = vpop.f32.mrb[0].mxu0
    %2537 = vmatprep.mubr.f32.mxu0 0.0
    %2538 = vmatmul.mubr.f32.gmra.mrb[0].mxu0 %v1593
    %v2539 = vpop.f32.mrb[0].mxu0
    %v2540 = vadd.f32 0.0, %v2539
    %v2541 = vpop.f32.mrb[0].mxu0
    %2542 = vmatprep.mubr.f32.mxu0 0.0
    %2543 = vmatmul.mubr.f32.gmra.mrb[0].mxu0 %v1594
    %v2544 = vpop.f32.mrb[0].mxu0
    %v2545 = vadd.f32 0.0, %v2544
    %v2546 = vpop.f32.mrb[0].mxu0
    %2547 = vmatprep.mubr.f32.mxu0 0.0
    %2548 = vmatmul.mubr.f32.gmra.mrb[0].mxu0 %v1595
    %v2549 = vpop.f32.mrb[0].mxu0
    %v2550 = vadd.f32 0.0, %v2549
    %v2551 = vpop.f32.mrb[0].mxu0
    %2552 = vmatprep.mubr.f32.mxu0 0.0
    %2553 = vmatmul.mubr.f32.gmra.mrb[0].mxu0 %v1596
    %v2554 = vpop.f32.mrb[0].mxu0
    %v2555 = vadd.f32 0.0, %v2554
    %v2556 = vpop.f32.mrb[0].mxu0
    %2557 = vmatprep.mubr.f32.mxu0 0.0
    %2558 = vmatmul.mubr.f32.gmra.mrb[0].mxu0 %v1597
    %v2559 = vpop.f32.mrb[0].mxu0
    %v2560 = vadd.f32 0.0, %v2559
    %v2561 = vpop.f32.mrb[0].mxu0
    %2562 = vmatprep.mubr.f32.mxu0 0.0
    %2563 = vmatmul.mubr.f32.gmra.mrb[0].mxu0 %v1598
    %v2564 = vpop.f32.mrb[0].mxu0
    %v2565 = vadd.f32 0.0, %v2564
    %v2566 = vpop.f32.mrb[0].mxu0
    %2567 = vmatprep.mubr.f32.mxu0 0.0
    %2568 = vmatmul.mubr.f32.gmra.mrb[0].mxu0 %v1599
    %v2569 = vpop.f32.mrb[0].mxu0
    %v2570 = vadd.f32 0.0, %v2569
    %v2571 = vpop.f32.mrb[0].mxu0
    %2572 = vmatprep.mubr.f32.mxu0 0.0
    %2573 = vmatmul.mubr.f32.gmra.mrb[0].mxu0 %v1600
    %v2574 = vpop.f32.mrb[0].mxu0
    %v2575 = vadd.f32 0.0, %v2574
    %v2576 = vpop.f32.mrb[0].mxu0
    %2577 = vmatprep.mubr.f32.mxu0 0.0
    %2578 = vmatmul.mubr.f32.gmra.mrb[0].mxu0 %v1601
    %v2579 = vpop.f32.mrb[0].mxu0
    %v2580 = vadd.f32 0.0, %v2579
    %v2581 = vpop.f32.mrb[0].mxu0
    %2582 = vmatprep.mubr.f32.mxu0 0.0
    %2583 = vmatmul.mubr.f32.gmra.mrb[0].mxu0 %v1602
    %v2584 = vpop.f32.mrb[0].mxu0
    %v2585 = vadd.f32 0.0, %v2584
    %v2586 = vpop.f32.mrb[0].mxu0
    %2587 = vmatprep.mubr.f32.mxu0 0.0
    %2588 = vmatmul.mubr.f32.gmra.mrb[0].mxu0 %v1603
    %v2589 = vpop.f32.mrb[0].mxu0
    %v2590 = vadd.f32 0.0, %v2589
    %v2591 = vpop.f32.mrb[0].mxu0
    %2592 = vmatprep.mubr.f32.mxu0 0.0
    %2593 = vmatmul.mubr.f32.gmra.mrb[0].mxu0 %v1604
    %v2594 = vpop.f32.mrb[0].mxu0
    %v2595 = vadd.f32 0.0, %v2594
    %v2596 = vpop.f32.mrb[0].mxu0
    %2597 = vmatprep.mubr.f32.mxu0 0.0
    %2598 = vmatmul.mubr.f32.gmra.mrb[0].mxu0 %v1605
    %v2599 = vpop.f32.mrb[0].mxu0
    %v2600 = vadd.f32 0.0, %v2599
    %v2601 = vpop.f32.mrb[0].mxu0
    %2602 = vmatprep.mubr.f32.mxu0 0.0
    %2603 = vmatmul.mubr.f32.gmra.mrb[0].mxu0 %v1606
    %v2604 = vpop.f32.mrb[0].mxu0
    %v2605 = vadd.f32 0.0, %v2604
    %v2606 = vpop.f32.mrb[0].mxu0
    %2607 = vmatprep.mubr.f32.mxu0 0.0
    %2608 = vmatmul.mubr.f32.gmra.mrb[0].mxu0 %v1607
    %v2609 = vpop.f32.mrb[0].mxu0
    %v2610 = vadd.f32 0.0, %v2609
    %v2611 = vpop.f32.mrb[0].mxu0
    %2612 = vmatprep.mubr.f32.mxu0 0.0
    %2613 = vmatmul.mubr.f32.gmra.mrb[0].mxu0 %v1608
    %v2614 = vpop.f32.mrb[0].mxu0
    %v2615 = vadd.f32 0.0, %v2614
    %v2616 = vpop.f32.mrb[0].mxu0
    %2617 = vmatprep.mubr.f32.mxu0 0.0
    %2618 = vmatmul.mubr.f32.gmra.mrb[0].mxu0 %v1609
    %v2619 = vpop.f32.mrb[0].mxu0
    %v2620 = vadd.f32 0.0, %v2619
    %v2621 = vpop.f32.mrb[0].mxu0
    %2622 = vmatprep.mubr.f32.mxu0 0.0
    %2623 = vmatmul.mubr.f32.gmra.mrb[0].mxu0 %v1610
    %v2624 = vpop.f32.mrb[0].mxu0
    %v2625 = vadd.f32 0.0, %v2624
    %v2626 = vpop.f32.mrb[0].mxu0
    %2627 = vmatprep.mubr.f32.mxu0 0.0
    %2628 = vmatmul.mubr.f32.gmra.mrb[0].mxu0 %v1611
    %v2629 = vpop.f32.mrb[0].mxu0
    %v2630 = vadd.f32 0.0, %v2629
    %v2631 = vpop.f32.mrb[0].mxu0
    %2632 = vmatprep.mubr.f32.mxu0 0.0
    %2633 = vmatmul.mubr.f32.gmra.mrb[0].mxu0 %v1612
    %v2634 = vpop.f32.mrb[0].mxu0
    %v2635 = vadd.f32 0.0, %v2634
    %v2636 = vpop.f32.mrb[0].mxu0
    %2637 = vmatprep.mubr.f32.mxu0 0.0
    %2638 = vmatmul.mubr.f32.gmra.mrb[0].mxu0 %v1613
    %v2639 = vpop.f32.mrb[0].mxu0
    %v2640 = vadd.f32 0.0, %v2639
    %v2641 = vpop.f32.mrb[0].mxu0
    %2642 = vmatprep.mubr.f32.mxu0 0.0
    %2643 = vmatmul.mubr.f32.gmra.mrb[0].mxu0 %v1614
    %v2644 = vpop.f32.mrb[0].mxu0
    %v2645 = vadd.f32 0.0, %v2644
    %v2646 = vpop.f32.mrb[0].mxu0
    %2647 = vmatprep.mubr.f32.mxu0 0.0
    %2648 = vmatmul.mubr.f32.gmra.mrb[0].mxu0 %v1615
    %v2649 = vpop.f32.mrb[0].mxu0
    %v2650 = vadd.f32 0.0, %v2649
    %v2651 = vpop.f32.mrb[0].mxu0
    %2652 = vmatprep.mubr.f32.mxu0 0.0
    %2653 = vmatmul.mubr.f32.gmra.mrb[0].mxu0 %v1616
    %v2654 = vpop.f32.mrb[0].mxu0
    %v2655 = vadd.f32 0.0, %v2654
    %v2656 = vpop.f32.mrb[0].mxu0
    %2657 = vmatprep.mubr.f32.mxu0 0.0
    %2658 = vmatmul.mubr.f32.gmra.mrb[0].mxu0 %v1617
    %v2659 = vpop.f32.mrb[0].mxu0
    %v2660 = vadd.f32 0.0, %v2659
    %v2661 = vpop.f32.mrb[0].mxu0
    %2662 = vmatprep.mubr.f32.mxu0 0.0
    %2663 = vmatmul.mubr.f32.gmra.mrb[0].mxu0 %v1618
    %v2664 = vpop.f32.mrb[0].mxu0
    %v2665 = vadd.f32 0.0, %v2664
    %v2666 = vpop.f32.mrb[0].mxu0
    %2667 = vmatprep.mubr.f32.mxu0 0.0
    %2668 = vmatmul.mubr.f32.gmra.mrb[0].mxu0 %v1619
    %v2669 = vpop.f32.mrb[0].mxu0
    %v2670 = vadd.f32 0.0, %v2669
    %v2671 = vpop.f32.mrb[0].mxu0
    %2672 = vmatprep.mubr.f32.mxu0 0.0
    %2673 = vmatmul.mubr.f32.gmra.mrb[0].mxu0 %v1620
    %v2674 = vpop.f32.mrb[0].mxu0
    %v2675 = vadd.f32 0.0, %v2674
    %v2676 = vpop.f32.mrb[0].mxu0
    %2677 = vmatprep.mubr.f32.mxu0 0.0
    %2678 = vmatmul.mubr.f32.gmra.mrb[0].mxu0 %v1621
    %v2679 = vpop.f32.mrb[0].mxu0
    %v2680 = vadd.f32 0.0, %v2679
    %v2681 = vpop.f32.mrb[0].mxu0
    %2682 = vmatprep.mubr.f32.mxu0 0.0
    %2683 = vmatmul.mubr.f32.gmra.mrb[0].mxu0 %v1622
    %v2684 = vpop.f32.mrb[0].mxu0
    %v2685 = vadd.f32 0.0, %v2684
    %v2686 = vpop.f32.mrb[0].mxu0
    %2687 = vmatprep.mubr.f32.mxu0 0.0
    %2688 = vmatmul.mubr.f32.gmra.mrb[0].mxu0 %v1623
    %v2689 = vpop.f32.mrb[0].mxu0
    %v2690 = vadd.f32 0.0, %v2689
    %v2691 = vpop.f32.mrb[0].mxu0
    %2692 = vmatprep.mubr.f32.mxu0 0.0
    %2693 = vmatmul.mubr.f32.gmra.mrb[0].mxu0 %v1624
    %v2694 = vpop.f32.mrb[0].mxu0
    %v2695 = vadd.f32 0.0, %v2694
    %v2696 = vpop.f32.mrb[0].mxu0
    %2697 = vmatprep.mubr.f32.mxu0 0.0
    %2698 = vmatmul.mubr.f32.gmra.mrb[0].mxu0 %v1625
    %v2699 = vpop.f32.mrb[0].mxu0
    %v2700 = vadd.f32 0.0, %v2699
    %v2701 = vpop.f32.mrb[0].mxu0
    %2702 = vmatprep.mubr.f32.mxu0 0.0
    %2703 = vmatmul.mubr.f32.gmra.mrb[0].mxu0 %v1626
    %v2704 = vpop.f32.mrb[0].mxu0
    %v2705 = vadd.f32 0.0, %v2704
    %v2706 = vpop.f32.mrb[0].mxu0
    %2707 = vmatprep.mubr.f32.mxu0 0.0
    %2708 = vmatmul.mubr.f32.gmra.mrb[0].mxu0 %v1627
    %v2709 = vpop.f32.mrb[0].mxu0
    %v2710 = vadd.f32 0.0, %v2709
    %v2711 = vpop.f32.mrb[0].mxu0
    %2712 = vmatprep.mubr.f32.mxu0 0.0
    %2713 = vmatmul.mubr.f32.gmra.mrb[0].mxu0 %v1628
    %v2714 = vpop.f32.mrb[0].mxu0
    %v2715 = vadd.f32 0.0, %v2714
    %v2716 = vpop.f32.mrb[0].mxu0
    %2717 = vmatprep.mubr.f32.mxu0 0.0
    %2718 = vmatmul.mubr.f32.gmra.mrb[0].mxu0 %v1629
    %v2719 = vpop.f32.mrb[0].mxu0
    %v2720 = vadd.f32 0.0, %v2719
    %v2721 = vpop.f32.mrb[0].mxu0
    %2722 = vmatprep.mubr.f32.mxu0 0.0
    %2723 = vmatmul.mubr.f32.gmra.mrb[0].mxu0 %v1630
    %v2724 = vpop.f32.mrb[0].mxu0
    %v2725 = vadd.f32 0.0, %v2724
    %v2726 = vpop.f32.mrb[0].mxu0
    %2727 = vmatprep.mubr.f32.mxu0 0.0
    %2728 = vmatmul.mubr.f32.gmra.mrb[0].mxu0 %v1631
    %v2729 = vpop.f32.mrb[0].mxu0
    %v2730 = vadd.f32 0.0, %v2729
    %v2731 = vpop.f32.mrb[0].mxu0
    %2732 = vmatprep.mubr.f32.mxu0 0.0
    %2733 = vmatmul.mubr.f32.gmra.mrb[0].mxu0 %v1632
    %v2734 = vpop.f32.mrb[0].mxu0
    %v2735 = vadd.f32 0.0, %v2734
    %v2736 = vpop.f32.mrb[0].mxu0
    %2737 = vmatprep.mubr.f32.mxu0 0.0
    %2738 = vmatmul.mubr.f32.gmra.mrb[0].mxu0 %v1633
    %v2739 = vpop.f32.mrb[0].mxu0
    %v2740 = vadd.f32 0.0, %v2739
    %v2741 = vpop.f32.mrb[0].mxu0
    %2742 = vmatprep.mubr.f32.mxu0 0.0
    %2743 = vmatmul.mubr.f32.gmra.mrb[0].mxu0 %v1634
    %v2744 = vpop.f32.mrb[0].mxu0
    %v2745 = vadd.f32 0.0, %v2744
    %v2746 = vpop.f32.mrb[0].mxu0
    %2747 = vmatprep.mubr.f32.mxu0 0.0
    %2748 = vmatmul.mubr.f32.gmra.mrb[0].mxu0 %v1635
    %v2749 = vpop.f32.mrb[0].mxu0
    %v2750 = vadd.f32 0.0, %v2749
    %v2751 = vpop.f32.mrb[0].mxu0
    %2752 = vmatprep.mubr.f32.mxu0 0.0
    %2753 = vmatmul.mubr.f32.gmra.mrb[0].mxu0 %v1636
    %v2754 = vpop.f32.mrb[0].mxu0
    %v2755 = vadd.f32 0.0, %v2754
    %v2756 = vpop.f32.mrb[0].mxu0
    %2757 = vdwg.mxu0
    %v2758 = vmax.f32 %v1720, %v1740
    %v2759 = vmax.f32 %v1725, %v1745
    %v2760 = vmax.f32 %v1730, %v1750
    %v2761 = vmax.f32 %v1735, %v1755
    %v2762 = vmax.f32 %v2758, %v1760
    %v2763 = vmax.f32 %v2759, %v1765
    %v2764 = vmax.f32 %v2760, %v1770
    %v2765 = vmax.f32 %v2761, %v1775
    %v2766 = vmax.f32 %v2762, %v1780
    %v2767 = vmax.f32 %v2763, %v1785
    %v2768 = vmax.f32 %v2764, %v1790
    %v2769 = vmax.f32 %v2765, %v1795
    %v2770 = vmax.f32 %v2766, %v1800
    %v2771 = vmax.f32 %v2767, %v1805
    %v2772 = vmax.f32 %v2768, %v1810
    %v2773 = vmax.f32 %v2769, %v1815
    %v2774 = vmax.f32 %v2770, %v1820
    %v2775 = vmax.f32 %v2771, %v1825
    %v2776 = vmax.f32 %v2772, %v1830
    %v2777 = vmax.f32 %v2773, %v1835
    %v2778 = vmax.f32 %v2774, %v1840
    %v2779 = vmax.f32 %v2775, %v1845
    %v2780 = vmax.f32 %v2776, %v1850
    %v2781 = vmax.f32 %v2777, %v1855
    %v2782 = vmax.f32 %v2778, %v1860
    %v2783 = vmax.f32 %v2779, %v1865
    %v2784 = vmax.f32 %v2780, %v1870
    %v2785 = vmax.f32 %v2781, %v1875
    %v2786 = vmax.f32 %v2782, %v1880
    %v2787 = vmax.f32 %v2783, %v1885
    %v2788 = vmax.f32 %v2784, %v1890
    %v2789 = vmax.f32 %v2785, %v1895
    %v2790 = vmax.f32 %v2786, %v1900
    %v2791 = vmax.f32 %v2787, %v1905
    %v2792 = vmax.f32 %v2788, %v1910
    %v2793 = vmax.f32 %v2789, %v1915
    %v2794 = vmax.f32 %v2790, %v1920
    %v2795 = vmax.f32 %v2791, %v1925
    %v2796 = vmax.f32 %v2792, %v1930
    %v2797 = vmax.f32 %v2793, %v1935
    %v2798 = vmax.f32 %v2794, %v1940
    %v2799 = vmax.f32 %v2795, %v1945
    %v2800 = vmax.f32 %v2796, %v1950
    %v2801 = vmax.f32 %v2797, %v1955
    %v2802 = vmax.f32 %v2798, %v1960
    %v2803 = vmax.f32 %v2799, %v1965
    %v2804 = vmax.f32 %v2800, %v1970
    %v2805 = vmax.f32 %v2801, %v1975
    %v2806 = vmax.f32 %v2802, %v1980
    %v2807 = vmax.f32 %v2803, %v1985
    %v2808 = vmax.f32 %v2804, %v1990
    %v2809 = vmax.f32 %v2805, %v1995
    %v2810 = vmax.f32 %v2806, %v2000
    %v2811 = vmax.f32 %v2807, %v2005
    %v2812 = vmax.f32 %v2808, %v2010
    %v2813 = vmax.f32 %v2809, %v2015
    %v2814 = vmax.f32 %v2810, %v2020
    %v2815 = vmax.f32 %v2811, %v2025
    %v2816 = vmax.f32 %v2812, %v2030
    %v2817 = vmax.f32 %v2813, %v2035
    %v2818 = vmax.f32 %v2814, %v2040
    %v2819 = vmax.f32 %v2815, %v2045
    %v2820 = vmax.f32 %v2816, %v2050
    %v2821 = vmax.f32 %v2817, %v2055
    %v2822 = vmax.f32 %v2818, %v2060
    %v2823 = vmax.f32 %v2819, %v2065
    %v2824 = vmax.f32 %v2820, %v2070
    %v2825 = vmax.f32 %v2821, %v2075
    %v2826 = vmax.f32 %v2822, %v2080
    %v2827 = vmax.f32 %v2823, %v2085
    %v2828 = vmax.f32 %v2824, %v2090
    %v2829 = vmax.f32 %v2825, %v2095
    %v2830 = vmax.f32 %v2826, %v2100
    %v2831 = vmax.f32 %v2827, %v2105
    %v2832 = vmax.f32 %v2828, %v2110
    %v2833 = vmax.f32 %v2829, %v2115
    %v2834 = vmax.f32 %v2830, %v2120
    %v2835 = vmax.f32 %v2831, %v2125
    %v2836 = vmax.f32 %v2832, %v2130
    %v2837 = vmax.f32 %v2833, %v2135
    %v2838 = vmax.f32 %v2834, %v2140
    %v2839 = vmax.f32 %v2835, %v2145
    %v2840 = vmax.f32 %v2836, %v2150
    %v2841 = vmax.f32 %v2837, %v2155
    %v2842 = vmax.f32 %v2838, %v2160
    %v2843 = vmax.f32 %v2839, %v2165
    %v2844 = vmax.f32 %v2840, %v2170
    %v2845 = vmax.f32 %v2841, %v2175
    %v2846 = vmax.f32 %v2842, %v2180
    %v2847 = vmax.f32 %v2843, %v2185
    %v2848 = vmax.f32 %v2844, %v2190
    %v2849 = vmax.f32 %v2845, %v2195
    %v2850 = vmax.f32 %v2846, %v2200
    %v2851 = vmax.f32 %v2847, %v2205
    %v2852 = vmax.f32 %v2848, %v2210
    %v2853 = vmax.f32 %v2849, %v2215
    %v2854 = vmax.f32 %v2850, %v2220
    %v2855 = vmax.f32 %v2851, %v2225
    %v2856 = vmax.f32 %v2852, %v2230
    %v2857 = vmax.f32 %v2853, %v2235
    %v2858 = vmax.f32 %v2854, %v2240
    %v2859 = vmax.f32 %v2855, %v2245
    %v2860 = vmax.f32 %v2856, %v2250
    %v2861 = vmax.f32 %v2857, %v2255
    %v2862 = vmax.f32 %v2858, %v2260
    %v2863 = vmax.f32 %v2859, %v2265
    %v2864 = vmax.f32 %v2860, %v2270
    %v2865 = vmax.f32 %v2861, %v2275
    %v2866 = vmax.f32 %v2862, %v2280
    %v2867 = vmax.f32 %v2863, %v2285
    %v2868 = vmax.f32 %v2864, %v2290
    %v2869 = vmax.f32 %v2865, %v2295
    %v2870 = vmax.f32 %v2866, %v2300
    %v2871 = vmax.f32 %v2867, %v2305
    %v2872 = vmax.f32 %v2868, %v2310
    %v2873 = vmax.f32 %v2869, %v2315
    %v2874 = vmax.f32 %v2870, %v2320
    %v2875 = vmax.f32 %v2871, %v2325
    %v2876 = vmax.f32 %v2872, %v2330
    %v2877 = vmax.f32 %v2873, %v2335
    %v2878 = vmax.f32 %v2874, %v2340
    %v2879 = vmax.f32 %v2875, %v2345
    %v2880 = vmax.f32 %v2876, %v2350
    %v2881 = vmax.f32 %v2877, %v2355
    %v2882 = vmax.f32 %v2878, %v2360
    %v2883 = vmax.f32 %v2879, %v2365
    %v2884 = vmax.f32 %v2880, %v2370
    %v2885 = vmax.f32 %v2881, %v2375
    %v2886 = vmax.f32 %v2882, %v2380
    %v2887 = vmax.f32 %v2883, %v2385
    %v2888 = vmax.f32 %v2884, %v2390
    %v2889 = vmax.f32 %v2885, %v2395
    %v2890 = vmax.f32 %v2886, %v2400
    %v2891 = vmax.f32 %v2887, %v2405
    %v2892 = vmax.f32 %v2888, %v2410
    %v2893 = vmax.f32 %v2889, %v2415
    %v2894 = vmax.f32 %v2890, %v2420
    %v2895 = vmax.f32 %v2891, %v2425
    %v2896 = vmax.f32 %v2892, %v2430
    %v2897 = vmax.f32 %v2893, %v2435
    %v2898 = vmax.f32 %v2894, %v2440
    %v2899 = vmax.f32 %v2895, %v2445
    %v2900 = vmax.f32 %v2896, %v2450
    %v2901 = vmax.f32 %v2897, %v2455
    %v2902 = vmax.f32 %v2898, %v2460
    %v2903 = vmax.f32 %v2899, %v2465
    %v2904 = vmax.f32 %v2900, %v2470
    %v2905 = vmax.f32 %v2901, %v2475
    %v2906 = vmax.f32 %v2902, %v2480
    %v2907 = vmax.f32 %v2903, %v2485
    %v2908 = vmax.f32 %v2904, %v2490
    %v2909 = vmax.f32 %v2905, %v2495
    %v2910 = vmax.f32 %v2906, %v2500
    %v2911 = vmax.f32 %v2907, %v2505
    %v2912 = vmax.f32 %v2908, %v2510
    %v2913 = vmax.f32 %v2909, %v2515
    %v2914 = vmax.f32 %v2910, %v2520
    %v2915 = vmax.f32 %v2911, %v2525
    %v2916 = vmax.f32 %v2912, %v2530
    %v2917 = vmax.f32 %v2913, %v2535
    %v2918 = vmax.f32 %v2914, %v2540
    %v2919 = vmax.f32 %v2915, %v2545
    %v2920 = vmax.f32 %v2916, %v2550
    %v2921 = vmax.f32 %v2917, %v2555
    %v2922 = vmax.f32 %v2918, %v2560
    %v2923 = vmax.f32 %v2919, %v2565
    %v2924 = vmax.f32 %v2920, %v2570
    %v2925 = vmax.f32 %v2921, %v2575
    %v2926 = vmax.f32 %v2922, %v2580
    %v2927 = vmax.f32 %v2923, %v2585
    %v2928 = vmax.f32 %v2924, %v2590
    %v2929 = vmax.f32 %v2925, %v2595
    %v2930 = vmax.f32 %v2926, %v2600
    %v2931 = vmax.f32 %v2927, %v2605
    %v2932 = vmax.f32 %v2928, %v2610
    %v2933 = vmax.f32 %v2929, %v2615
    %v2934 = vmax.f32 %v2930, %v2620
    %v2935 = vmax.f32 %v2931, %v2625
    %v2936 = vmax.f32 %v2932, %v2630
    %v2937 = vmax.f32 %v2933, %v2635
    %v2938 = vmax.f32 %v2934, %v2640
    %v2939 = vmax.f32 %v2935, %v2645
    %v2940 = vmax.f32 %v2936, %v2650
    %v2941 = vmax.f32 %v2937, %v2655
    %v2942 = vmax.f32 %v2938, %v2660
    %v2943 = vmax.f32 %v2939, %v2665
    %v2944 = vmax.f32 %v2940, %v2670
    %v2945 = vmax.f32 %v2941, %v2675
    %v2946 = vmax.f32 %v2942, %v2680
    %v2947 = vmax.f32 %v2943, %v2685
    %v2948 = vmax.f32 %v2944, %v2690
    %v2949 = vmax.f32 %v2945, %v2695
    %v2950 = vmax.f32 %v2946, %v2700
    %v2951 = vmax.f32 %v2947, %v2705
    %v2952 = vmax.f32 %v2948, %v2710
    %v2953 = vmax.f32 %v2949, %v2715
    %v2954 = vmax.f32 %v2950, %v2720
    %v2955 = vmax.f32 %v2951, %v2725
    %v2956 = vmax.f32 %v2952, %v2730
    %v2957 = vmax.f32 %v2953, %v2735
    %v2958 = vmax.f32 %v2954, %v2740
    %v2959 = vmax.f32 %v2955, %v2745
    %v2960 = vmax.f32 %v2956, %v2750
    %v2961 = vmax.f32 %v2957, %v2755
    %v2962 = vmax.f32 %v2958, %v2959
    %v2963 = vmax.f32 %v2960, %v2961
    %v2964 = vmax.f32 %v2962, %v2963
    %v2965 = vrot.slane %v2964, 4
    %v2966 = vmax.f32 %v2964, %v2965
    %v2967 = vrot.slane %v2966, 2
    %v2968 = vmax.f32 %v2966, %v2967
    %v2969 = vrot.slane %v2968, 1
    %v2970 = vmax.f32 %v2968, %v2969
    %v2971 = vsub.f32 %v1720, %v2970
    %v2972 = vsub.f32 %v1725, %v2970
    %v2973 = vsub.f32 %v1730, %v2970
    %v2974 = vsub.f32 %v1735, %v2970
    %v2975 = vsub.f32 %v1740, %v2970
    %v2976 = vsub.f32 %v1745, %v2970
    %v2977 = vsub.f32 %v1750, %v2970
    %v2978 = vsub.f32 %v1755, %v2970
    %v2979 = vsub.f32 %v1760, %v2970
    %v2980 = vsub.f32 %v1765, %v2970
    %v2981 = vsub.f32 %v1770, %v2970
    %v2982 = vsub.f32 %v1775, %v2970
    %v2983 = vsub.f32 %v1780, %v2970
    %v2984 = vsub.f32 %v1785, %v2970
    %v2985 = vsub.f32 %v1790, %v2970
    %v2986 = vsub.f32 %v1795, %v2970
    %v2987 = vsub.f32 %v1800, %v2970
    %v2988 = vsub.f32 %v1805, %v2970
    %v2989 = vsub.f32 %v1810, %v2970
    %v2990 = vsub.f32 %v1815, %v2970
    %v2991 = vsub.f32 %v1820, %v2970
    %v2992 = vsub.f32 %v1825, %v2970
    %v2993 = vsub.f32 %v1830, %v2970
    %v2994 = vsub.f32 %v1835, %v2970
    %v2995 = vsub.f32 %v1840, %v2970
    %v2996 = vsub.f32 %v1845, %v2970
    %v2997 = vsub.f32 %v1850, %v2970
    %v2998 = vsub.f32 %v1855, %v2970
    %v2999 = vsub.f32 %v1860, %v2970
    %v3000 = vsub.f32 %v1865, %v2970
    %v3001 = vsub.f32 %v1870, %v2970
    %v3002 = vsub.f32 %v1875, %v2970
    %v3003 = vsub.f32 %v1880, %v2970
    %v3004 = vsub.f32 %v1885, %v2970
    %v3005 = vsub.f32 %v1890, %v2970
    %v3006 = vsub.f32 %v1895, %v2970
    %v3007 = vsub.f32 %v1900, %v2970
    %v3008 = vsub.f32 %v1905, %v2970
    %v3009 = vsub.f32 %v1910, %v2970
    %v3010 = vsub.f32 %v1915, %v2970
    %v3011 = vsub.f32 %v1920, %v2970
    %v3012 = vsub.f32 %v1925, %v2970
    %v3013 = vsub.f32 %v1930, %v2970
    %v3014 = vsub.f32 %v1935, %v2970
    %v3015 = vsub.f32 %v1940, %v2970
    %v3016 = vsub.f32 %v1945, %v2970
    %v3017 = vsub.f32 %v1950, %v2970
    %v3018 = vsub.f32 %v1955, %v2970
    %v3019 = vsub.f32 %v1960, %v2970
    %v3020 = vsub.f32 %v1965, %v2970
    %v3021 = vsub.f32 %v1970, %v2970
    %v3022 = vsub.f32 %v1975, %v2970
    %v3023 = vsub.f32 %v1980, %v2970
    %v3024 = vsub.f32 %v1985, %v2970
    %v3025 = vsub.f32 %v1990, %v2970
    %v3026 = vsub.f32 %v1995, %v2970
    %v3027 = vsub.f32 %v2000, %v2970
    %v3028 = vsub.f32 %v2005, %v2970
    %v3029 = vsub.f32 %v2010, %v2970
    %v3030 = vsub.f32 %v2015, %v2970
    %v3031 = vsub.f32 %v2020, %v2970
    %v3032 = vsub.f32 %v2025, %v2970
    %v3033 = vsub.f32 %v2030, %v2970
    %v3034 = vsub.f32 %v2035, %v2970
    %v3035 = vsub.f32 %v2040, %v2970
    %v3036 = vsub.f32 %v2045, %v2970
    %v3037 = vsub.f32 %v2050, %v2970
    %v3038 = vsub.f32 %v2055, %v2970
    %v3039 = vsub.f32 %v2060, %v2970
    %v3040 = vsub.f32 %v2065, %v2970
    %v3041 = vsub.f32 %v2070, %v2970
    %v3042 = vsub.f32 %v2075, %v2970
    %v3043 = vsub.f32 %v2080, %v2970
    %v3044 = vsub.f32 %v2085, %v2970
    %v3045 = vsub.f32 %v2090, %v2970
    %v3046 = vsub.f32 %v2095, %v2970
    %v3047 = vsub.f32 %v2100, %v2970
    %v3048 = vsub.f32 %v2105, %v2970
    %v3049 = vsub.f32 %v2110, %v2970
    %v3050 = vsub.f32 %v2115, %v2970
    %v3051 = vsub.f32 %v2120, %v2970
    %v3052 = vsub.f32 %v2125, %v2970
    %v3053 = vsub.f32 %v2130, %v2970
    %v3054 = vsub.f32 %v2135, %v2970
    %v3055 = vsub.f32 %v2140, %v2970
    %v3056 = vsub.f32 %v2145, %v2970
    %v3057 = vsub.f32 %v2150, %v2970
    %v3058 = vsub.f32 %v2155, %v2970
    %v3059 = vsub.f32 %v2160, %v2970
    %v3060 = vsub.f32 %v2165, %v2970
    %v3061 = vsub.f32 %v2170, %v2970
    %v3062 = vsub.f32 %v2175, %v2970
    %v3063 = vsub.f32 %v2180, %v2970
    %v3064 = vsub.f32 %v2185, %v2970
    %v3065 = vsub.f32 %v2190, %v2970
    %v3066 = vsub.f32 %v2195, %v2970
    %v3067 = vsub.f32 %v2200, %v2970
    %v3068 = vsub.f32 %v2205, %v2970
    %v3069 = vsub.f32 %v2210, %v2970
    %v3070 = vsub.f32 %v2215, %v2970
    %v3071 = vsub.f32 %v2220, %v2970
    %v3072 = vsub.f32 %v2225, %v2970
    %v3073 = vsub.f32 %v2230, %v2970
    %v3074 = vsub.f32 %v2235, %v2970
    %v3075 = vsub.f32 %v2240, %v2970
    %v3076 = vsub.f32 %v2245, %v2970
    %v3077 = vsub.f32 %v2250, %v2970
    %v3078 = vsub.f32 %v2255, %v2970
    %v3079 = vsub.f32 %v2260, %v2970
    %v3080 = vsub.f32 %v2265, %v2970
    %v3081 = vsub.f32 %v2270, %v2970
    %v3082 = vsub.f32 %v2275, %v2970
    %v3083 = vsub.f32 %v2280, %v2970
    %v3084 = vsub.f32 %v2285, %v2970
    %v3085 = vsub.f32 %v2290, %v2970
    %v3086 = vsub.f32 %v2295, %v2970
    %v3087 = vsub.f32 %v2300, %v2970
    %v3088 = vsub.f32 %v2305, %v2970
    %v3089 = vsub.f32 %v2310, %v2970
    %v3090 = vsub.f32 %v2315, %v2970
    %v3091 = vsub.f32 %v2320, %v2970
    %v3092 = vsub.f32 %v2325, %v2970
    %v3093 = vsub.f32 %v2330, %v2970
    %v3094 = vsub.f32 %v2335, %v2970
    %v3095 = vsub.f32 %v2340, %v2970
    %v3096 = vsub.f32 %v2345, %v2970
    %v3097 = vsub.f32 %v2350, %v2970
    %v3098 = vsub.f32 %v2355, %v2970
    %v3099 = vsub.f32 %v2360, %v2970
    %v3100 = vsub.f32 %v2365, %v2970
    %v3101 = vsub.f32 %v2370, %v2970
    %v3102 = vsub.f32 %v2375, %v2970
    %v3103 = vsub.f32 %v2380, %v2970
    %v3104 = vsub.f32 %v2385, %v2970
    %v3105 = vsub.f32 %v2390, %v2970
    %v3106 = vsub.f32 %v2395, %v2970
    %v3107 = vsub.f32 %v2400, %v2970
    %v3108 = vsub.f32 %v2405, %v2970
    %v3109 = vsub.f32 %v2410, %v2970
    %v3110 = vsub.f32 %v2415, %v2970
    %v3111 = vsub.f32 %v2420, %v2970
    %v3112 = vsub.f32 %v2425, %v2970
    %v3113 = vsub.f32 %v2430, %v2970
    %v3114 = vsub.f32 %v2435, %v2970
    %v3115 = vsub.f32 %v2440, %v2970
    %v3116 = vsub.f32 %v2445, %v2970
    %v3117 = vsub.f32 %v2450, %v2970
    %v3118 = vsub.f32 %v2455, %v2970
    %v3119 = vsub.f32 %v2460, %v2970
    %v3120 = vsub.f32 %v2465, %v2970
    %v3121 = vsub.f32 %v2470, %v2970
    %v3122 = vsub.f32 %v2475, %v2970
    %v3123 = vsub.f32 %v2480, %v2970
    %v3124 = vsub.f32 %v2485, %v2970
    %v3125 = vsub.f32 %v2490, %v2970
    %v3126 = vsub.f32 %v2495, %v2970
    %v3127 = vsub.f32 %v2500, %v2970
    %v3128 = vsub.f32 %v2505, %v2970
    %v3129 = vsub.f32 %v2510, %v2970
    %v3130 = vsub.f32 %v2515, %v2970
    %v3131 = vsub.f32 %v2520, %v2970
    %v3132 = vsub.f32 %v2525, %v2970
    %v3133 = vsub.f32 %v2530, %v2970
    %v3134 = vsub.f32 %v2535, %v2970
    %v3135 = vsub.f32 %v2540, %v2970
    %v3136 = vsub.f32 %v2545, %v2970
    %v3137 = vsub.f32 %v2550, %v2970
    %v3138 = vsub.f32 %v2555, %v2970
    %v3139 = vsub.f32 %v2560, %v2970
    %v3140 = vsub.f32 %v2565, %v2970
    %v3141 = vsub.f32 %v2570, %v2970
    %v3142 = vsub.f32 %v2575, %v2970
    %v3143 = vsub.f32 %v2580, %v2970
    %v3144 = vsub.f32 %v2585, %v2970
    %v3145 = vsub.f32 %v2590, %v2970
    %v3146 = vsub.f32 %v2595, %v2970
    %v3147 = vsub.f32 %v2600, %v2970
    %v3148 = vsub.f32 %v2605, %v2970
    %v3149 = vsub.f32 %v2610, %v2970
    %v3150 = vsub.f32 %v2615, %v2970
    %v3151 = vsub.f32 %v2620, %v2970
    %v3152 = vsub.f32 %v2625, %v2970
    %v3153 = vsub.f32 %v2630, %v2970
    %v3154 = vsub.f32 %v2635, %v2970
    %v3155 = vsub.f32 %v2640, %v2970
    %v3156 = vsub.f32 %v2645, %v2970
    %v3157 = vsub.f32 %v2650, %v2970
    %v3158 = vsub.f32 %v2655, %v2970
    %v3159 = vsub.f32 %v2660, %v2970
    %v3160 = vsub.f32 %v2665, %v2970
    %v3161 = vsub.f32 %v2670, %v2970
    %v3162 = vsub.f32 %v2675, %v2970
    %v3163 = vsub.f32 %v2680, %v2970
    %v3164 = vsub.f32 %v2685, %v2970
    %v3165 = vsub.f32 %v2690, %v2970
    %v3166 = vsub.f32 %v2695, %v2970
    %v3167 = vsub.f32 %v2700, %v2970
    %v3168 = vsub.f32 %v2705, %v2970
    %v3169 = vsub.f32 %v2710, %v2970
    %v3170 = vsub.f32 %v2715, %v2970
    %v3171 = vsub.f32 %v2720, %v2970
    %v3172 = vsub.f32 %v2725, %v2970
    %v3173 = vsub.f32 %v2730, %v2970
    %v3174 = vsub.f32 %v2735, %v2970
    %v3175 = vsub.f32 %v2740, %v2970
    %v3176 = vsub.f32 %v2745, %v2970
    %v3177 = vsub.f32 %v2750, %v2970
    %v3178 = vsub.f32 %v2755, %v2970
    %v3179 = vmul.f32 %v2971, 1.442695
    %v3180 = vpow.pop %v3179
    %v3181 = vmul.f32 %v2972, 1.442695
    %v3182 = vpow.pop %v3181
    %v3183 = vmul.f32 %v2973, 1.442695
    %v3184 = vpow.pop %v3183
    %v3185 = vmul.f32 %v2974, 1.442695
    %v3186 = vpow.pop %v3185
    %v3187 = vmul.f32 %v2975, 1.442695
    %v3188 = vpow.pop %v3187
    %v3189 = vmul.f32 %v2976, 1.442695
    %v3190 = vpow.pop %v3189
    %v3191 = vmul.f32 %v2977, 1.442695
    %v3192 = vpow.pop %v3191
    %v3193 = vmul.f32 %v2978, 1.442695
    %v3194 = vpow.pop %v3193
    %v3195 = vmul.f32 %v2979, 1.442695
    %v3196 = vpow.pop %v3195
    %v3197 = vmul.f32 %v2980, 1.442695
    %v3198 = vpow.pop %v3197
    %v3199 = vmul.f32 %v2981, 1.442695
    %v3200 = vpow.pop %v3199
    %v3201 = vmul.f32 %v2982, 1.442695
    %v3202 = vpow.pop %v3201
    %v3203 = vmul.f32 %v2983, 1.442695
    %v3204 = vpow.pop %v3203
    %v3205 = vmul.f32 %v2984, 1.442695
    %v3206 = vpow.pop %v3205
    %v3207 = vmul.f32 %v2985, 1.442695
    %v3208 = vpow.pop %v3207
    %v3209 = vmul.f32 %v2986, 1.442695
    %v3210 = vpow.pop %v3209
    %v3211 = vmul.f32 %v2987, 1.442695
    %v3212 = vpow.pop %v3211
    %v3213 = vmul.f32 %v2988, 1.442695
    %v3214 = vpow.pop %v3213
    %v3215 = vmul.f32 %v2989, 1.442695
    %v3216 = vpow.pop %v3215
    %v3217 = vmul.f32 %v2990, 1.442695
    %v3218 = vpow.pop %v3217
    %v3219 = vmul.f32 %v2991, 1.442695
    %v3220 = vpow.pop %v3219
    %v3221 = vmul.f32 %v2992, 1.442695
    %v3222 = vpow.pop %v3221
    %v3223 = vmul.f32 %v2993, 1.442695
    %v3224 = vpow.pop %v3223
    %v3225 = vmul.f32 %v2994, 1.442695
    %v3226 = vpow.pop %v3225
    %v3227 = vmul.f32 %v2995, 1.442695
    %v3228 = vpow.pop %v3227
    %v3229 = vmul.f32 %v2996, 1.442695
    %v3230 = vpow.pop %v3229
    %v3231 = vmul.f32 %v2997, 1.442695
    %v3232 = vpow.pop %v3231
    %v3233 = vmul.f32 %v2998, 1.442695
    %v3234 = vpow.pop %v3233
    %v3235 = vmul.f32 %v2999, 1.442695
    %v3236 = vpow.pop %v3235
    %v3237 = vmul.f32 %v3000, 1.442695
    %v3238 = vpow.pop %v3237
    %v3239 = vmul.f32 %v3001, 1.442695
    %v3240 = vpow.pop %v3239
    %v3241 = vmul.f32 %v3002, 1.442695
    %v3242 = vpow.pop %v3241
    %v3243 = vmul.f32 %v3003, 1.442695
    %v3244 = vpow.pop %v3243
    %v3245 = vmul.f32 %v3004, 1.442695
    %v3246 = vpow.pop %v3245
    %v3247 = vmul.f32 %v3005, 1.442695
    %v3248 = vpow.pop %v3247
    %v3249 = vmul.f32 %v3006, 1.442695
    %v3250 = vpow.pop %v3249
    %v3251 = vmul.f32 %v3007, 1.442695
    %v3252 = vpow.pop %v3251
    %v3253 = vmul.f32 %v3008, 1.442695
    %v3254 = vpow.pop %v3253
    %v3255 = vmul.f32 %v3009, 1.442695
    %v3256 = vpow.pop %v3255
    %v3257 = vmul.f32 %v3010, 1.442695
    %v3258 = vpow.pop %v3257
    %v3259 = vmul.f32 %v3011, 1.442695
    %v3260 = vpow.pop %v3259
    %v3261 = vmul.f32 %v3012, 1.442695
    %v3262 = vpow.pop %v3261
    %v3263 = vmul.f32 %v3013, 1.442695
    %v3264 = vpow.pop %v3263
    %v3265 = vmul.f32 %v3014, 1.442695
    %v3266 = vpow.pop %v3265
    %v3267 = vmul.f32 %v3015, 1.442695
    %v3268 = vpow.pop %v3267
    %v3269 = vmul.f32 %v3016, 1.442695
    %v3270 = vpow.pop %v3269
    %v3271 = vmul.f32 %v3017, 1.442695
    %v3272 = vpow.pop %v3271
    %v3273 = vmul.f32 %v3018, 1.442695
    %v3274 = vpow.pop %v3273
    %v3275 = vmul.f32 %v3019, 1.442695
    %v3276 = vpow.pop %v3275
    %v3277 = vmul.f32 %v3020, 1.442695
    %v3278 = vpow.pop %v3277
    %v3279 = vmul.f32 %v3021, 1.442695
    %v3280 = vpow.pop %v3279
    %v3281 = vmul.f32 %v3022, 1.442695
    %v3282 = vpow.pop %v3281
    %v3283 = vmul.f32 %v3023, 1.442695
    %v3284 = vpow.pop %v3283
    %v3285 = vmul.f32 %v3024, 1.442695
    %v3286 = vpow.pop %v3285
    %v3287 = vmul.f32 %v3025, 1.442695
    %v3288 = vpow.pop %v3287
    %v3289 = vmul.f32 %v3026, 1.442695
    %v3290 = vpow.pop %v3289
    %v3291 = vmul.f32 %v3027, 1.442695
    %v3292 = vpow.pop %v3291
    %v3293 = vmul.f32 %v3028, 1.442695
    %v3294 = vpow.pop %v3293
    %v3295 = vmul.f32 %v3029, 1.442695
    %v3296 = vpow.pop %v3295
    %v3297 = vmul.f32 %v3030, 1.442695
    %v3298 = vpow.pop %v3297
    %v3299 = vmul.f32 %v3031, 1.442695
    %v3300 = vpow.pop %v3299
    %v3301 = vmul.f32 %v3032, 1.442695
    %v3302 = vpow.pop %v3301
    %v3303 = vmul.f32 %v3033, 1.442695
    %v3304 = vpow.pop %v3303
    %v3305 = vmul.f32 %v3034, 1.442695
    %v3306 = vpow.pop %v3305
    %v3307 = vmul.f32 %v3035, 1.442695
    %v3308 = vpow.pop %v3307
    %v3309 = vmul.f32 %v3036, 1.442695
    %v3310 = vpow.pop %v3309
    %v3311 = vmul.f32 %v3037, 1.442695
    %v3312 = vpow.pop %v3311
    %v3313 = vmul.f32 %v3038, 1.442695
    %v3314 = vpow.pop %v3313
    %v3315 = vmul.f32 %v3039, 1.442695
    %v3316 = vpow.pop %v3315
    %v3317 = vmul.f32 %v3040, 1.442695
    %v3318 = vpow.pop %v3317
    %v3319 = vmul.f32 %v3041, 1.442695
    %v3320 = vpow.pop %v3319
    %v3321 = vmul.f32 %v3042, 1.442695
    %v3322 = vpow.pop %v3321
    %v3323 = vmul.f32 %v3043, 1.442695
    %v3324 = vpow.pop %v3323
    %v3325 = vmul.f32 %v3044, 1.442695
    %v3326 = vpow.pop %v3325
    %v3327 = vmul.f32 %v3045, 1.442695
    %v3328 = vpow.pop %v3327
    %v3329 = vmul.f32 %v3046, 1.442695
    %v3330 = vpow.pop %v3329
    %v3331 = vmul.f32 %v3047, 1.442695
    %v3332 = vpow.pop %v3331
    %v3333 = vmul.f32 %v3048, 1.442695
    %v3334 = vpow.pop %v3333
    %v3335 = vmul.f32 %v3049, 1.442695
    %v3336 = vpow.pop %v3335
    %v3337 = vmul.f32 %v3050, 1.442695
    %v3338 = vpow.pop %v3337
    %v3339 = vmul.f32 %v3051, 1.442695
    %v3340 = vpow.pop %v3339
    %v3341 = vmul.f32 %v3052, 1.442695
    %v3342 = vpow.pop %v3341
    %v3343 = vmul.f32 %v3053, 1.442695
    %v3344 = vpow.pop %v3343
    %v3345 = vmul.f32 %v3054, 1.442695
    %v3346 = vpow.pop %v3345
    %v3347 = vmul.f32 %v3055, 1.442695
    %v3348 = vpow.pop %v3347
    %v3349 = vmul.f32 %v3056, 1.442695
    %v3350 = vpow.pop %v3349
    %v3351 = vmul.f32 %v3057, 1.442695
    %v3352 = vpow.pop %v3351
    %v3353 = vmul.f32 %v3058, 1.442695
    %v3354 = vpow.pop %v3353
    %v3355 = vmul.f32 %v3059, 1.442695
    %v3356 = vpow.pop %v3355
    %v3357 = vmul.f32 %v3060, 1.442695
    %v3358 = vpow.pop %v3357
    %v3359 = vmul.f32 %v3061, 1.442695
    %v3360 = vpow.pop %v3359
    %v3361 = vmul.f32 %v3062, 1.442695
    %v3362 = vpow.pop %v3361
    %v3363 = vmul.f32 %v3063, 1.442695
    %v3364 = vpow.pop %v3363
    %v3365 = vmul.f32 %v3064, 1.442695
    %v3366 = vpow.pop %v3365
    %v3367 = vmul.f32 %v3065, 1.442695
    %v3368 = vpow.pop %v3367
    %v3369 = vmul.f32 %v3066, 1.442695
    %v3370 = vpow.pop %v3369
    %v3371 = vmul.f32 %v3067, 1.442695
    %v3372 = vpow.pop %v3371
    %v3373 = vmul.f32 %v3068, 1.442695
    %v3374 = vpow.pop %v3373
    %v3375 = vmul.f32 %v3069, 1.442695
    %v3376 = vpow.pop %v3375
    %v3377 = vmul.f32 %v3070, 1.442695
    %v3378 = vpow.pop %v3377
    %v3379 = vmul.f32 %v3071, 1.442695
    %v3380 = vpow.pop %v3379
    %v3381 = vmul.f32 %v3072, 1.442695
    %v3382 = vpow.pop %v3381
    %v3383 = vmul.f32 %v3073, 1.442695
    %v3384 = vpow.pop %v3383
    %v3385 = vmul.f32 %v3074, 1.442695
    %v3386 = vpow.pop %v3385
    %v3387 = vmul.f32 %v3075, 1.442695
    %v3388 = vpow.pop %v3387
    %v3389 = vmul.f32 %v3076, 1.442695
    %v3390 = vpow.pop %v3389
    %v3391 = vmul.f32 %v3077, 1.442695
    %v3392 = vpow.pop %v3391
    %v3393 = vmul.f32 %v3078, 1.442695
    %v3394 = vpow.pop %v3393
    %v3395 = vmul.f32 %v3079, 1.442695
    %v3396 = vpow.pop %v3395
    %v3397 = vmul.f32 %v3080, 1.442695
    %v3398 = vpow.pop %v3397
    %v3399 = vmul.f32 %v3081, 1.442695
    %v3400 = vpow.pop %v3399
    %v3401 = vmul.f32 %v3082, 1.442695
    %v3402 = vpow.pop %v3401
    %v3403 = vmul.f32 %v3083, 1.442695
    %v3404 = vpow.pop %v3403
    %v3405 = vmul.f32 %v3084, 1.442695
    %v3406 = vpow.pop %v3405
    %v3407 = vmul.f32 %v3085, 1.442695
    %v3408 = vpow.pop %v3407
    %v3409 = vmul.f32 %v3086, 1.442695
    %v3410 = vpow.pop %v3409
    %v3411 = vmul.f32 %v3087, 1.442695
    %v3412 = vpow.pop %v3411
    %v3413 = vmul.f32 %v3088, 1.442695
    %v3414 = vpow.pop %v3413
    %v3415 = vmul.f32 %v3089, 1.442695
    %v3416 = vpow.pop %v3415
    %v3417 = vmul.f32 %v3090, 1.442695
    %v3418 = vpow.pop %v3417
    %v3419 = vmul.f32 %v3091, 1.442695
    %v3420 = vpow.pop %v3419
    %v3421 = vmul.f32 %v3092, 1.442695
    %v3422 = vpow.pop %v3421
    %v3423 = vmul.f32 %v3093, 1.442695
    %v3424 = vpow.pop %v3423
    %v3425 = vmul.f32 %v3094, 1.442695
    %v3426 = vpow.pop %v3425
    %v3427 = vmul.f32 %v3095, 1.442695
    %v3428 = vpow.pop %v3427
    %v3429 = vmul.f32 %v3096, 1.442695
    %v3430 = vpow.pop %v3429
    %v3431 = vmul.f32 %v3097, 1.442695
    %v3432 = vpow.pop %v3431
    %v3433 = vmul.f32 %v3098, 1.442695
    %v3434 = vpow.pop %v3433
    %v3435 = vmul.f32 %v3099, 1.442695
    %v3436 = vpow.pop %v3435
    %v3437 = vmul.f32 %v3100, 1.442695
    %v3438 = vpow.pop %v3437
    %v3439 = vmul.f32 %v3101, 1.442695
    %v3440 = vpow.pop %v3439
    %v3441 = vmul.f32 %v3102, 1.442695
    %v3442 = vpow.pop %v3441
    %v3443 = vmul.f32 %v3103, 1.442695
    %v3444 = vpow.pop %v3443
    %v3445 = vmul.f32 %v3104, 1.442695
    %v3446 = vpow.pop %v3445
    %v3447 = vmul.f32 %v3105, 1.442695
    %v3448 = vpow.pop %v3447
    %v3449 = vmul.f32 %v3106, 1.442695
    %v3450 = vpow.pop %v3449
    %v3451 = vmul.f32 %v3107, 1.442695
    %v3452 = vpow.pop %v3451
    %v3453 = vmul.f32 %v3108, 1.442695
    %v3454 = vpow.pop %v3453
    %v3455 = vmul.f32 %v3109, 1.442695
    %v3456 = vpow.pop %v3455
    %v3457 = vmul.f32 %v3110, 1.442695
    %v3458 = vpow.pop %v3457
    %v3459 = vmul.f32 %v3111, 1.442695
    %v3460 = vpow.pop %v3459
    %v3461 = vmul.f32 %v3112, 1.442695
    %v3462 = vpow.pop %v3461
    %v3463 = vmul.f32 %v3113, 1.442695
    %v3464 = vpow.pop %v3463
    %v3465 = vmul.f32 %v3114, 1.442695
    %v3466 = vpow.pop %v3465
    %v3467 = vmul.f32 %v3115, 1.442695
    %v3468 = vpow.pop %v3467
    %v3469 = vmul.f32 %v3116, 1.442695
    %v3470 = vpow.pop %v3469
    %v3471 = vmul.f32 %v3117, 1.442695
    %v3472 = vpow.pop %v3471
    %v3473 = vmul.f32 %v3118, 1.442695
    %v3474 = vpow.pop %v3473
    %v3475 = vmul.f32 %v3119, 1.442695
    %v3476 = vpow.pop %v3475
    %v3477 = vmul.f32 %v3120, 1.442695
    %v3478 = vpow.pop %v3477
    %v3479 = vmul.f32 %v3121, 1.442695
    %v3480 = vpow.pop %v3479
    %v3481 = vmul.f32 %v3122, 1.442695
    %v3482 = vpow.pop %v3481
    %v3483 = vmul.f32 %v3123, 1.442695
    %v3484 = vpow.pop %v3483
    %v3485 = vmul.f32 %v3124, 1.442695
    %v3486 = vpow.pop %v3485
    %v3487 = vmul.f32 %v3125, 1.442695
    %v3488 = vpow.pop %v3487
    %v3489 = vmul.f32 %v3126, 1.442695
    %v3490 = vpow.pop %v3489
    %v3491 = vmul.f32 %v3127, 1.442695
    %v3492 = vpow.pop %v3491
    %v3493 = vmul.f32 %v3128, 1.442695
    %v3494 = vpow.pop %v3493
    %v3495 = vmul.f32 %v3129, 1.442695
    %v3496 = vpow.pop %v3495
    %v3497 = vmul.f32 %v3130, 1.442695
    %v3498 = vpow.pop %v3497
    %v3499 = vmul.f32 %v3131, 1.442695
    %v3500 = vpow.pop %v3499
    %v3501 = vmul.f32 %v3132, 1.442695
    %v3502 = vpow.pop %v3501
    %v3503 = vmul.f32 %v3133, 1.442695
    %v3504 = vpow.pop %v3503
    %v3505 = vmul.f32 %v3134, 1.442695
    %v3506 = vpow.pop %v3505
    %v3507 = vmul.f32 %v3135, 1.442695
    %v3508 = vpow.pop %v3507
    %v3509 = vmul.f32 %v3136, 1.442695
    %v3510 = vpow.pop %v3509
    %v3511 = vmul.f32 %v3137, 1.442695
    %v3512 = vpow.pop %v3511
    %v3513 = vmul.f32 %v3138, 1.442695
    %v3514 = vpow.pop %v3513
    %v3515 = vmul.f32 %v3139, 1.442695
    %v3516 = vpow.pop %v3515
    %v3517 = vmul.f32 %v3140, 1.442695
    %v3518 = vpow.pop %v3517
    %v3519 = vmul.f32 %v3141, 1.442695
    %v3520 = vpow.pop %v3519
    %v3521 = vmul.f32 %v3142, 1.442695
    %v3522 = vpow.pop %v3521
    %v3523 = vmul.f32 %v3143, 1.442695
    %v3524 = vpow.pop %v3523
    %v3525 = vmul.f32 %v3144, 1.442695
    %v3526 = vpow.pop %v3525
    %v3527 = vmul.f32 %v3145, 1.442695
    %v3528 = vpow.pop %v3527
    %v3529 = vmul.f32 %v3146, 1.442695
    %v3530 = vpow.pop %v3529
    %v3531 = vmul.f32 %v3147, 1.442695
    %v3532 = vpow.pop %v3531
    %v3533 = vmul.f32 %v3148, 1.442695
    %v3534 = vpow.pop %v3533
    %v3535 = vmul.f32 %v3149, 1.442695
    %v3536 = vpow.pop %v3535
    %v3537 = vmul.f32 %v3150, 1.442695
    %v3538 = vpow.pop %v3537
    %v3539 = vmul.f32 %v3151, 1.442695
    %v3540 = vpow.pop %v3539
    %v3541 = vmul.f32 %v3152, 1.442695
    %v3542 = vpow.pop %v3541
    %v3543 = vmul.f32 %v3153, 1.442695
    %v3544 = vpow.pop %v3543
    %v3545 = vmul.f32 %v3154, 1.442695
    %v3546 = vpow.pop %v3545
    %v3547 = vmul.f32 %v3155, 1.442695
    %v3548 = vpow.pop %v3547
    %v3549 = vmul.f32 %v3156, 1.442695
    %v3550 = vpow.pop %v3549
    %v3551 = vmul.f32 %v3157, 1.442695
    %v3552 = vpow.pop %v3551
    %v3553 = vmul.f32 %v3158, 1.442695
    %v3554 = vpow.pop %v3553
    %v3555 = vmul.f32 %v3159, 1.442695
    %v3556 = vpow.pop %v3555
    %v3557 = vmul.f32 %v3160, 1.442695
    %v3558 = vpow.pop %v3557
    %v3559 = vmul.f32 %v3161, 1.442695
    %v3560 = vpow.pop %v3559
    %v3561 = vmul.f32 %v3162, 1.442695
    %v3562 = vpow.pop %v3561
    %v3563 = vmul.f32 %v3163, 1.442695
    %v3564 = vpow.pop %v3563
    %v3565 = vmul.f32 %v3164, 1.442695
    %v3566 = vpow.pop %v3565
    %v3567 = vmul.f32 %v3165, 1.442695
    %v3568 = vpow.pop %v3567
    %v3569 = vmul.f32 %v3166, 1.442695
    %v3570 = vpow.pop %v3569
    %v3571 = vmul.f32 %v3167, 1.442695
    %v3572 = vpow.pop %v3571
    %v3573 = vmul.f32 %v3168, 1.442695
    %v3574 = vpow.pop %v3573
    %v3575 = vmul.f32 %v3169, 1.442695
    %v3576 = vpow.pop %v3575
    %v3577 = vmul.f32 %v3170, 1.442695
    %v3578 = vpow.pop %v3577
    %v3579 = vmul.f32 %v3171, 1.442695
    %v3580 = vpow.pop %v3579
    %v3581 = vmul.f32 %v3172, 1.442695
    %v3582 = vpow.pop %v3581
    %v3583 = vmul.f32 %v3173, 1.442695
    %v3584 = vpow.pop %v3583
    %v3585 = vmul.f32 %v3174, 1.442695
    %v3586 = vpow.pop %v3585
    %v3587 = vmul.f32 %v3175, 1.442695
    %v3588 = vpow.pop %v3587
    %v3589 = vmul.f32 %v3176, 1.442695
    %v3590 = vpow.pop %v3589
    %v3591 = vmul.f32 %v3177, 1.442695
    %v3592 = vpow.pop %v3591
    %v3593 = vmul.f32 %v3178, 1.442695
    %v3594 = vpow.pop %v3593
    %v3595 = vld [vmem:[#allocation6] sm:$0xff]
    %v3596 = vld [vmem:[#allocation6 + $0x8] sm:$0xff]
    %v3597 = vld [vmem:[#allocation6 + $0x10] sm:$0xff]
    %v3598 = vld [vmem:[#allocation6 + $0x18] sm:$0xff]
    %v3599 = vld [vmem:[#allocation6 + $0x20] sm:$0xff]
    %v3600 = vld [vmem:[#allocation6 + $0x28] sm:$0xff]
    %v3601 = vld [vmem:[#allocation6 + $0x30] sm:$0xff]
    %v3602 = vld [vmem:[#allocation6 + $0x38] sm:$0xff]
    %v3603 = vld [vmem:[#allocation6 + $0x40] sm:$0xff]
    %v3604 = vld [vmem:[#allocation6 + $0x48] sm:$0xff]
    %v3605 = vld [vmem:[#allocation6 + $0x50] sm:$0xff]
    %v3606 = vld [vmem:[#allocation6 + $0x58] sm:$0xff]
    %v3607 = vld [vmem:[#allocation6 + $0x60] sm:$0xff]
    %v3608 = vld [vmem:[#allocation6 + $0x68] sm:$0xff]
    %v3609 = vld [vmem:[#allocation6 + $0x70] sm:$0xff]
    %v3610 = vld [vmem:[#allocation6 + $0x78] sm:$0xff]
    %v3611 = vld [vmem:[#allocation6 + $0x80] sm:$0xff]
    %v3612 = vld [vmem:[#allocation6 + $0x88] sm:$0xff]
    %v3613 = vld [vmem:[#allocation6 + $0x90] sm:$0xff]
    %v3614 = vld [vmem:[#allocation6 + $0x98] sm:$0xff]
    %v3615 = vld [vmem:[#allocation6 + $0xa0] sm:$0xff]
    %v3616 = vld [vmem:[#allocation6 + $0xa8] sm:$0xff]
    %v3617 = vld [vmem:[#allocation6 + $0xb0] sm:$0xff]
    %v3618 = vld [vmem:[#allocation6 + $0xb8] sm:$0xff]
    %v3619 = vld [vmem:[#allocation6 + $0xc0] sm:$0xff]
    %v3620 = vld [vmem:[#allocation6 + $0xc8] sm:$0xff]
    %v3621 = vld [vmem:[#allocation6 + $0xd0] sm:$0xff]
    %v3622 = vld [vmem:[#allocation6 + $0xd8] sm:$0xff]
    %v3623 = vld [vmem:[#allocation6 + $0xe0] sm:$0xff]
    %v3624 = vld [vmem:[#allocation6 + $0xe8] sm:$0xff]
    %v3625 = vld [vmem:[#allocation6 + $0xf0] sm:$0xff]
    %v3626 = vld [vmem:[#allocation6 + $0xf8] sm:$0xff]
    %v3627 = vld [vmem:[#allocation6 + $0x100] sm:$0xff]
    %v3628 = vld [vmem:[#allocation6 + $0x108] sm:$0xff]
    %v3629 = vld [vmem:[#allocation6 + $0x110] sm:$0xff]
    %v3630 = vld [vmem:[#allocation6 + $0x118] sm:$0xff]
    %v3631 = vld [vmem:[#allocation6 + $0x120] sm:$0xff]
    %v3632 = vld [vmem:[#allocation6 + $0x128] sm:$0xff]
    %v3633 = vld [vmem:[#allocation6 + $0x130] sm:$0xff]
    %v3634 = vld [vmem:[#allocation6 + $0x138] sm:$0xff]
    %v3635 = vld [vmem:[#allocation6 + $0x140] sm:$0xff]
    %v3636 = vld [vmem:[#allocation6 + $0x148] sm:$0xff]
    %v3637 = vld [vmem:[#allocation6 + $0x150] sm:$0xff]
    %v3638 = vld [vmem:[#allocation6 + $0x158] sm:$0xff]
    %v3639 = vld [vmem:[#allocation6 + $0x160] sm:$0xff]
    %v3640 = vld [vmem:[#allocation6 + $0x168] sm:$0xff]
    %v3641 = vld [vmem:[#allocation6 + $0x170] sm:$0xff]
    %v3642 = vld [vmem:[#allocation6 + $0x178] sm:$0xff]
    %v3643 = vld [vmem:[#allocation6 + $0x180] sm:$0xff]
    %v3644 = vld [vmem:[#allocation6 + $0x188] sm:$0xff]
    %v3645 = vld [vmem:[#allocation6 + $0x190] sm:$0xff]
    %v3646 = vld [vmem:[#allocation6 + $0x198] sm:$0xff]
    %v3647 = vld [vmem:[#allocation6 + $0x1a0] sm:$0xff]
    %v3648 = vld [vmem:[#allocation6 + $0x1a8] sm:$0xff]
    %v3649 = vld [vmem:[#allocation6 + $0x1b0] sm:$0xff]
    %v3650 = vld [vmem:[#allocation6 + $0x1b8] sm:$0xff]
    %v3651 = vld [vmem:[#allocation6 + $0x1c0] sm:$0xff]
    %v3652 = vld [vmem:[#allocation6 + $0x1c8] sm:$0xff]
    %v3653 = vld [vmem:[#allocation6 + $0x1d0] sm:$0xff]
    %v3654 = vld [vmem:[#allocation6 + $0x1d8] sm:$0xff]
    %v3655 = vld [vmem:[#allocation6 + $0x1e0] sm:$0xff]
    %v3656 = vld [vmem:[#allocation6 + $0x1e8] sm:$0xff]
    %v3657 = vld [vmem:[#allocation6 + $0x1f0] sm:$0xff]
    %v3658 = vld [vmem:[#allocation6 + $0x1f8] sm:$0xff]
    %v3659 = vld [vmem:[#allocation6 + $0x200] sm:$0xff]
    %v3660 = vld [vmem:[#allocation6 + $0x208] sm:$0xff]
    %v3661 = vld [vmem:[#allocation6 + $0x210] sm:$0xff]
    %v3662 = vld [vmem:[#allocation6 + $0x218] sm:$0xff]
    %v3663 = vld [vmem:[#allocation6 + $0x220] sm:$0xff]
    %v3664 = vld [vmem:[#allocation6 + $0x228] sm:$0xff]
    %v3665 = vld [vmem:[#allocation6 + $0x230] sm:$0xff]
    %v3666 = vld [vmem:[#allocation6 + $0x238] sm:$0xff]
    %v3667 = vld [vmem:[#allocation6 + $0x240] sm:$0xff]
    %v3668 = vld [vmem:[#allocation6 + $0x248] sm:$0xff]
    %v3669 = vld [vmem:[#allocation6 + $0x250] sm:$0xff]
    %v3670 = vld [vmem:[#allocation6 + $0x258] sm:$0xff]
    %v3671 = vld [vmem:[#allocation6 + $0x260] sm:$0xff]
    %v3672 = vld [vmem:[#allocation6 + $0x268] sm:$0xff]
    %v3673 = vld [vmem:[#allocation6 + $0x270] sm:$0xff]
    %v3674 = vld [vmem:[#allocation6 + $0x278] sm:$0xff]
    %v3675 = vld [vmem:[#allocation6 + $0x280] sm:$0xff]
    %v3676 = vld [vmem:[#allocation6 + $0x288] sm:$0xff]
    %v3677 = vld [vmem:[#allocation6 + $0x290] sm:$0xff]
    %v3678 = vld [vmem:[#allocation6 + $0x298] sm:$0xff]
    %v3679 = vld [vmem:[#allocation6 + $0x2a0] sm:$0xff]
    %v3680 = vld [vmem:[#allocation6 + $0x2a8] sm:$0xff]
    %v3681 = vld [vmem:[#allocation6 + $0x2b0] sm:$0xff]
    %v3682 = vld [vmem:[#allocation6 + $0x2b8] sm:$0xff]
    %v3683 = vld [vmem:[#allocation6 + $0x2c0] sm:$0xff]
    %v3684 = vld [vmem:[#allocation6 + $0x2c8] sm:$0xff]
    %v3685 = vld [vmem:[#allocation6 + $0x2d0] sm:$0xff]
    %v3686 = vld [vmem:[#allocation6 + $0x2d8] sm:$0xff]
    %v3687 = vld [vmem:[#allocation6 + $0x2e0] sm:$0xff]
    %v3688 = vld [vmem:[#allocation6 + $0x2e8] sm:$0xff]
    %v3689 = vld [vmem:[#allocation6 + $0x2f0] sm:$0xff]
    %v3690 = vld [vmem:[#allocation6 + $0x2f8] sm:$0xff]
    %v3691 = vld [vmem:[#allocation6 + $0x300] sm:$0xff]
    %v3692 = vld [vmem:[#allocation6 + $0x308] sm:$0xff]
    %v3693 = vld [vmem:[#allocation6 + $0x310] sm:$0xff]
    %v3694 = vld [vmem:[#allocation6 + $0x318] sm:$0xff]
    %v3695 = vld [vmem:[#allocation6 + $0x320] sm:$0xff]
    %v3696 = vld [vmem:[#allocation6 + $0x328] sm:$0xff]
    %v3697 = vld [vmem:[#allocation6 + $0x330] sm:$0xff]
    %v3698 = vld [vmem:[#allocation6 + $0x338] sm:$0xff]
    %v3699 = vld [vmem:[#allocation6 + $0x340] sm:$0xff]
    %v3700 = vld [vmem:[#allocation6 + $0x348] sm:$0xff]
    %v3701 = vld [vmem:[#allocation6 + $0x350] sm:$0xff]
    %v3702 = vld [vmem:[#allocation6 + $0x358] sm:$0xff]
    %v3703 = vld [vmem:[#allocation6 + $0x360] sm:$0xff]
    %v3704 = vld [vmem:[#allocation6 + $0x368] sm:$0xff]
    %v3705 = vld [vmem:[#allocation6 + $0x370] sm:$0xff]
    %v3706 = vld [vmem:[#allocation6 + $0x378] sm:$0xff]
    %v3707 = vld [vmem:[#allocation6 + $0x380] sm:$0xff]
    %v3708 = vld [vmem:[#allocation6 + $0x388] sm:$0xff]
    %v3709 = vld [vmem:[#allocation6 + $0x390] sm:$0xff]
    %v3710 = vld [vmem:[#allocation6 + $0x398] sm:$0xff]
    %v3711 = vld [vmem:[#allocation6 + $0x3a0] sm:$0xff]
    %v3712 = vld [vmem:[#allocation6 + $0x3a8] sm:$0xff]
    %v3713 = vld [vmem:[#allocation6 + $0x3b0] sm:$0xff]
    %v3714 = vld [vmem:[#allocation6 + $0x3b8] sm:$0xff]
    %v3715 = vld [vmem:[#allocation6 + $0x3c0] sm:$0xff]
    %v3716 = vld [vmem:[#allocation6 + $0x3c8] sm:$0xff]
    %v3717 = vld [vmem:[#allocation6 + $0x3d0] sm:$0xff]
    %v3718 = vld [vmem:[#allocation6 + $0x3d8] sm:$0xff]
    %v3719 = vld [vmem:[#allocation6 + $0x3e0] sm:$0xff]
    %v3720 = vld [vmem:[#allocation6 + $0x3e8] sm:$0xff]
    %v3721 = vld [vmem:[#allocation6 + $0x3f0] sm:$0xff]
    %v3722 = vld [vmem:[#allocation6 + $0x3f8] sm:$0xff]
    %v3723 = vld [vmem:[#allocation6 + $0x400] sm:$0xff]
    %v3724 = vld [vmem:[#allocation6 + $0x408] sm:$0xff]
    %v3725 = vld [vmem:[#allocation6 + $0x410] sm:$0xff]
    %v3726 = vld [vmem:[#allocation6 + $0x418] sm:$0xff]
    %v3727 = vld [vmem:[#allocation6 + $0x420] sm:$0xff]
    %v3728 = vld [vmem:[#allocation6 + $0x428] sm:$0xff]
    %v3729 = vld [vmem:[#allocation6 + $0x430] sm:$0xff]
    %v3730 = vld [vmem:[#allocation6 + $0x438] sm:$0xff]
    %v3731 = vld [vmem:[#allocation6 + $0x440] sm:$0xff]
    %v3732 = vld [vmem:[#allocation6 + $0x448] sm:$0xff]
    %v3733 = vld [vmem:[#allocation6 + $0x450] sm:$0xff]
    %v3734 = vld [vmem:[#allocation6 + $0x458] sm:$0xff]
    %v3735 = vld [vmem:[#allocation6 + $0x460] sm:$0xff]
    %v3736 = vld [vmem:[#allocation6 + $0x468] sm:$0xff]
    %v3737 = vld [vmem:[#allocation6 + $0x470] sm:$0xff]
    %v3738 = vld [vmem:[#allocation6 + $0x478] sm:$0xff]
    %v3739 = vld [vmem:[#allocation6 + $0x480] sm:$0xff]
    %v3740 = vld [vmem:[#allocation6 + $0x488] sm:$0xff]
    %v3741 = vld [vmem:[#allocation6 + $0x490] sm:$0xff]
    %v3742 = vld [vmem:[#allocation6 + $0x498] sm:$0xff]
    %v3743 = vld [vmem:[#allocation6 + $0x4a0] sm:$0xff]
    %v3744 = vld [vmem:[#allocation6 + $0x4a8] sm:$0xff]
    %v3745 = vld [vmem:[#allocation6 + $0x4b0] sm:$0xff]
    %v3746 = vld [vmem:[#allocation6 + $0x4b8] sm:$0xff]
    %v3747 = vld [vmem:[#allocation6 + $0x4c0] sm:$0xff]
    %v3748 = vld [vmem:[#allocation6 + $0x4c8] sm:$0xff]
    %v3749 = vld [vmem:[#allocation6 + $0x4d0] sm:$0xff]
    %v3750 = vld [vmem:[#allocation6 + $0x4d8] sm:$0xff]
    %v3751 = vld [vmem:[#allocation6 + $0x4e0] sm:$0xff]
    %v3752 = vld [vmem:[#allocation6 + $0x4e8] sm:$0xff]
    %v3753 = vld [vmem:[#allocation6 + $0x4f0] sm:$0xff]
    %v3754 = vld [vmem:[#allocation6 + $0x4f8] sm:$0xff]
    %v3755 = vld [vmem:[#allocation6 + $0x500] sm:$0xff]
    %v3756 = vld [vmem:[#allocation6 + $0x508] sm:$0xff]
    %v3757 = vld [vmem:[#allocation6 + $0x510] sm:$0xff]
    %v3758 = vld [vmem:[#allocation6 + $0x518] sm:$0xff]
    %v3759 = vld [vmem:[#allocation6 + $0x520] sm:$0xff]
    %v3760 = vld [vmem:[#allocation6 + $0x528] sm:$0xff]
    %v3761 = vld [vmem:[#allocation6 + $0x530] sm:$0xff]
    %v3762 = vld [vmem:[#allocation6 + $0x538] sm:$0xff]
    %v3763 = vld [vmem:[#allocation6 + $0x540] sm:$0xff]
    %v3764 = vld [vmem:[#allocation6 + $0x548] sm:$0xff]
    %v3765 = vld [vmem:[#allocation6 + $0x550] sm:$0xff]
    %v3766 = vld [vmem:[#allocation6 + $0x558] sm:$0xff]
    %v3767 = vld [vmem:[#allocation6 + $0x560] sm:$0xff]
    %v3768 = vld [vmem:[#allocation6 + $0x568] sm:$0xff]
    %v3769 = vld [vmem:[#allocation6 + $0x570] sm:$0xff]
    %v3770 = vld [vmem:[#allocation6 + $0x578] sm:$0xff]
    %v3771 = vld [vmem:[#allocation6 + $0x580] sm:$0xff]
    %v3772 = vld [vmem:[#allocation6 + $0x588] sm:$0xff]
    %v3773 = vld [vmem:[#allocation6 + $0x590] sm:$0xff]
    %v3774 = vld [vmem:[#allocation6 + $0x598] sm:$0xff]
    %v3775 = vld [vmem:[#allocation6 + $0x5a0] sm:$0xff]
    %v3776 = vld [vmem:[#allocation6 + $0x5a8] sm:$0xff]
    %v3777 = vld [vmem:[#allocation6 + $0x5b0] sm:$0xff]
    %v3778 = vld [vmem:[#allocation6 + $0x5b8] sm:$0xff]
    %v3779 = vld [vmem:[#allocation6 + $0x5c0] sm:$0xff]
    %v3780 = vld [vmem:[#allocation6 + $0x5c8] sm:$0xff]
    %v3781 = vld [vmem:[#allocation6 + $0x5d0] sm:$0xff]
    %v3782 = vld [vmem:[#allocation6 + $0x5d8] sm:$0xff]
    %v3783 = vld [vmem:[#allocation6 + $0x5e0] sm:$0xff]
    %v3784 = vld [vmem:[#allocation6 + $0x5e8] sm:$0xff]
    %v3785 = vld [vmem:[#allocation6 + $0x5f0] sm:$0xff]
    %v3786 = vld [vmem:[#allocation6 + $0x5f8] sm:$0xff]
    %v3787 = vld [vmem:[#allocation6 + $0x600] sm:$0xff]
    %v3788 = vld [vmem:[#allocation6 + $0x608] sm:$0xff]
    %v3789 = vld [vmem:[#allocation6 + $0x610] sm:$0xff]
    %v3790 = vld [vmem:[#allocation6 + $0x618] sm:$0xff]
    %v3791 = vld [vmem:[#allocation6 + $0x620] sm:$0xff]
    %v3792 = vld [vmem:[#allocation6 + $0x628] sm:$0xff]
    %v3793 = vld [vmem:[#allocation6 + $0x630] sm:$0xff]
    %v3794 = vld [vmem:[#allocation6 + $0x638] sm:$0xff]
    %v3795 = vld [vmem:[#allocation6 + $0x640] sm:$0xff]
    %v3796 = vld [vmem:[#allocation6 + $0x648] sm:$0xff]
    %v3797 = vld [vmem:[#allocation6 + $0x650] sm:$0xff]
    %v3798 = vld [vmem:[#allocation6 + $0x658] sm:$0xff]
    %v3799 = vld [vmem:[#allocation6 + $0x660] sm:$0xff]
    %v3800 = vld [vmem:[#allocation6 + $0x668] sm:$0xff]
    %v3801 = vld [vmem:[#allocation6 + $0x670] sm:$0xff]
    %v3802 = vld [vmem:[#allocation6 + $0x678] sm:$0xff]
    %3803 = vmatprep.subr.mxu0 0.0
    %3804 = vmatpush1.msra.mxu0 %v3180
    %3805 = vmatprep.subr.mxu0 0.0
    %3806 = vmatpush1.msra.mxu0 %v3182
    %3807 = vmatprep.subr.mxu0 0.0
    %3808 = vmatpush1.msra.mxu0 %v3184
    %3809 = vmatprep.subr.mxu0 0.0
    %3810 = vmatpush1.msra.mxu0 %v3186
    %3811 = vmatprep.subr.mxu0 0.0
    %3812 = vmatpush1.msra.mxu0 %v3188
    %3813 = vmatprep.subr.mxu0 0.0
    %3814 = vmatpush1.msra.mxu0 %v3190
    %3815 = vmatprep.subr.mxu0 0.0
    %3816 = vmatpush1.msra.mxu0 %v3192
    %3817 = vmatprep.subr.mxu0 0.0
    %3818 = vmatpush1.msra.mxu0 %v3194
    %3819 = vmatprep.subr.mxu0 0.0
    %3820 = vmatpush1.msra.mxu0 %v3196
    %3821 = vmatprep.subr.mxu0 0.0
    %3822 = vmatpush1.msra.mxu0 %v3198
    %3823 = vmatprep.subr.mxu0 0.0
    %3824 = vmatpush1.msra.mxu0 %v3200
    %3825 = vmatprep.subr.mxu0 0.0
    %3826 = vmatpush1.msra.mxu0 %v3202
    %3827 = vmatprep.subr.mxu0 0.0
    %3828 = vmatpush1.msra.mxu0 %v3204
    %3829 = vmatprep.subr.mxu0 0.0
    %3830 = vmatpush1.msra.mxu0 %v3206
    %3831 = vmatprep.subr.mxu0 0.0
    %3832 = vmatpush1.msra.mxu0 %v3208
    %3833 = vmatprep.subr.mxu0 0.0
    %3834 = vmatpush1.msra.mxu0 %v3210
    %3835 = vmatprep.subr.mxu0 0.0
    %3836 = vmatpush1.msra.mxu0 %v3212
    %3837 = vmatprep.subr.mxu0 0.0
    %3838 = vmatpush1.msra.mxu0 %v3214
    %3839 = vmatprep.subr.mxu0 0.0
    %3840 = vmatpush1.msra.mxu0 %v3216
    %3841 = vmatprep.subr.mxu0 0.0
    %3842 = vmatpush1.msra.mxu0 %v3218
    %3843 = vmatprep.subr.mxu0 0.0
    %3844 = vmatpush1.msra.mxu0 %v3220
    %3845 = vmatprep.subr.mxu0 0.0
    %3846 = vmatpush1.msra.mxu0 %v3222
    %3847 = vmatprep.subr.mxu0 0.0
    %3848 = vmatpush1.msra.mxu0 %v3224
    %3849 = vmatprep.subr.mxu0 0.0
    %3850 = vmatpush1.msra.mxu0 %v3226
    %3851 = vmatprep.subr.mxu0 0.0
    %3852 = vmatpush1.msra.mxu0 %v3228
    %3853 = vmatprep.subr.mxu0 0.0
    %3854 = vmatpush1.msra.mxu0 %v3230
    %3855 = vmatprep.subr.mxu0 0.0
    %3856 = vmatpush1.msra.mxu0 %v3232
    %3857 = vmatprep.subr.mxu0 0.0
    %3858 = vmatpush1.msra.mxu0 %v3234
    %3859 = vmatprep.subr.mxu0 0.0
    %3860 = vmatpush1.msra.mxu0 %v3236
    %3861 = vmatprep.subr.mxu0 0.0
    %3862 = vmatpush1.msra.mxu0 %v3238
    %3863 = vmatprep.subr.mxu0 0.0
    %3864 = vmatpush1.msra.mxu0 %v3240
    %3865 = vmatprep.subr.mxu0 0.0
    %3866 = vmatpush1.msra.mxu0 %v3242
    %3867 = vmatprep.mubr.f32.mxu0 %v3596
    %3868 = vmatmul.mubr.f32.gmra.mrb[0].mxu0 %v3595
    %v3869 = vpop.f32.mrb[0].mxu0
    %v3870 = vadd.f32 0.0, %v3869
    %v3871 = vpop.f32.mrb[0].mxu0
    %3872 = vmatprep.mubr.f32.mxu0 %v3609
    %3873 = vmatmul.mubr.f32.gmra.mrb[0].mxu0 %v3608
    %v3874 = vpop.f32.mrb[0].mxu0
    %v3875 = vadd.f32 0.0, %v3874
    %v3876 = vpop.f32.mrb[0].mxu0
    %3877 = vmatprep.mubr.f32.mxu0 %v3622
    %3878 = vmatmul.mubr.f32.gmra.mrb[0].mxu0 %v3621
    %v3879 = vpop.f32.mrb[0].mxu0
    %v3880 = vadd.f32 0.0, %v3879
    %v3881 = vpop.f32.mrb[0].mxu0
    %3882 = vmatprep.mubr.f32.mxu0 %v3635
    %3883 = vmatmul.mubr.f32.gmra.mrb[0].mxu0 %v3634
    %v3884 = vpop.f32.mrb[0].mxu0
    %v3885 = vadd.f32 0.0, %v3884
    %v3886 = vpop.f32.mrb[0].mxu0
    %3887 = vmatprep.mubr.f32.mxu0 %v3648
    %3888 = vmatmul.mubr.f32.gmra.mrb[0].mxu0 %v3647
    %v3889 = vpop.f32.mrb[0].mxu0
    %v3890 = vadd.f32 0.0, %v3889
    %v3891 = vpop.f32.mrb[0].mxu0
    %3892 = vmatprep.mubr.f32.mxu0 %v3661
    %3893 = vmatmul.mubr.f32.gmra.mrb[0].mxu0 %v3660
    %v3894 = vpop.f32.mrb[0].mxu0
    %v3895 = vadd.f32 0.0, %v3894
    %v3896 = vpop.f32.mrb[0].mxu0
    %3897 = vmatprep.mubr.f32.mxu0 %v3674
    %3898 = vmatmul.mubr.f32.gmra.mrb[0].mxu0 %v3673
    %v3899 = vpop.f32.mrb[0].mxu0
    %v3900 = vadd.f32 0.0, %v3899
    %v3901 = vpop.f32.mrb[0].mxu0
    %3902 = vmatprep.mubr.f32.mxu0 %v3687
    %3903 = vmatmul.mubr.f32.gmra.mrb[0].mxu0 %v3686
    %v3904 = vpop.f32.mrb[0].mxu0
    %v3905 = vadd.f32 0.0, %v3904
    %v3906 = vpop.f32.mrb[0].mxu0
    %3907 = vmatprep.mubr.f32.mxu0 %v3700
    %3908 = vmatmul.mubr.f32.gmra.mrb[0].mxu0 %v3699
    %v3909 = vpop.f32.mrb[0].mxu0
    %v3910 = vadd.f32 0.0, %v3909
    %v3911 = vpop.f32.mrb[0].mxu0
    %3912 = vmatprep.mubr.f32.mxu0 %v3713
    %3913 = vmatmul.mubr.f32.gmra.mrb[0].mxu0 %v3712
    %v3914 = vpop.f32.mrb[0].mxu0
    %v3915 = vadd.f32 0.0, %v3914
    %v3916 = vpop.f32.mrb[0].mxu0
    %3917 = vmatprep.mubr.f32.mxu0 %v3726
    %3918 = vmatmul.mubr.f32.gmra.mrb[0].mxu0 %v3725
    %v3919 = vpop.f32.mrb[0].mxu0
    %v3920 = vadd.f32 0.0, %v3919
    %v3921 = vpop.f32.mrb[0].mxu0
    %3922 = vmatprep.mubr.f32.mxu0 %v3739
    %3923 = vmatmul.mubr.f32.gmra.mrb[0].mxu0 %v3738
    %v3924 = vpop.f32.mrb[0].mxu0
    %v3925 = vadd.f32 0.0, %v3924
    %v3926 = vpop.f32.mrb[0].mxu0
    %3927 = vmatprep.mubr.f32.mxu0 %v3752
    %3928 = vmatmul.mubr.f32.gmra.mrb[0].mxu0 %v3751
    %v3929 = vpop.f32.mrb[0].mxu0
    %v3930 = vadd.f32 0.0, %v3929
    %v3931 = vpop.f32.mrb[0].mxu0
    %3932 = vmatprep.mubr.f32.mxu0 %v3765
    %3933 = vmatmul.mubr.f32.gmra.mrb[0].mxu0 %v3764
    %v3934 = vpop.f32.mrb[0].mxu0
    %v3935 = vadd.f32 0.0, %v3934
    %v3936 = vpop.f32.mrb[0].mxu0
    %3937 = vmatprep.mubr.f32.mxu0 %v3778
    %3938 = vmatmul.mubr.f32.gmra.mrb[0].mxu0 %v3777
    %v3939 = vpop.f32.mrb[0].mxu0
    %v3940 = vadd.f32 0.0, %v3939
    %v3941 = vpop.f32.mrb[0].mxu0
    %3942 = vmatprep.mubr.f32.mxu0 %v3791
    %3943 = vmatmul.mubr.f32.gmra.mrb[0].mxu0 %v3790
    %v3944 = vpop.f32.mrb[0].mxu0
    %v3945 = vadd.f32 0.0, %v3944
    %v3946 = vpop.f32.mrb[0].mxu0
    %3947 = vdwg.mxu0
    %3948 = vmatprep.subr.mxu0 0.0
    %3949 = vmatpush1.msra.mxu0 %v3244
    %3950 = vmatprep.subr.mxu0 0.0
    %3951 = vmatpush1.msra.mxu0 %v3246
    %3952 = vmatprep.subr.mxu0 0.0
    %3953 = vmatpush1.msra.mxu0 %v3248
    %3954 = vmatprep.subr.mxu0 0.0
    %3955 = vmatpush1.msra.mxu0 %v3250
    %3956 = vmatprep.subr.mxu0 0.0
    %3957 = vmatpush1.msra.mxu0 %v3252
    %3958 = vmatprep.subr.mxu0 0.0
    %3959 = vmatpush1.msra.mxu0 %v3254
    %3960 = vmatprep.subr.mxu0 0.0
    %3961 = vmatpush1.msra.mxu0 %v3256
    %3962 = vmatprep.subr.mxu0 0.0
    %3963 = vmatpush1.msra.mxu0 %v3258
    %3964 = vmatprep.subr.mxu0 0.0
    %3965 = vmatpush1.msra.mxu0 %v3260
    %3966 = vmatprep.subr.mxu0 0.0
    %3967 = vmatpush1.msra.mxu0 %v3262
    %3968 = vmatprep.subr.mxu0 0.0
    %3969 = vmatpush1.msra.mxu0 %v3264
    %3970 = vmatprep.subr.mxu0 0.0
    %3971 = vmatpush1.msra.mxu0 %v3266
    %3972 = vmatprep.subr.mxu0 0.0
    %3973 = vmatpush1.msra.mxu0 %v3268
    %3974 = vmatprep.subr.mxu0 0.0
    %3975 = vmatpush1.msra.mxu0 %v3270
    %3976 = vmatprep.subr.mxu0 0.0
    %3977 = vmatpush1.msra.mxu0 %v3272
    %3978 = vmatprep.subr.mxu0 0.0
    %3979 = vmatpush1.msra.mxu0 %v3274
    %3980 = vmatprep.subr.mxu0 0.0
    %3981 = vmatpush1.msra.mxu0 %v3276
    %3982 = vmatprep.subr.mxu0 0.0
    %3983 = vmatpush1.msra.mxu0 %v3278
    %3984 = vmatprep.subr.mxu0 0.0
    %3985 = vmatpush1.msra.mxu0 %v3280
    %3986 = vmatprep.subr.mxu0 0.0
    %3987 = vmatpush1.msra.mxu0 %v3282
    %3988 = vmatprep.subr.mxu0 0.0
    %3989 = vmatpush1.msra.mxu0 %v3284
    %3990 = vmatprep.subr.mxu0 0.0
    %3991 = vmatpush1.msra.mxu0 %v3286
    %3992 = vmatprep.subr.mxu0 0.0
    %3993 = vmatpush1.msra.mxu0 %v3288
    %3994 = vmatprep.subr.mxu0 0.0
    %3995 = vmatpush1.msra.mxu0 %v3290
    %3996 = vmatprep.subr.mxu0 0.0
    %3997 = vmatpush1.msra.mxu0 %v3292
    %3998 = vmatprep.subr.mxu0 0.0
    %3999 = vmatpush1.msra.mxu0 %v3294
    %4000 = vmatprep.subr.mxu0 0.0
    %4001 = vmatpush1.msra.mxu0 %v3296
    %4002 = vmatprep.subr.mxu0 0.0
    %4003 = vmatpush1.msra.mxu0 %v3298
    %4004 = vmatprep.subr.mxu0 0.0
    %4005 = vmatpush1.msra.mxu0 %v3300
    %4006 = vmatprep.subr.mxu0 0.0
    %4007 = vmatpush1.msra.mxu0 %v3302
    %4008 = vmatprep.subr.mxu0 0.0
    %4009 = vmatpush1.msra.mxu0 %v3304
    %4010 = vmatprep.subr.mxu0 0.0
    %4011 = vmatpush1.msra.mxu0 %v3306
    %4012 = vmatprep.mubr.f32.mxu0 %v3598
    %4013 = vmatmul.mubr.f32.gmra.mrb[0].mxu0 %v3597
    %v4014 = vpop.f32.mrb[0].mxu0
    %v4015 = vadd.f32 %v3870, %v4014
    %v4016 = vpop.f32.mrb[0].mxu0
    %4017 = vmatprep.mubr.f32.mxu0 %v3611
    %4018 = vmatmul.mubr.f32.gmra.mrb[0].mxu0 %v3610
    %v4019 = vpop.f32.mrb[0].mxu0
    %v4020 = vadd.f32 %v3875, %v4019
    %v4021 = vpop.f32.mrb[0].mxu0
    %4022 = vmatprep.mubr.f32.mxu0 %v3624
    %4023 = vmatmul.mubr.f32.gmra.mrb[0].mxu0 %v3623
    %v4024 = vpop.f32.mrb[0].mxu0
    %v4025 = vadd.f32 %v3880, %v4024
    %v4026 = vpop.f32.mrb[0].mxu0
    %4027 = vmatprep.mubr.f32.mxu0 %v3637
    %4028 = vmatmul.mubr.f32.gmra.mrb[0].mxu0 %v3636
    %v4029 = vpop.f32.mrb[0].mxu0
    %v4030 = vadd.f32 %v3885, %v4029
    %v4031 = vpop.f32.mrb[0].mxu0
    %4032 = vmatprep.mubr.f32.mxu0 %v3650
    %4033 = vmatmul.mubr.f32.gmra.mrb[0].mxu0 %v3649
    %v4034 = vpop.f32.mrb[0].mxu0
    %v4035 = vadd.f32 %v3890, %v4034
    %v4036 = vpop.f32.mrb[0].mxu0
    %4037 = vmatprep.mubr.f32.mxu0 %v3663
    %4038 = vmatmul.mubr.f32.gmra.mrb[0].mxu0 %v3662
    %v4039 = vpop.f32.mrb[0].mxu0
    %v4040 = vadd.f32 %v3895, %v4039
    %v4041 = vpop.f32.mrb[0].mxu0
    %4042 = vmatprep.mubr.f32.mxu0 %v3676
    %4043 = vmatmul.mubr.f32.gmra.mrb[0].mxu0 %v3675
    %v4044 = vpop.f32.mrb[0].mxu0
    %v4045 = vadd.f32 %v3900, %v4044
    %v4046 = vpop.f32.mrb[0].mxu0
    %4047 = vmatprep.mubr.f32.mxu0 %v3689
    %4048 = vmatmul.mubr.f32.gmra.mrb[0].mxu0 %v3688
    %v4049 = vpop.f32.mrb[0].mxu0
    %v4050 = vadd.f32 %v3905, %v4049
    %v4051 = vpop.f32.mrb[0].mxu0
    %4052 = vmatprep.mubr.f32.mxu0 %v3702
    %4053 = vmatmul.mubr.f32.gmra.mrb[0].mxu0 %v3701
    %v4054 = vpop.f32.mrb[0].mxu0
    %v4055 = vadd.f32 %v3910, %v4054
    %v4056 = vpop.f32.mrb[0].mxu0
    %4057 = vmatprep.mubr.f32.mxu0 %v3715
    %4058 = vmatmul.mubr.f32.gmra.mrb[0].mxu0 %v3714
    %v4059 = vpop.f32.mrb[0].mxu0
    %v4060 = vadd.f32 %v3915, %v4059
    %v4061 = vpop.f32.mrb[0].mxu0
    %4062 = vmatprep.mubr.f32.mxu0 %v3728
    %4063 = vmatmul.mubr.f32.gmra.mrb[0].mxu0 %v3727
    %v4064 = vpop.f32.mrb[0].mxu0
    %v4065 = vadd.f32 %v3920, %v4064
    %v4066 = vpop.f32.mrb[0].mxu0
    %4067 = vmatprep.mubr.f32.mxu0 %v3741
    %4068 = vmatmul.mubr.f32.gmra.mrb[0].mxu0 %v3740
    %v4069 = vpop.f32.mrb[0].mxu0
    %v4070 = vadd.f32 %v3925, %v4069
    %v4071 = vpop.f32.mrb[0].mxu0
    %4072 = vmatprep.mubr.f32.mxu0 %v3754
    %4073 = vmatmul.mubr.f32.gmra.mrb[0].mxu0 %v3753
    %v4074 = vpop.f32.mrb[0].mxu0
    %v4075 = vadd.f32 %v3930, %v4074
    %v4076 = vpop.f32.mrb[0].mxu0
    %4077 = vmatprep.mubr.f32.mxu0 %v3767
    %4078 = vmatmul.mubr.f32.gmra.mrb[0].mxu0 %v3766
    %v4079 = vpop.f32.mrb[0].mxu0
    %v4080 = vadd.f32 %v3935, %v4079
    %v4081 = vpop.f32.mrb[0].mxu0
    %4082 = vmatprep.mubr.f32.mxu0 %v3780
    %4083 = vmatmul.mubr.f32.gmra.mrb[0].mxu0 %v3779
    %v4084 = vpop.f32.mrb[0].mxu0
    %v4085 = vadd.f32 %v3940, %v4084
    %v4086 = vpop.f32.mrb[0].mxu0
    %4087 = vmatprep.mubr.f32.mxu0 %v3793
    %4088 = vmatmul.mubr.f32.gmra.mrb[0].mxu0 %v3792
    %v4089 = vpop.f32.mrb[0].mxu0
    %v4090 = vadd.f32 %v3945, %v4089
    %v4091 = vpop.f32.mrb[0].mxu0
    %4092 = vdwg.mxu0
    %4093 = vmatprep.subr.mxu0 0.0
    %4094 = vmatpush1.msra.mxu0 %v3308
    %4095 = vmatprep.subr.mxu0 0.0
    %4096 = vmatpush1.msra.mxu0 %v3310
    %4097 = vmatprep.subr.mxu0 0.0
    %4098 = vmatpush1.msra.mxu0 %v3312
    %4099 = vmatprep.subr.mxu0 0.0
    %4100 = vmatpush1.msra.mxu0 %v3314
    %4101 = vmatprep.subr.mxu0 0.0
    %4102 = vmatpush1.msra.mxu0 %v3316
    %4103 = vmatprep.subr.mxu0 0.0
    %4104 = vmatpush1.msra.mxu0 %v3318
    %4105 = vmatprep.subr.mxu0 0.0
    %4106 = vmatpush1.msra.mxu0 %v3320
    %4107 = vmatprep.subr.mxu0 0.0
    %4108 = vmatpush1.msra.mxu0 %v3322
    %4109 = vmatprep.subr.mxu0 0.0
    %4110 = vmatpush1.msra.mxu0 %v3324
    %4111 = vmatprep.subr.mxu0 0.0
    %4112 = vmatpush1.msra.mxu0 %v3326
    %4113 = vmatprep.subr.mxu0 0.0
    %4114 = vmatpush1.msra.mxu0 %v3328
    %4115 = vmatprep.subr.mxu0 0.0
    %4116 = vmatpush1.msra.mxu0 %v3330
    %4117 = vmatprep.subr.mxu0 0.0
    %4118 = vmatpush1.msra.mxu0 %v3332
    %4119 = vmatprep.subr.mxu0 0.0
    %4120 = vmatpush1.msra.mxu0 %v3334
    %4121 = vmatprep.subr.mxu0 0.0
    %4122 = vmatpush1.msra.mxu0 %v3336
    %4123 = vmatprep.subr.mxu0 0.0
    %4124 = vmatpush1.msra.mxu0 %v3338
    %4125 = vmatprep.subr.mxu0 0.0
    %4126 = vmatpush1.msra.mxu0 %v3340
    %4127 = vmatprep.subr.mxu0 0.0
    %4128 = vmatpush1.msra.mxu0 %v3342
    %4129 = vmatprep.subr.mxu0 0.0
    %4130 = vmatpush1.msra.mxu0 %v3344
    %4131 = vmatprep.subr.mxu0 0.0
    %4132 = vmatpush1.msra.mxu0 %v3346
    %4133 = vmatprep.subr.mxu0 0.0
    %4134 = vmatpush1.msra.mxu0 %v3348
    %4135 = vmatprep.subr.mxu0 0.0
    %4136 = vmatpush1.msra.mxu0 %v3350
    %4137 = vmatprep.subr.mxu0 0.0
    %4138 = vmatpush1.msra.mxu0 %v3352
    %4139 = vmatprep.subr.mxu0 0.0
    %4140 = vmatpush1.msra.mxu0 %v3354
    %4141 = vmatprep.subr.mxu0 0.0
    %4142 = vmatpush1.msra.mxu0 %v3356
    %4143 = vmatprep.subr.mxu0 0.0
    %4144 = vmatpush1.msra.mxu0 %v3358
    %4145 = vmatprep.subr.mxu0 0.0
    %4146 = vmatpush1.msra.mxu0 %v3360
    %4147 = vmatprep.subr.mxu0 0.0
    %4148 = vmatpush1.msra.mxu0 %v3362
    %4149 = vmatprep.subr.mxu0 0.0
    %4150 = vmatpush1.msra.mxu0 %v3364
    %4151 = vmatprep.subr.mxu0 0.0
    %4152 = vmatpush1.msra.mxu0 %v3366
    %4153 = vmatprep.subr.mxu0 0.0
    %4154 = vmatpush1.msra.mxu0 %v3368
    %4155 = vmatprep.subr.mxu0 0.0
    %4156 = vmatpush1.msra.mxu0 %v3370
    %4157 = vmatprep.mubr.f32.mxu0 %v3600
    %4158 = vmatmul.mubr.f32.gmra.mrb[0].mxu0 %v3599
    %v4159 = vpop.f32.mrb[0].mxu0
    %v4160 = vadd.f32 %v4015, %v4159
    %v4161 = vpop.f32.mrb[0].mxu0
    %4162 = vmatprep.mubr.f32.mxu0 %v3613
    %4163 = vmatmul.mubr.f32.gmra.mrb[0].mxu0 %v3612
    %v4164 = vpop.f32.mrb[0].mxu0
    %v4165 = vadd.f32 %v4020, %v4164
    %v4166 = vpop.f32.mrb[0].mxu0
    %4167 = vmatprep.mubr.f32.mxu0 %v3626
    %4168 = vmatmul.mubr.f32.gmra.mrb[0].mxu0 %v3625
    %v4169 = vpop.f32.mrb[0].mxu0
    %v4170 = vadd.f32 %v4025, %v4169
    %v4171 = vpop.f32.mrb[0].mxu0
    %4172 = vmatprep.mubr.f32.mxu0 %v3639
    %4173 = vmatmul.mubr.f32.gmra.mrb[0].mxu0 %v3638
    %v4174 = vpop.f32.mrb[0].mxu0
    %v4175 = vadd.f32 %v4030, %v4174
    %v4176 = vpop.f32.mrb[0].mxu0
    %4177 = vmatprep.mubr.f32.mxu0 %v3652
    %4178 = vmatmul.mubr.f32.gmra.mrb[0].mxu0 %v3651
    %v4179 = vpop.f32.mrb[0].mxu0
    %v4180 = vadd.f32 %v4035, %v4179
    %v4181 = vpop.f32.mrb[0].mxu0
    %4182 = vmatprep.mubr.f32.mxu0 %v3665
    %4183 = vmatmul.mubr.f32.gmra.mrb[0].mxu0 %v3664
    %v4184 = vpop.f32.mrb[0].mxu0
    %v4185 = vadd.f32 %v4040, %v4184
    %v4186 = vpop.f32.mrb[0].mxu0
    %4187 = vmatprep.mubr.f32.mxu0 %v3678
    %4188 = vmatmul.mubr.f32.gmra.mrb[0].mxu0 %v3677
    %v4189 = vpop.f32.mrb[0].mxu0
    %v4190 = vadd.f32 %v4045, %v4189
    %v4191 = vpop.f32.mrb[0].mxu0
    %4192 = vmatprep.mubr.f32.mxu0 %v3691
    %4193 = vmatmul.mubr.f32.gmra.mrb[0].mxu0 %v3690
    %v4194 = vpop.f32.mrb[0].mxu0
    %v4195 = vadd.f32 %v4050, %v4194
    %v4196 = vpop.f32.mrb[0].mxu0
    %4197 = vmatprep.mubr.f32.mxu0 %v3704
    %4198 = vmatmul.mubr.f32.gmra.mrb[0].mxu0 %v3703
    %v4199 = vpop.f32.mrb[0].mxu0
    %v4200 = vadd.f32 %v4055, %v4199
    %v4201 = vpop.f32.mrb[0].mxu0
    %4202 = vmatprep.mubr.f32.mxu0 %v3717
    %4203 = vmatmul.mubr.f32.gmra.mrb[0].mxu0 %v3716
    %v4204 = vpop.f32.mrb[0].mxu0
    %v4205 = vadd.f32 %v4060, %v4204
    %v4206 = vpop.f32.mrb[0].mxu0
    %4207 = vmatprep.mubr.f32.mxu0 %v3730
    %4208 = vmatmul.mubr.f32.gmra.mrb[0].mxu0 %v3729
    %v4209 = vpop.f32.mrb[0].mxu0
    %v4210 = vadd.f32 %v4065, %v4209
    %v4211 = vpop.f32.mrb[0].mxu0
    %4212 = vmatprep.mubr.f32.mxu0 %v3743
    %4213 = vmatmul.mubr.f32.gmra.mrb[0].mxu0 %v3742
    %v4214 = vpop.f32.mrb[0].mxu0
    %v4215 = vadd.f32 %v4070, %v4214
    %v4216 = vpop.f32.mrb[0].mxu0
    %4217 = vmatprep.mubr.f32.mxu0 %v3756
    %4218 = vmatmul.mubr.f32.gmra.mrb[0].mxu0 %v3755
    %v4219 = vpop.f32.mrb[0].mxu0
    %v4220 = vadd.f32 %v4075, %v4219
    %v4221 = vpop.f32.mrb[0].mxu0
    %4222 = vmatprep.mubr.f32.mxu0 %v3769
    %4223 = vmatmul.mubr.f32.gmra.mrb[0].mxu0 %v3768
    %v4224 = vpop.f32.mrb[0].mxu0
    %v4225 = vadd.f32 %v4080, %v4224
    %v4226 = vpop.f32.mrb[0].mxu0
    %4227 = vmatprep.mubr.f32.mxu0 %v3782
    %4228 = vmatmul.mubr.f32.gmra.mrb[0].mxu0 %v3781
    %v4229 = vpop.f32.mrb[0].mxu0
    %v4230 = vadd.f32 %v4085, %v4229
    %v4231 = vpop.f32.mrb[0].mxu0
    %4232 = vmatprep.mubr.f32.mxu0 %v3795
    %4233 = vmatmul.mubr.f32.gmra.mrb[0].mxu0 %v3794
    %v4234 = vpop.f32.mrb[0].mxu0
    %v4235 = vadd.f32 %v4090, %v4234
    %v4236 = vpop.f32.mrb[0].mxu0
    %4237 = vdwg.mxu0
    %4238 = vmatprep.subr.mxu0 0.0
    %4239 = vmatpush1.msra.mxu0 %v3372
    %4240 = vmatprep.subr.mxu0 0.0
    %4241 = vmatpush1.msra.mxu0 %v3374
    %4242 = vmatprep.subr.mxu0 0.0
    %4243 = vmatpush1.msra.mxu0 %v3376
    %4244 = vmatprep.subr.mxu0 0.0
    %4245 = vmatpush1.msra.mxu0 %v3378
    %4246 = vmatprep.subr.mxu0 0.0
    %4247 = vmatpush1.msra.mxu0 %v3380
    %4248 = vmatprep.subr.mxu0 0.0
    %4249 = vmatpush1.msra.mxu0 %v3382
    %4250 = vmatprep.subr.mxu0 0.0
    %4251 = vmatpush1.msra.mxu0 %v3384
    %4252 = vmatprep.subr.mxu0 0.0
    %4253 = vmatpush1.msra.mxu0 %v3386
    %4254 = vmatprep.subr.mxu0 0.0
    %4255 = vmatpush1.msra.mxu0 %v3388
    %4256 = vmatprep.subr.mxu0 0.0
    %4257 = vmatpush1.msra.mxu0 %v3390
    %4258 = vmatprep.subr.mxu0 0.0
    %4259 = vmatpush1.msra.mxu0 %v3392
    %4260 = vmatprep.subr.mxu0 0.0
    %4261 = vmatpush1.msra.mxu0 %v3394
    %4262 = vmatprep.subr.mxu0 0.0
    %4263 = vmatpush1.msra.mxu0 %v3396
    %4264 = vmatprep.subr.mxu0 0.0
    %4265 = vmatpush1.msra.mxu0 %v3398
    %4266 = vmatprep.subr.mxu0 0.0
    %4267 = vmatpush1.msra.mxu0 %v3400
    %4268 = vmatprep.subr.mxu0 0.0
    %4269 = vmatpush1.msra.mxu0 %v3402
    %4270 = vmatprep.subr.mxu0 0.0
    %4271 = vmatpush1.msra.mxu0 %v3404
    %4272 = vmatprep.subr.mxu0 0.0
    %4273 = vmatpush1.msra.mxu0 %v3406
    %4274 = vmatprep.subr.mxu0 0.0
    %4275 = vmatpush1.msra.mxu0 %v3408
    %4276 = vmatprep.subr.mxu0 0.0
    %4277 = vmatpush1.msra.mxu0 %v3410
    %4278 = vmatprep.subr.mxu0 0.0
    %4279 = vmatpush1.msra.mxu0 %v3412
    %4280 = vmatprep.subr.mxu0 0.0
    %4281 = vmatpush1.msra.mxu0 %v3414
    %4282 = vmatprep.subr.mxu0 0.0
    %4283 = vmatpush1.msra.mxu0 %v3416
    %4284 = vmatprep.subr.mxu0 0.0
    %4285 = vmatpush1.msra.mxu0 %v3418
    %4286 = vmatprep.subr.mxu0 0.0
    %4287 = vmatpush1.msra.mxu0 %v3420
    %4288 = vmatprep.subr.mxu0 0.0
    %4289 = vmatpush1.msra.mxu0 %v3422
    %4290 = vmatprep.subr.mxu0 0.0
    %4291 = vmatpush1.msra.mxu0 %v3424
    %4292 = vmatprep.subr.mxu0 0.0
    %4293 = vmatpush1.msra.mxu0 %v3426
    %4294 = vmatprep.subr.mxu0 0.0
    %4295 = vmatpush1.msra.mxu0 %v3428
    %4296 = vmatprep.subr.mxu0 0.0
    %4297 = vmatpush1.msra.mxu0 %v3430
    %4298 = vmatprep.subr.mxu0 0.0
    %4299 = vmatpush1.msra.mxu0 %v3432
    %4300 = vmatprep.subr.mxu0 0.0
    %4301 = vmatpush1.msra.mxu0 %v3434
    %4302 = vmatprep.mubr.f32.mxu0 %v3602
    %4303 = vmatmul.mubr.f32.gmra.mrb[0].mxu0 %v3601
    %v4304 = vpop.f32.mrb[0].mxu0
    %v4305 = vadd.f32 %v4160, %v4304
    %v4306 = vpop.f32.mrb[0].mxu0
    %4307 = vmatprep.mubr.f32.mxu0 %v3615
    %4308 = vmatmul.mubr.f32.gmra.mrb[0].mxu0 %v3614
    %v4309 = vpop.f32.mrb[0].mxu0
    %v4310 = vadd.f32 %v4165, %v4309
    %v4311 = vpop.f32.mrb[0].mxu0
    %4312 = vmatprep.mubr.f32.mxu0 %v3628
    %4313 = vmatmul.mubr.f32.gmra.mrb[0].mxu0 %v3627
    %v4314 = vpop.f32.mrb[0].mxu0
    %v4315 = vadd.f32 %v4170, %v4314
    %v4316 = vpop.f32.mrb[0].mxu0
    %4317 = vmatprep.mubr.f32.mxu0 %v3641
    %4318 = vmatmul.mubr.f32.gmra.mrb[0].mxu0 %v3640
    %v4319 = vpop.f32.mrb[0].mxu0
    %v4320 = vadd.f32 %v4175, %v4319
    %v4321 = vpop.f32.mrb[0].mxu0
    %4322 = vmatprep.mubr.f32.mxu0 %v3654
    %4323 = vmatmul.mubr.f32.gmra.mrb[0].mxu0 %v3653
    %v4324 = vpop.f32.mrb[0].mxu0
    %v4325 = vadd.f32 %v4180, %v4324
    %v4326 = vpop.f32.mrb[0].mxu0
    %4327 = vmatprep.mubr.f32.mxu0 %v3667
    %4328 = vmatmul.mubr.f32.gmra.mrb[0].mxu0 %v3666
    %v4329 = vpop.f32.mrb[0].mxu0
    %v4330 = vadd.f32 %v4185, %v4329
    %v4331 = vpop.f32.mrb[0].mxu0
    %4332 = vmatprep.mubr.f32.mxu0 %v3680
    %4333 = vmatmul.mubr.f32.gmra.mrb[0].mxu0 %v3679
    %v4334 = vpop.f32.mrb[0].mxu0
    %v4335 = vadd.f32 %v4190, %v4334
    %v4336 = vpop.f32.mrb[0].mxu0
    %4337 = vmatprep.mubr.f32.mxu0 %v3693
    %4338 = vmatmul.mubr.f32.gmra.mrb[0].mxu0 %v3692
    %v4339 = vpop.f32.mrb[0].mxu0
    %v4340 = vadd.f32 %v4195, %v4339
    %v4341 = vpop.f32.mrb[0].mxu0
    %4342 = vmatprep.mubr.f32.mxu0 %v3706
    %4343 = vmatmul.mubr.f32.gmra.mrb[0].mxu0 %v3705
    %v4344 = vpop.f32.mrb[0].mxu0
    %v4345 = vadd.f32 %v4200, %v4344
    %v4346 = vpop.f32.mrb[0].mxu0
    %4347 = vmatprep.mubr.f32.mxu0 %v3719
    %4348 = vmatmul.mubr.f32.gmra.mrb[0].mxu0 %v3718
    %v4349 = vpop.f32.mrb[0].mxu0
    %v4350 = vadd.f32 %v4205, %v4349
    %v4351 = vpop.f32.mrb[0].mxu0
    %4352 = vmatprep.mubr.f32.mxu0 %v3732
    %4353 = vmatmul.mubr.f32.gmra.mrb[0].mxu0 %v3731
    %v4354 = vpop.f32.mrb[0].mxu0
    %v4355 = vadd.f32 %v4210, %v4354
    %v4356 = vpop.f32.mrb[0].mxu0
    %4357 = vmatprep.mubr.f32.mxu0 %v3745
    %4358 = vmatmul.mubr.f32.gmra.mrb[0].mxu0 %v3744
    %v4359 = vpop.f32.mrb[0].mxu0
    %v4360 = vadd.f32 %v4215, %v4359
    %v4361 = vpop.f32.mrb[0].mxu0
    %4362 = vmatprep.mubr.f32.mxu0 %v3758
    %4363 = vmatmul.mubr.f32.gmra.mrb[0].mxu0 %v3757
    %v4364 = vpop.f32.mrb[0].mxu0
    %v4365 = vadd.f32 %v4220, %v4364
    %v4366 = vpop.f32.mrb[0].mxu0
    %4367 = vmatprep.mubr.f32.mxu0 %v3771
    %4368 = vmatmul.mubr.f32.gmra.mrb[0].mxu0 %v3770
    %v4369 = vpop.f32.mrb[0].mxu0
    %v4370 = vadd.f32 %v4225, %v4369
    %v4371 = vpop.f32.mrb[0].mxu0
    %4372 = vmatprep.mubr.f32.mxu0 %v3784
    %4373 = vmatmul.mubr.f32.gmra.mrb[0].mxu0 %v3783
    %v4374 = vpop.f32.mrb[0].mxu0
    %v4375 = vadd.f32 %v4230, %v4374
    %v4376 = vpop.f32.mrb[0].mxu0
    %4377 = vmatprep.mubr.f32.mxu0 %v3797
    %4378 = vmatmul.mubr.f32.gmra.mrb[0].mxu0 %v3796
    %v4379 = vpop.f32.mrb[0].mxu0
    %v4380 = vadd.f32 %v4235, %v4379
    %v4381 = vpop.f32.mrb[0].mxu0
    %4382 = vdwg.mxu0
    %4383 = vmatprep.subr.mxu0 0.0
    %4384 = vmatpush1.msra.mxu0 %v3436
    %4385 = vmatprep.subr.mxu0 0.0
    %4386 = vmatpush1.msra.mxu0 %v3438
    %4387 = vmatprep.subr.mxu0 0.0
    %4388 = vmatpush1.msra.mxu0 %v3440
    %4389 = vmatprep.subr.mxu0 0.0
    %4390 = vmatpush1.msra.mxu0 %v3442
    %4391 = vmatprep.subr.mxu0 0.0
    %4392 = vmatpush1.msra.mxu0 %v3444
    %4393 = vmatprep.subr.mxu0 0.0
    %4394 = vmatpush1.msra.mxu0 %v3446
    %4395 = vmatprep.subr.mxu0 0.0
    %4396 = vmatpush1.msra.mxu0 %v3448
    %4397 = vmatprep.subr.mxu0 0.0
    %4398 = vmatpush1.msra.mxu0 %v3450
    %4399 = vmatprep.subr.mxu0 0.0
    %4400 = vmatpush1.msra.mxu0 %v3452
    %4401 = vmatprep.subr.mxu0 0.0
    %4402 = vmatpush1.msra.mxu0 %v3454
    %4403 = vmatprep.subr.mxu0 0.0
    %4404 = vmatpush1.msra.mxu0 %v3456
    %4405 = vmatprep.subr.mxu0 0.0
    %4406 = vmatpush1.msra.mxu0 %v3458
    %4407 = vmatprep.subr.mxu0 0.0
    %4408 = vmatpush1.msra.mxu0 %v3460
    %4409 = vmatprep.subr.mxu0 0.0
    %4410 = vmatpush1.msra.mxu0 %v3462
    %4411 = vmatprep.subr.mxu0 0.0
    %4412 = vmatpush1.msra.mxu0 %v3464
    %4413 = vmatprep.subr.mxu0 0.0
    %4414 = vmatpush1.msra.mxu0 %v3466
    %4415 = vmatprep.subr.mxu0 0.0
    %4416 = vmatpush1.msra.mxu0 %v3468
    %4417 = vmatprep.subr.mxu0 0.0
    %4418 = vmatpush1.msra.mxu0 %v3470
    %4419 = vmatprep.subr.mxu0 0.0
    %4420 = vmatpush1.msra.mxu0 %v3472
    %4421 = vmatprep.subr.mxu0 0.0
    %4422 = vmatpush1.msra.mxu0 %v3474
    %4423 = vmatprep.subr.mxu0 0.0
    %4424 = vmatpush1.msra.mxu0 %v3476
    %4425 = vmatprep.subr.mxu0 0.0
    %4426 = vmatpush1.msra.mxu0 %v3478
    %4427 = vmatprep.subr.mxu0 0.0
    %4428 = vmatpush1.msra.mxu0 %v3480
    %4429 = vmatprep.subr.mxu0 0.0
    %4430 = vmatpush1.msra.mxu0 %v3482
    %4431 = vmatprep.subr.mxu0 0.0
    %4432 = vmatpush1.msra.mxu0 %v3484
    %4433 = vmatprep.subr.mxu0 0.0
    %4434 = vmatpush1.msra.mxu0 %v3486
    %4435 = vmatprep.subr.mxu0 0.0
    %4436 = vmatpush1.msra.mxu0 %v3488
    %4437 = vmatprep.subr.mxu0 0.0
    %4438 = vmatpush1.msra.mxu0 %v3490
    %4439 = vmatprep.subr.mxu0 0.0
    %4440 = vmatpush1.msra.mxu0 %v3492
    %4441 = vmatprep.subr.mxu0 0.0
    %4442 = vmatpush1.msra.mxu0 %v3494
    %4443 = vmatprep.subr.mxu0 0.0
    %4444 = vmatpush1.msra.mxu0 %v3496
    %4445 = vmatprep.subr.mxu0 0.0
    %4446 = vmatpush1.msra.mxu0 %v3498
    %4447 = vmatprep.mubr.f32.mxu0 %v3604
    %4448 = vmatmul.mubr.f32.gmra.mrb[0].mxu0 %v3603
    %v4449 = vpop.f32.mrb[0].mxu0
    %v4450 = vadd.f32 %v4305, %v4449
    %v4451 = vpop.f32.mrb[0].mxu0
    %4452 = vmatprep.mubr.f32.mxu0 %v3617
    %4453 = vmatmul.mubr.f32.gmra.mrb[0].mxu0 %v3616
    %v4454 = vpop.f32.mrb[0].mxu0
    %v4455 = vadd.f32 %v4310, %v4454
    %v4456 = vpop.f32.mrb[0].mxu0
    %4457 = vmatprep.mubr.f32.mxu0 %v3630
    %4458 = vmatmul.mubr.f32.gmra.mrb[0].mxu0 %v3629
    %v4459 = vpop.f32.mrb[0].mxu0
    %v4460 = vadd.f32 %v4315, %v4459
    %v4461 = vpop.f32.mrb[0].mxu0
    %4462 = vmatprep.mubr.f32.mxu0 %v3643
    %4463 = vmatmul.mubr.f32.gmra.mrb[0].mxu0 %v3642
    %v4464 = vpop.f32.mrb[0].mxu0
    %v4465 = vadd.f32 %v4320, %v4464
    %v4466 = vpop.f32.mrb[0].mxu0
    %4467 = vmatprep.mubr.f32.mxu0 %v3656
    %4468 = vmatmul.mubr.f32.gmra.mrb[0].mxu0 %v3655
    %v4469 = vpop.f32.mrb[0].mxu0
    %v4470 = vadd.f32 %v4325, %v4469
    %v4471 = vpop.f32.mrb[0].mxu0
    %4472 = vmatprep.mubr.f32.mxu0 %v3669
    %4473 = vmatmul.mubr.f32.gmra.mrb[0].mxu0 %v3668
    %v4474 = vpop.f32.mrb[0].mxu0
    %v4475 = vadd.f32 %v4330, %v4474
    %v4476 = vpop.f32.mrb[0].mxu0
    %4477 = vmatprep.mubr.f32.mxu0 %v3682
    %4478 = vmatmul.mubr.f32.gmra.mrb[0].mxu0 %v3681
    %v4479 = vpop.f32.mrb[0].mxu0
    %v4480 = vadd.f32 %v4335, %v4479
    %v4481 = vpop.f32.mrb[0].mxu0
    %4482 = vmatprep.mubr.f32.mxu0 %v3695
    %4483 = vmatmul.mubr.f32.gmra.mrb[0].mxu0 %v3694
    %v4484 = vpop.f32.mrb[0].mxu0
    %v4485 = vadd.f32 %v4340, %v4484
    %v4486 = vpop.f32.mrb[0].mxu0
    %4487 = vmatprep.mubr.f32.mxu0 %v3708
    %4488 = vmatmul.mubr.f32.gmra.mrb[0].mxu0 %v3707
    %v4489 = vpop.f32.mrb[0].mxu0
    %v4490 = vadd.f32 %v4345, %v4489
    %v4491 = vpop.f32.mrb[0].mxu0
    %4492 = vmatprep.mubr.f32.mxu0 %v3721
    %4493 = vmatmul.mubr.f32.gmra.mrb[0].mxu0 %v3720
    %v4494 = vpop.f32.mrb[0].mxu0
    %v4495 = vadd.f32 %v4350, %v4494
    %v4496 = vpop.f32.mrb[0].mxu0
    %4497 = vmatprep.mubr.f32.mxu0 %v3734
    %4498 = vmatmul.mubr.f32.gmra.mrb[0].mxu0 %v3733
    %v4499 = vpop.f32.mrb[0].mxu0
    %v4500 = vadd.f32 %v4355, %v4499
    %v4501 = vpop.f32.mrb[0].mxu0
    %4502 = vmatprep.mubr.f32.mxu0 %v3747
    %4503 = vmatmul.mubr.f32.gmra.mrb[0].mxu0 %v3746
    %v4504 = vpop.f32.mrb[0].mxu0
    %v4505 = vadd.f32 %v4360, %v4504
    %v4506 = vpop.f32.mrb[0].mxu0
    %4507 = vmatprep.mubr.f32.mxu0 %v3760
    %4508 = vmatmul.mubr.f32.gmra.mrb[0].mxu0 %v3759
    %v4509 = vpop.f32.mrb[0].mxu0
    %v4510 = vadd.f32 %v4365, %v4509
    %v4511 = vpop.f32.mrb[0].mxu0
    %4512 = vmatprep.mubr.f32.mxu0 %v3773
    %4513 = vmatmul.mubr.f32.gmra.mrb[0].mxu0 %v3772
    %v4514 = vpop.f32.mrb[0].mxu0
    %v4515 = vadd.f32 %v4370, %v4514
    %v4516 = vpop.f32.mrb[0].mxu0
    %4517 = vmatprep.mubr.f32.mxu0 %v3786
    %4518 = vmatmul.mubr.f32.gmra.mrb[0].mxu0 %v3785
    %v4519 = vpop.f32.mrb[0].mxu0
    %v4520 = vadd.f32 %v4375, %v4519
    %v4521 = vpop.f32.mrb[0].mxu0
    %4522 = vmatprep.mubr.f32.mxu0 %v3799
    %4523 = vmatmul.mubr.f32.gmra.mrb[0].mxu0 %v3798
    %v4524 = vpop.f32.mrb[0].mxu0
    %v4525 = vadd.f32 %v4380, %v4524
    %v4526 = vpop.f32.mrb[0].mxu0
    %4527 = vdwg.mxu0
    %4528 = vmatprep.subr.mxu0 0.0
    %4529 = vmatpush1.msra.mxu0 %v3500
    %4530 = vmatprep.subr.mxu0 0.0
    %4531 = vmatpush1.msra.mxu0 %v3502
    %4532 = vmatprep.subr.mxu0 0.0
    %4533 = vmatpush1.msra.mxu0 %v3504
    %4534 = vmatprep.subr.mxu0 0.0
    %4535 = vmatpush1.msra.mxu0 %v3506
    %4536 = vmatprep.subr.mxu0 0.0
    %4537 = vmatpush1.msra.mxu0 %v3508
    %4538 = vmatprep.subr.mxu0 0.0
    %4539 = vmatpush1.msra.mxu0 %v3510
    %4540 = vmatprep.subr.mxu0 0.0
    %4541 = vmatpush1.msra.mxu0 %v3512
    %4542 = vmatprep.subr.mxu0 0.0
    %4543 = vmatpush1.msra.mxu0 %v3514
    %4544 = vmatprep.subr.mxu0 0.0
    %4545 = vmatpush1.msra.mxu0 %v3516
    %4546 = vmatprep.subr.mxu0 0.0
    %4547 = vmatpush1.msra.mxu0 %v3518
    %4548 = vmatprep.subr.mxu0 0.0
    %4549 = vmatpush1.msra.mxu0 %v3520
    %4550 = vmatprep.subr.mxu0 0.0
    %4551 = vmatpush1.msra.mxu0 %v3522
    %4552 = vmatprep.subr.mxu0 0.0
    %4553 = vmatpush1.msra.mxu0 %v3524
    %4554 = vmatprep.subr.mxu0 0.0
    %4555 = vmatpush1.msra.mxu0 %v3526
    %4556 = vmatprep.subr.mxu0 0.0
    %4557 = vmatpush1.msra.mxu0 %v3528
    %4558 = vmatprep.subr.mxu0 0.0
    %4559 = vmatpush1.msra.mxu0 %v3530
    %4560 = vmatprep.subr.mxu0 0.0
    %4561 = vmatpush1.msra.mxu0 %v3532
    %4562 = vmatprep.subr.mxu0 0.0
    %4563 = vmatpush1.msra.mxu0 %v3534
    %4564 = vmatprep.subr.mxu0 0.0
    %4565 = vmatpush1.msra.mxu0 %v3536
    %4566 = vmatprep.subr.mxu0 0.0
    %4567 = vmatpush1.msra.mxu0 %v3538
    %4568 = vmatprep.subr.mxu0 0.0
    %4569 = vmatpush1.msra.mxu0 %v3540
    %4570 = vmatprep.subr.mxu0 0.0
    %4571 = vmatpush1.msra.mxu0 %v3542
    %4572 = vmatprep.subr.mxu0 0.0
    %4573 = vmatpush1.msra.mxu0 %v3544
    %4574 = vmatprep.subr.mxu0 0.0
    %4575 = vmatpush1.msra.mxu0 %v3546
    %4576 = vmatprep.subr.mxu0 0.0
    %4577 = vmatpush1.msra.mxu0 %v3548
    %4578 = vmatprep.subr.mxu0 0.0
    %4579 = vmatpush1.msra.mxu0 %v3550
    %4580 = vmatprep.subr.mxu0 0.0
    %4581 = vmatpush1.msra.mxu0 %v3552
    %4582 = vmatprep.subr.mxu0 0.0
    %4583 = vmatpush1.msra.mxu0 %v3554
    %4584 = vmatprep.subr.mxu0 0.0
    %4585 = vmatpush1.msra.mxu0 %v3556
    %4586 = vmatprep.subr.mxu0 0.0
    %4587 = vmatpush1.msra.mxu0 %v3558
    %4588 = vmatprep.subr.mxu0 0.0
    %4589 = vmatpush1.msra.mxu0 %v3560
    %4590 = vmatprep.subr.mxu0 0.0
    %4591 = vmatpush1.msra.mxu0 %v3562
    %4592 = vmatprep.mubr.f32.mxu0 %v3606
    %4593 = vmatmul.mubr.f32.gmra.mrb[0].mxu0 %v3605
    %v4594 = vpop.f32.mrb[0].mxu0
    %v4595 = vadd.f32 %v4450, %v4594
    %v4596 = vpop.f32.mrb[0].mxu0
    %4597 = vmatprep.mubr.f32.mxu0 %v3619
    %4598 = vmatmul.mubr.f32.gmra.mrb[0].mxu0 %v3618
    %v4599 = vpop.f32.mrb[0].mxu0
    %v4600 = vadd.f32 %v4455, %v4599
    %v4601 = vpop.f32.mrb[0].mxu0
    %4602 = vmatprep.mubr.f32.mxu0 %v3632
    %4603 = vmatmul.mubr.f32.gmra.mrb[0].mxu0 %v3631
    %v4604 = vpop.f32.mrb[0].mxu0
    %v4605 = vadd.f32 %v4460, %v4604
    %v4606 = vpop.f32.mrb[0].mxu0
    %4607 = vmatprep.mubr.f32.mxu0 %v3645
    %4608 = vmatmul.mubr.f32.gmra.mrb[0].mxu0 %v3644
    %v4609 = vpop.f32.mrb[0].mxu0
    %v4610 = vadd.f32 %v4465, %v4609
    %v4611 = vpop.f32.mrb[0].mxu0
    %4612 = vmatprep.mubr.f32.mxu0 %v3658
    %4613 = vmatmul.mubr.f32.gmra.mrb[0].mxu0 %v3657
    %v4614 = vpop.f32.mrb[0].mxu0
    %v4615 = vadd.f32 %v4470, %v4614
    %v4616 = vpop.f32.mrb[0].mxu0
    %4617 = vmatprep.mubr.f32.mxu0 %v3671
    %4618 = vmatmul.mubr.f32.gmra.mrb[0].mxu0 %v3670
    %v4619 = vpop.f32.mrb[0].mxu0
    %v4620 = vadd.f32 %v4475, %v4619
    %v4621 = vpop.f32.mrb[0].mxu0
    %4622 = vmatprep.mubr.f32.mxu0 %v3684
    %4623 = vmatmul.mubr.f32.gmra.mrb[0].mxu0 %v3683
    %v4624 = vpop.f32.mrb[0].mxu0
    %v4625 = vadd.f32 %v4480, %v4624
    %v4626 = vpop.f32.mrb[0].mxu0
    %4627 = vmatprep.mubr.f32.mxu0 %v3697
    %4628 = vmatmul.mubr.f32.gmra.mrb[0].mxu0 %v3696
    %v4629 = vpop.f32.mrb[0].mxu0
    %v4630 = vadd.f32 %v4485, %v4629
    %v4631 = vpop.f32.mrb[0].mxu0
    %4632 = vmatprep.mubr.f32.mxu0 %v3710
    %4633 = vmatmul.mubr.f32.gmra.mrb[0].mxu0 %v3709
    %v4634 = vpop.f32.mrb[0].mxu0
    %v4635 = vadd.f32 %v4490, %v4634
    %v4636 = vpop.f32.mrb[0].mxu0
    %4637 = vmatprep.mubr.f32.mxu0 %v3723
    %4638 = vmatmul.mubr.f32.gmra.mrb[0].mxu0 %v3722
    %v4639 = vpop.f32.mrb[0].mxu0
    %v4640 = vadd.f32 %v4495, %v4639
    %v4641 = vpop.f32.mrb[0].mxu0
    %4642 = vmatprep.mubr.f32.mxu0 %v3736
    %4643 = vmatmul.mubr.f32.gmra.mrb[0].mxu0 %v3735
    %v4644 = vpop.f32.mrb[0].mxu0
    %v4645 = vadd.f32 %v4500, %v4644
    %v4646 = vpop.f32.mrb[0].mxu0
    %4647 = vmatprep.mubr.f32.mxu0 %v3749
    %4648 = vmatmul.mubr.f32.gmra.mrb[0].mxu0 %v3748
    %v4649 = vpop.f32.mrb[0].mxu0
    %v4650 = vadd.f32 %v4505, %v4649
    %v4651 = vpop.f32.mrb[0].mxu0
    %4652 = vmatprep.mubr.f32.mxu0 %v3762
    %4653 = vmatmul.mubr.f32.gmra.mrb[0].mxu0 %v3761
    %v4654 = vpop.f32.mrb[0].mxu0
    %v4655 = vadd.f32 %v4510, %v4654
    %v4656 = vpop.f32.mrb[0].mxu0
    %4657 = vmatprep.mubr.f32.mxu0 %v3775
    %4658 = vmatmul.mubr.f32.gmra.mrb[0].mxu0 %v3774
    %v4659 = vpop.f32.mrb[0].mxu0
    %v4660 = vadd.f32 %v4515, %v4659
    %v4661 = vpop.f32.mrb[0].mxu0
    %4662 = vmatprep.mubr.f32.mxu0 %v3788
    %4663 = vmatmul.mubr.f32.gmra.mrb[0].mxu0 %v3787
    %v4664 = vpop.f32.mrb[0].mxu0
    %v4665 = vadd.f32 %v4520, %v4664
    %v4666 = vpop.f32.mrb[0].mxu0
    %4667 = vmatprep.mubr.f32.mxu0 %v3801
    %4668 = vmatmul.mubr.f32.gmra.mrb[0].mxu0 %v3800
    %v4669 = vpop.f32.mrb[0].mxu0
    %v4670 = vadd.f32 %v4525, %v4669
    %v4671 = vpop.f32.mrb[0].mxu0
    %4672 = vdwg.mxu0
    %4673 = vmatprep.subr.mxu0 0.0
    %4674 = vmatpush1.msra.mxu0 %v3564
    %4675 = vmatprep.subr.mxu0 0.0
    %4676 = vmatpush1.msra.mxu0 %v3566
    %4677 = vmatprep.subr.mxu0 0.0
    %4678 = vmatpush1.msra.mxu0 %v3568
    %4679 = vmatprep.subr.mxu0 0.0
    %4680 = vmatpush1.msra.mxu0 %v3570
    %4681 = vmatprep.subr.mxu0 0.0
    %4682 = vmatpush1.msra.mxu0 %v3572
    %4683 = vmatprep.subr.mxu0 0.0
    %4684 = vmatpush1.msra.mxu0 %v3574
    %4685 = vmatprep.subr.mxu0 0.0
    %4686 = vmatpush1.msra.mxu0 %v3576
    %4687 = vmatprep.subr.mxu0 0.0
    %4688 = vmatpush1.msra.mxu0 %v3578
    %4689 = vmatprep.subr.mxu0 0.0
    %4690 = vmatpush1.msra.mxu0 %v3580
    %4691 = vmatprep.subr.mxu0 0.0
    %4692 = vmatpush1.msra.mxu0 %v3582
    %4693 = vmatprep.subr.mxu0 0.0
    %4694 = vmatpush1.msra.mxu0 %v3584
    %4695 = vmatprep.subr.mxu0 0.0
    %4696 = vmatpush1.msra.mxu0 %v3586
    %4697 = vmatprep.subr.mxu0 0.0
    %4698 = vmatpush1.msra.mxu0 %v3588
    %4699 = vmatprep.subr.mxu0 0.0
    %4700 = vmatpush1.msra.mxu0 %v3590
    %4701 = vmatprep.subr.mxu0 0.0
    %4702 = vmatpush1.msra.mxu0 %v3592
    %4703 = vmatprep.subr.mxu0 0.0
    %4704 = vmatpush1.msra.mxu0 %v3594
    %4705 = vmatprep.subr.mxu0 0.0
    %4706 = vmatpush1.msra.mxu0 0.0
    %4707 = vmatprep.subr.mxu0 0.0
    %4708 = vmatpush1.msra.mxu0 0.0
    %4709 = vmatprep.subr.mxu0 0.0
    %4710 = vmatpush1.msra.mxu0 0.0
    %4711 = vmatprep.subr.mxu0 0.0
    %4712 = vmatpush1.msra.mxu0 0.0
    %4713 = vmatprep.subr.mxu0 0.0
    %4714 = vmatpush1.msra.mxu0 0.0
    %4715 = vmatprep.subr.mxu0 0.0
    %4716 = vmatpush1.msra.mxu0 0.0
    %4717 = vmatprep.subr.mxu0 0.0
    %4718 = vmatpush1.msra.mxu0 0.0
    %4719 = vmatprep.subr.mxu0 0.0
    %4720 = vmatpush1.msra.mxu0 0.0
    %4721 = vmatprep.subr.mxu0 0.0
    %4722 = vmatpush1.msra.mxu0 0.0
    %4723 = vmatprep.subr.mxu0 0.0
    %4724 = vmatpush1.msra.mxu0 0.0
    %4725 = vmatprep.subr.mxu0 0.0
    %4726 = vmatpush1.msra.mxu0 0.0
    %4727 = vmatprep.subr.mxu0 0.0
    %4728 = vmatpush1.msra.mxu0 0.0
    %4729 = vmatprep.subr.mxu0 0.0
    %4730 = vmatpush1.msra.mxu0 0.0
    %4731 = vmatprep.subr.mxu0 0.0
    %4732 = vmatpush1.msra.mxu0 0.0
    %4733 = vmatprep.subr.mxu0 0.0
    %4734 = vmatpush1.msra.mxu0 0.0
    %4735 = vmatprep.subr.mxu0 0.0
    %4736 = vmatpush1.msra.mxu0 0.0
    %4737 = vmatprep.mubr.f32.mxu0 0.0
    %4738 = vmatmul.mubr.f32.gmra.mrb[0].mxu0 %v3607
    %v4739 = vpop.f32.mrb[0].mxu0
    %v4740 = vadd.f32 %v4595, %v4739
    %v4741 = vpop.f32.mrb[0].mxu0
    %4742 = vmatprep.mubr.f32.mxu0 0.0
    %4743 = vmatmul.mubr.f32.gmra.mrb[0].mxu0 %v3620
    %v4744 = vpop.f32.mrb[0].mxu0
    %v4745 = vadd.f32 %v4600, %v4744
    %v4746 = vpop.f32.mrb[0].mxu0
    %4747 = vmatprep.mubr.f32.mxu0 0.0
    %4748 = vmatmul.mubr.f32.gmra.mrb[0].mxu0 %v3633
    %v4749 = vpop.f32.mrb[0].mxu0
    %v4750 = vadd.f32 %v4605, %v4749
    %v4751 = vpop.f32.mrb[0].mxu0
    %4752 = vmatprep.mubr.f32.mxu0 0.0
    %4753 = vmatmul.mubr.f32.gmra.mrb[0].mxu0 %v3646
    %v4754 = vpop.f32.mrb[0].mxu0
    %v4755 = vadd.f32 %v4610, %v4754
    %v4756 = vpop.f32.mrb[0].mxu0
    %4757 = vmatprep.mubr.f32.mxu0 0.0
    %4758 = vmatmul.mubr.f32.gmra.mrb[0].mxu0 %v3659
    %v4759 = vpop.f32.mrb[0].mxu0
    %v4760 = vadd.f32 %v4615, %v4759
    %v4761 = vpop.f32.mrb[0].mxu0
    %4762 = vmatprep.mubr.f32.mxu0 0.0
    %4763 = vmatmul.mubr.f32.gmra.mrb[0].mxu0 %v3672
    %v4764 = vpop.f32.mrb[0].mxu0
    %v4765 = vadd.f32 %v4620, %v4764
    %v4766 = vpop.f32.mrb[0].mxu0
    %4767 = vmatprep.mubr.f32.mxu0 0.0
    %4768 = vmatmul.mubr.f32.gmra.mrb[0].mxu0 %v3685
    %v4769 = vpop.f32.mrb[0].mxu0
    %v4770 = vadd.f32 %v4625, %v4769
    %v4771 = vpop.f32.mrb[0].mxu0
    %4772 = vmatprep.mubr.f32.mxu0 0.0
    %4773 = vmatmul.mubr.f32.gmra.mrb[0].mxu0 %v3698
    %v4774 = vpop.f32.mrb[0].mxu0
    %v4775 = vadd.f32 %v4630, %v4774
    %v4776 = vpop.f32.mrb[0].mxu0
    %4777 = vmatprep.mubr.f32.mxu0 0.0
    %4778 = vmatmul.mubr.f32.gmra.mrb[0].mxu0 %v3711
    %v4779 = vpop.f32.mrb[0].mxu0
    %v4780 = vadd.f32 %v4635, %v4779
    %v4781 = vpop.f32.mrb[0].mxu0
    %4782 = vmatprep.mubr.f32.mxu0 0.0
    %4783 = vmatmul.mubr.f32.gmra.mrb[0].mxu0 %v3724
    %v4784 = vpop.f32.mrb[0].mxu0
    %v4785 = vadd.f32 %v4640, %v4784
    %v4786 = vpop.f32.mrb[0].mxu0
    %4787 = vmatprep.mubr.f32.mxu0 0.0
    %4788 = vmatmul.mubr.f32.gmra.mrb[0].mxu0 %v3737
    %v4789 = vpop.f32.mrb[0].mxu0
    %v4790 = vadd.f32 %v4645, %v4789
    %v4791 = vpop.f32.mrb[0].mxu0
    %4792 = vmatprep.mubr.f32.mxu0 0.0
    %4793 = vmatmul.mubr.f32.gmra.mrb[0].mxu0 %v3750
    %v4794 = vpop.f32.mrb[0].mxu0
    %v4795 = vadd.f32 %v4650, %v4794
    %v4796 = vpop.f32.mrb[0].mxu0
    %4797 = vmatprep.mubr.f32.mxu0 0.0
    %4798 = vmatmul.mubr.f32.gmra.mrb[0].mxu0 %v3763
    %v4799 = vpop.f32.mrb[0].mxu0
    %v4800 = vadd.f32 %v4655, %v4799
    %v4801 = vpop.f32.mrb[0].mxu0
    %4802 = vmatprep.mubr.f32.mxu0 0.0
    %4803 = vmatmul.mubr.f32.gmra.mrb[0].mxu0 %v3776
    %v4804 = vpop.f32.mrb[0].mxu0
    %v4805 = vadd.f32 %v4660, %v4804
    %v4806 = vpop.f32.mrb[0].mxu0
    %4807 = vmatprep.mubr.f32.mxu0 0.0
    %4808 = vmatmul.mubr.f32.gmra.mrb[0].mxu0 %v3789
    %v4809 = vpop.f32.mrb[0].mxu0
    %v4810 = vadd.f32 %v4665, %v4809
    %v4811 = vpop.f32.mrb[0].mxu0
    %4812 = vmatprep.mubr.f32.mxu0 0.0
    %4813 = vmatmul.mubr.f32.gmra.mrb[0].mxu0 %v3802
    %v4814 = vpop.f32.mrb[0].mxu0
    %v4815 = vadd.f32 %v4670, %v4814
    %v4816 = vpop.f32.mrb[0].mxu0
    %4817 = vdwg.mxu0
    %v4818 = vld [vmem:[%s10] sm:$0xff]
    %v4819 = vld [vmem:[%s10 + $0x8] sm:$0xff]
    %v4820 = vld [vmem:[%s10 + $0x10] sm:$0xff]
    %v4821 = vld [vmem:[%s10 + $0x18] sm:$0xff]
    %v4822 = vld [vmem:[%s10 + $0x20] sm:$0xff]
    %v4823 = vld [vmem:[%s10 + $0x28] sm:$0xff]
    %v4824 = vld [vmem:[%s10 + $0x30] sm:$0xff]
    %v4825 = vld [vmem:[%s10 + $0x38] sm:$0xff]
    %v4826 = vld [vmem:[%s10 + $0x40] sm:$0xff]
    %v4827 = vld [vmem:[%s10 + $0x48] sm:$0xff]
    %v4828 = vld [vmem:[%s10 + $0x50] sm:$0xff]
    %v4829 = vld [vmem:[%s10 + $0x58] sm:$0xff]
    %v4830 = vld [vmem:[%s10 + $0x60] sm:$0xff]
    %v4831 = vld [vmem:[%s10 + $0x68] sm:$0xff]
    %v4832 = vld [vmem:[%s10 + $0x70] sm:$0xff]
    %v4833 = vld [vmem:[%s10 + $0x78] sm:$0xff]
    %v4834 = vmul.f32 %v4818, %v4740
    %v4835 = vmul.f32 %v4819, %v4745
    %v4836 = vmul.f32 %v4820, %v4750
    %v4837 = vmul.f32 %v4821, %v4755
    %v4838 = vmul.f32 %v4822, %v4760
    %v4839 = vmul.f32 %v4823, %v4765
    %v4840 = vmul.f32 %v4824, %v4770
    %v4841 = vmul.f32 %v4825, %v4775
    %v4842 = vmul.f32 %v4826, %v4780
    %v4843 = vmul.f32 %v4827, %v4785
    %v4844 = vmul.f32 %v4828, %v4790
    %v4845 = vmul.f32 %v4829, %v4795
    %v4846 = vmul.f32 %v4830, %v4800
    %v4847 = vmul.f32 %v4831, %v4805
    %v4848 = vmul.f32 %v4832, %v4810
    %v4849 = vmul.f32 %v4833, %v4815
    %v4850 = vadd.f32 %v4834, %v4835
    %v4851 = vadd.f32 %v4850, %v4836
    %v4852 = vadd.f32 %v4851, %v4837
    %v4853 = vadd.f32 %v4852, %v4838
    %v4854 = vadd.f32 %v4853, %v4839
    %v4855 = vadd.f32 %v4854, %v4840
    %v4856 = vadd.f32 %v4855, %v4841
    %v4857 = vadd.f32 %v4856, %v4842
    %v4858 = vadd.f32 %v4857, %v4843
    %v4859 = vadd.f32 %v4858, %v4844
    %v4860 = vadd.f32 %v4859, %v4845
    %v4861 = vadd.f32 %v4860, %v4846
    %v4862 = vadd.f32 %v4861, %v4847
    %v4863 = vadd.f32 %v4862, %v4848
    %v4864 = vadd.f32 %v4863, %v4849
    %v4865 = vrot.slane %v4864, 4
    %v4866 = vadd.f32 %v4864, %v4865
    %v4867 = vrot.slane %v4866, 2
    %v4868 = vadd.f32 %v4866, %v4867
    %v4869 = vrot.slane %v4868, 1
    %v4870 = vadd.f32 %v4868, %v4869
    %v4871 = vrcp.pop %v4815
    %v4872 = vmul.f32 %v4870, %v4871
    %v4873 = vlog2.pop %v293
    %v4874 = vmul.f32 %v4873, 0.6931472
    %v4875 = vsub.f32 0.0, %v4874
    %v4876 = vsub.f32 1.0, %v293
    %v4877 = vmul.f32 %v4876, %v4876
    %v4878 = vsub.f32 0.0, %v4877
    %v4879 = vlog2.pop %v1428
    %v4880 = vmul.f32 %v4879, 0.6931472
    %v4881 = vmul.f32 %v4878, %v4880
    %v4882 = vsub.f32 1.0, %v1428
    %v4883 = vmul.f32 %v4882, %v4882
    %v4884 = vsub.f32 0.0, %v4883
    %v4885 = vlog2.pop %v4872
    %v4886 = vmul.f32 %v4885, 0.6931472
    %v4887 = vmul.f32 %v4884, %v4886
    %4888 = vst [vmem:[%s11] sm:$0x1] %v4875
    %4889 = vst [vmem:[%s11 - $0x6] sm:$0x80] %v4881
    %4890 = vst [vmem:[%s11 - $0x5] sm:$0x80] %v4887
    %4891 = vst [vmem:[%s11 + $0x3] sm:$0x1] %v293
    %4892 = vst [vmem:[%s11 - $0x3] sm:$0x80] %v1428
    %4893 = vst [vmem:[%s11 - $0x2] sm:$0x80] %v4872
    %4894 = vst [vmem:[%s11 + $0x6] sm:$0x3] 0.0
    // Predicated region
    $region58: #{forward.1} parent=1 // pred_check
      _
    $region59: #{forward.1} parent=1 // pred_check_branch
      %4896 = sbr.rel (0) target = $region61
    $region60: #{forward.1} parent=1 // pred_region
      _
    $region61: #{forward.1} parent=1 // pred_fallthru
      _
    // Predicated region
    $region62: #{forward.1} parent=1 // pred_check
      _
    $region63: #{forward.1} parent=1 // pred_check_branch
      %4898 = sbr.rel (0) target = $region65
    $region64: #{forward.1} parent=1 // pred_region
      _
    $region65: #{forward.1} parent=1 // pred_fallthru
      _
    %4899 = vsyncpa [#allocation3], 1
    %4900 = vsyncpa [#allocation5], 1

</llo_original>
